<compile_context>
chip_gen: v5e
topology: v5e:2x2
jax: 0.10.0
libtpu: 0.0.40
codegen_flags: <defaults>
</compile_context>

<pallas_src>
import functools
import math

import jax
import jax.numpy as jnp
from jax.experimental import pallas as pl
from jax.experimental.pallas import tpu as pltpu

NEG_INF = -1e30  # additive mask value (finite stand-in for -inf)


# ----------------------------- fused decoder kernel -----------------------------

def _decoder_kernel(
    # per-(batch, q-tile) activations / mask biases
    y_ref, enc_ref, cslb_ref, dpad_ref, cpad_ref,
    # masked self-attention: folded Q, folded fused KV, out-proj, LN1
    w_sq_ref, b_sq_ref, w_skv_ref, b_skv_ref, w_so_ref, b_so_ref, ln1g_ref, ln1b_ref,
    # cross attention: folded Q, folded fused KV, out-proj, LN2
    w_cq_ref, b_cq_ref, w_ckv_ref, b_ckv_ref, w_co_ref, b_co_ref, ln2g_ref, ln2b_ref,
    # position-wise FFN, LN3
    w_f1_ref, b_f1_ref, w_f2_ref, b_f2_ref, ln3g_ref, ln3b_ref,
    # output
    o_ref,
    *, num_heads, t_tile,
):
    f32 = jnp.float32
    bf16 = jnp.bfloat16

    y_full = y_ref[0]                      # (T, D) f32 : full decoder sequence (for K/V)
    enc = enc_ref[0]                       # (S, D) f32
    T, D = y_full.shape
    H = num_heads
    hd = D // H
    TT = t_tile

    # query-row tile of this grid step
    t = pl.program_id(1)
    row0 = pl.multiple_of(t * TT, TT)
    y_tile = y_ref[0, pl.ds(row0, TT), :]  # (TT, D) f32

    def mm(x_f32, w_ref, b_ref):
        # x @ W.T + b : bf16 MXU matmul, f32 accumulation, f32 bias add.
        acc = jax.lax.dot_general(
            x_f32.astype(bf16), w_ref[...],
            (((1,), (1,)), ((), ())),
            preferred_element_type=f32)
        return acc + b_ref[...]

    def layer_norm(x, g_ref, b_ref):
        # PyTorch LayerNorm (biased variance, eps=1e-5), all f32 VPU/EUP math.
        mean = jnp.mean(x, axis=-1, keepdims=True)
        xc = x - mean
        var = jnp.mean(xc * xc, axis=-1, keepdims=True)
        return xc * jax.lax.rsqrt(var + 1e-5) * g_ref[...] + b_ref[...]

    def mha(q, k, v, bias):
        # q: (Tq, D), k/v: (Tk, D) f32; bias broadcastable to (Tq, Tk) f32.
        # Head-batched attention: one cast per operand, two batched MXU einsums,
        # no per-head lane slices and no trailing concat.  Q is pre-scaled by
        # 1/sqrt(hd) via the folded projection weights.  Softmax stays f32.
        Tq, Tk = q.shape[0], k.shape[0]
        qh = q.reshape(Tq, H, hd).astype(bf16)
        kh = k.reshape(Tk, H, hd).astype(bf16)
        vh = v.reshape(Tk, H, hd).astype(bf16)
        s = jnp.einsum('thd,shd->hts', qh, kh,
                       preferred_element_type=f32)            # (H, Tq, Tk) f32
        s = s + bias[None, :, :]                              # mask added in f32
        s_max = jnp.max(s, axis=-1, keepdims=True)
        p = jnp.exp(s - s_max)
        inv = pl.reciprocal(jnp.sum(p, axis=-1, keepdims=True), approx=True)
        p = (p * inv).astype(bf16)
        o = jnp.einsum('hts,shd->thd', p, vh,
                       preferred_element_type=f32)            # (Tq, H, hd) f32
        return o.reshape(Tq, D)

    # ---- masked multihead self-attention (folded qkv1 + in_proj) ----
    # K/V over the full decoder sequence (recomputed per query tile when T is tiled);
    # Q only for this tile.
    kv_s = mm(y_full, w_skv_ref, b_skv_ref)                   # (T, 2D)
    q_s = mm(y_tile, w_sq_ref, b_sq_ref)                      # (TT, D)
    # additive bias: user attn_mask tile (shared across batch) + per-batch key padding
    self_bias = cslb_ref[...] + dpad_ref[0]                   # (TT, T)
    attn1 = mha(q_s, kv_s[:, :D], kv_s[:, D:], self_bias)     # (TT, D)
    # fused out-proj + residual + LayerNorm1
    h_res = layer_norm(mm(attn1, w_so_ref, b_so_ref) + y_tile, ln1g_ref, ln1b_ref)

    # ---- cross multihead attention (folded qkv2 + in_proj) ----
    kv_c = mm(enc, w_ckv_ref, b_ckv_ref)                      # (S, 2D)
    q_c = mm(h_res, w_cq_ref, b_cq_ref)                       # (TT, D)
    attn2 = mha(q_c, kv_c[:, :D], kv_c[:, D:], cpad_ref[0])   # bias (1, S)
    # fused out-proj + residual + LayerNorm2
    h_res2 = layer_norm(mm(attn2, w_co_ref, b_co_ref) + h_res, ln2g_ref, ln2b_ref)

    # ---- position-wise FFN + residual + LayerNorm3 (fused tail) ----
    h_ff = jnp.maximum(mm(h_res2, w_f1_ref, b_f1_ref), 0.0)   # (TT, 4D)
    dec = layer_norm(mm(h_ff, w_f2_ref, b_f2_ref) + h_res2, ln3g_ref, ln3b_ref)

    o_ref[0] = dec.astype(o_ref.dtype)


# ----------------------------- parameter prep (trace-time folding) -----------------------------

def _init_linear(key, dout, din):
    k1, k2 = jax.random.split(key)
    bound = 1.0 / math.sqrt(din)
    w = jax.random.uniform(k1, (dout, din), jnp.float32, -bound, bound)
    b = jax.random.uniform(k2, (dout,), jnp.float32, -bound, bound)
    return w, b


def init_decoder_params(key, d_model):
    """Parameters mirroring the PyTorch Decoder module structure (f32, torch layout)."""
    keys = iter(jax.random.split(key, 32))
    p = {}
    # qkv1 (in_=True): Q/K/V then QA/KA/VA
    for name in ["q", "k", "v", "qa1", "ka1", "va1"]:
        p[f"w_{name}"], p[f"b_{name}"] = _init_linear(next(keys), d_model, d_model)
    # masked self-attention MHA (in_proj split into q/k/v + out_proj)
    mha1 = {}
    for name in ["q", "k", "v", "o"]:
        mha1[f"w_{name}"], mha1[f"b_{name}"] = _init_linear(next(keys), d_model, d_model)
    p["mha1"] = mha1
    p["ln1_g"] = jnp.ones((d_model,), jnp.float32)
    p["ln1_b"] = jnp.zeros((d_model,), jnp.float32)
    # qkv2 (in_=False): only QA/KA/VA
    for name in ["qa2", "ka2", "va2"]:
        p[f"w_{name}"], p[f"b_{name}"] = _init_linear(next(keys), d_model, d_model)
    mha2 = {}
    for name in ["q", "k", "v", "o"]:
        mha2[f"w_{name}"], mha2[f"b_{name}"] = _init_linear(next(keys), d_model, d_model)
    p["mha2"] = mha2
    p["ln2_g"] = jnp.ones((d_model,), jnp.float32)
    p["ln2_b"] = jnp.zeros((d_model,), jnp.float32)
    # position-wise FFN
    p["w_ff1"], p["b_ff1"] = _init_linear(next(keys), 4 * d_model, d_model)
    p["w_ff2"], p["b_ff2"] = _init_linear(next(keys), d_model, 4 * d_model)
    p["ln3_g"] = jnp.ones((d_model,), jnp.float32)
    p["ln3_b"] = jnp.zeros((d_model,), jnp.float32)
    return p


def _fold(w2, b2, w1, b1):
    """x -> (x @ w1.T + b1) @ w2.T + b2  ==  x @ (w2 @ w1).T + (w2 @ b1 + b2).  Exact."""
    return w2 @ w1, w2 @ b1 + b2


def fold_decoder_params(p, d_model, num_heads):
    """Fold projection chains, fuse K/V weights, fold the softmax scale into Q, cast
    matmul weights to bf16 (biases / LN params stay f32, reshaped to (1, X))."""
    hd = d_model // num_heads
    scale = 1.0 / math.sqrt(hd)
    m1, m2 = p["mha1"], p["mha2"]

    # self-attention path: linearQ -> linearQA -> mha1.in_proj_{q,k,v}
    wq, bq = _fold(m1["w_q"], m1["b_q"], *_fold(p["w_qa1"], p["b_qa1"], p["w_q"], p["b_q"]))
    wk, bk = _fold(m1["w_k"], m1["b_k"], *_fold(p["w_ka1"], p["b_ka1"], p["w_k"], p["b_k"]))
    wv, bv = _fold(m1["w_v"], m1["b_v"], *_fold(p["w_va1"], p["b_va1"], p["w_v"], p["b_v"]))
    wq, bq = wq * scale, bq * scale                      # fold 1/sqrt(hd) into Q

    # cross-attention path: linearQA2/KA2/VA2 -> mha2.in_proj_{q,k,v}
    wq2, bq2 = _fold(m2["w_q"], m2["b_q"], p["w_qa2"], p["b_qa2"])
    wq2, bq2 = wq2 * scale, bq2 * scale
    wk2, bk2 = _fold(m2["w_k"], m2["b_k"], p["w_ka2"], p["b_ka2"])
    wv2, bv2 = _fold(m2["w_v"], m2["b_v"], p["w_va2"], p["b_va2"])

    bf16, f32 = jnp.bfloat16, jnp.float32
    row = lambda x: x.reshape(1, -1).astype(f32)
    return {
        "w_self_q": wq.astype(bf16), "b_self_q": row(bq),
        "w_self_kv": jnp.concatenate([wk, wv], axis=0).astype(bf16),
        "b_self_kv": row(jnp.concatenate([bk, bv])),
        "w_self_out": m1["w_o"].astype(bf16), "b_self_out": row(m1["b_o"]),
        "ln1_g": row(p["ln1_g"]), "ln1_b": row(p["ln1_b"]),
        "w_cross_q": wq2.astype(bf16), "b_cross_q": row(bq2),
        "w_cross_kv": jnp.concatenate([wk2, wv2], axis=0).astype(bf16),
        "b_cross_kv": row(jnp.concatenate([bk2, bv2])),
        "w_cross_out": m2["w_o"].astype(bf16), "b_cross_out": row(m2["b_o"]),
        "ln2_g": row(p["ln2_g"]), "ln2_b": row(p["ln2_b"]),
        "w_ff1": p["w_ff1"].astype(bf16), "b_ff1": row(p["b_ff1"]),
        "w_ff2": p["w_ff2"].astype(bf16), "b_ff2": row(p["b_ff2"]),
        "ln3_g": row(p["ln3_g"]), "ln3_b": row(p["ln3_b"]),
    }


# ----------------------------- forward wrapper -----------------------------

def decoder_forward(fw, y, enc_out, csl_msk, pad_msk, enc_pad_msk, num_heads, t_tile=None):
    B, T, D = y.shape
    S = enc_out.shape[1]

    # Query-row tile size: full T when small, 128 otherwise (must divide T).
    TT = min(T, 128) if t_tile is None else min(t_tile, T)
    assert T % TT == 0, "T must be a multiple of the query tile size"
    nT = T // TT

    # Additive mask biases (f32).  The attn_mask bias is SHARED across batch (T, T);
    # only small (B,1,T)/(B,1,S) key-padding biases carry a batch dimension — the
    # (B, T, T) f32 mask is never materialized.
    csl_bias = jnp.where(csl_msk, NEG_INF, 0.0).astype(jnp.float32)            # (T, T)
    dpad_bias = jnp.where(pad_msk[:, None, :], NEG_INF, 0.0).astype(jnp.float32)      # (B,1,T)
    cpad_bias = jnp.where(enc_pad_msk[:, None, :], NEG_INF, 0.0).astype(jnp.float32)  # (B,1,S)

    w_args = [
        fw["w_self_q"], fw["b_self_q"], fw["w_self_kv"], fw["b_self_kv"],
        fw["w_self_out"], fw["b_self_out"], fw["ln1_g"], fw["ln1_b"],
        fw["w_cross_q"], fw["b_cross_q"], fw["w_cross_kv"], fw["b_cross_kv"],
        fw["w_cross_out"], fw["b_cross_out"], fw["ln2_g"], fw["ln2_b"],
        fw["w_ff1"], fw["b_ff1"], fw["w_ff2"], fw["b_ff2"], fw["ln3_g"], fw["ln3_b"],
    ]

    in_specs = [
        pl.BlockSpec((1, T, D), lambda b, t: (b, 0, 0)),    # y (full seq, resident per b)
        pl.BlockSpec((1, S, D), lambda b, t: (b, 0, 0)),    # enc_out
        pl.BlockSpec((TT, T), lambda b, t: (t, 0)),         # attn_mask bias tile (shared over b)
        pl.BlockSpec((1, 1, T), lambda b, t: (b, 0, 0)),    # decoder key-padding bias
        pl.BlockSpec((1, 1, S), lambda b, t: (b, 0, 0)),    # encoder key-padding bias
    ] + [pl.BlockSpec(a.shape, lambda b, t: (0, 0)) for a in w_args]  # resident weights (all 2D)

    return pl.pallas_call(
        functools.partial(_decoder_kernel, num_heads=num_heads, t_tile=TT),
        out_shape=jax.ShapeDtypeStruct((B, T, D), jnp.float32),
        grid=(B, nT),
        in_specs=in_specs,
        out_specs=pl.BlockSpec((1, TT, D), lambda b, t: (b, t, 0)),
        compiler_params=pltpu.CompilerParams(
            dimension_semantics=("parallel", "parallel"),
            vmem_limit_bytes=64 * 1024 * 1024,
        ),
    )(y, enc_out, csl_bias, dpad_bias, cpad_bias, *w_args)


if __name__ == "__main__":
    B, T, S, D, H = 2, 8, 8, 32, 4  # batch, dec seq, enc seq, d_model, num_heads

    key = jax.random.PRNGKey(0)
    kp, ky, ke = jax.random.split(key, 3)
    params = init_decoder_params(kp, D)
    folded = fold_decoder_params(params, D, H)

    y = jax.random.normal(ky, (B, T, D), jnp.float32)
    enc_out = jax.random.normal(ke, (B, S, D), jnp.float32)
    csl_msk = jnp.triu(jnp.ones((T, T), dtype=bool), k=1)               # True = disallowed (causal)
    pad_msk = jnp.zeros((B, T), dtype=bool)                             # no decoder padding
    enc_pad_msk = jnp.zeros((B, S), dtype=bool).at[1, S - 1].set(True)  # pad last enc token, batch 1

    fwd = jax.jit(functools.partial(decoder_forward, num_heads=H))
    out = fwd(folded, y, enc_out, csl_msk, pad_msk, enc_pad_msk)
    out = jax.block_until_ready(out)

    assert out.shape == (B, T, D)
    assert bool(jnp.all(jnp.isfinite(out)))
    print("KERNEL_OK")
</pallas_src>

<mosaic_0001>
module attributes {stable_mosaic.version = 11 : i64} {
  func.func @_decoder_kernel(%arg0: i32, %arg1: i32, %arg2: memref<1x8x32xf32, #tpu.memory_space<vmem>>, %arg3: memref<1x8x32xf32, #tpu.memory_space<vmem>>, %arg4: memref<8x8xf32, #tpu.memory_space<vmem>>, %arg5: memref<1x1x8xf32, #tpu.memory_space<vmem>>, %arg6: memref<1x1x8xf32, #tpu.memory_space<vmem>>, %arg7: memref<32x32xbf16, #tpu.memory_space<vmem>>, %arg8: memref<1x32xf32, #tpu.memory_space<vmem>>, %arg9: memref<64x32xbf16, #tpu.memory_space<vmem>>, %arg10: memref<1x64xf32, #tpu.memory_space<vmem>>, %arg11: memref<32x32xbf16, #tpu.memory_space<vmem>>, %arg12: memref<1x32xf32, #tpu.memory_space<vmem>>, %arg13: memref<1x32xf32, #tpu.memory_space<vmem>>, %arg14: memref<1x32xf32, #tpu.memory_space<vmem>>, %arg15: memref<32x32xbf16, #tpu.memory_space<vmem>>, %arg16: memref<1x32xf32, #tpu.memory_space<vmem>>, %arg17: memref<64x32xbf16, #tpu.memory_space<vmem>>, %arg18: memref<1x64xf32, #tpu.memory_space<vmem>>, %arg19: memref<32x32xbf16, #tpu.memory_space<vmem>>, %arg20: memref<1x32xf32, #tpu.memory_space<vmem>>, %arg21: memref<1x32xf32, #tpu.memory_space<vmem>>, %arg22: memref<1x32xf32, #tpu.memory_space<vmem>>, %arg23: memref<128x32xbf16, #tpu.memory_space<vmem>>, %arg24: memref<1x128xf32, #tpu.memory_space<vmem>>, %arg25: memref<32x128xbf16, #tpu.memory_space<vmem>>, %arg26: memref<1x32xf32, #tpu.memory_space<vmem>>, %arg27: memref<1x32xf32, #tpu.memory_space<vmem>>, %arg28: memref<1x32xf32, #tpu.memory_space<vmem>>, %arg29: memref<1x8x32xf32, #tpu.memory_space<vmem>>) attributes {dimension_semantics = [#tpu.dimension_semantics<parallel>, #tpu.dimension_semantics<parallel>], iteration_bounds = array<i64: 2, 1>, scalar_prefetch = 0 : i64, scratch_operands = 0 : i64, tpu.core_type = #tpu.core_type<tc>, window_params = [{transform_indices = @transform_0, window_bounds = array<i64: 1, 8, 32>}, {transform_indices = @transform_1, window_bounds = array<i64: 1, 8, 32>}, {transform_indices = @transform_2, window_bounds = array<i64: 8, 8>}, {transform_indices = @transform_3, window_bounds = array<i64: 1, 1, 8>}, {transform_indices = @transform_4, window_bounds = array<i64: 1, 1, 8>}, {pipeline_mode = #tpu.pipeline_mode<synchronous>, transform_indices = @transform_5, window_bounds = array<i64: 32, 32>}, {pipeline_mode = #tpu.pipeline_mode<synchronous>, transform_indices = @transform_6, window_bounds = array<i64: 1, 32>}, {pipeline_mode = #tpu.pipeline_mode<synchronous>, transform_indices = @transform_7, window_bounds = array<i64: 64, 32>}, {pipeline_mode = #tpu.pipeline_mode<synchronous>, transform_indices = @transform_8, window_bounds = array<i64: 1, 64>}, {pipeline_mode = #tpu.pipeline_mode<synchronous>, transform_indices = @transform_9, window_bounds = array<i64: 32, 32>}, {pipeline_mode = #tpu.pipeline_mode<synchronous>, transform_indices = @transform_10, window_bounds = array<i64: 1, 32>}, {pipeline_mode = #tpu.pipeline_mode<synchronous>, transform_indices = @transform_11, window_bounds = array<i64: 1, 32>}, {pipeline_mode = #tpu.pipeline_mode<synchronous>, transform_indices = @transform_12, window_bounds = array<i64: 1, 32>}, {pipeline_mode = #tpu.pipeline_mode<synchronous>, transform_indices = @transform_13, window_bounds = array<i64: 32, 32>}, {pipeline_mode = #tpu.pipeline_mode<synchronous>, transform_indices = @transform_14, window_bounds = array<i64: 1, 32>}, {pipeline_mode = #tpu.pipeline_mode<synchronous>, transform_indices = @transform_15, window_bounds = array<i64: 64, 32>}, {pipeline_mode = #tpu.pipeline_mode<synchronous>, transform_indices = @transform_16, window_bounds = array<i64: 1, 64>}, {pipeline_mode = #tpu.pipeline_mode<synchronous>, transform_indices = @transform_17, window_bounds = array<i64: 32, 32>}, {pipeline_mode = #tpu.pipeline_mode<synchronous>, transform_indices = @transform_18, window_bounds = array<i64: 1, 32>}, {pipeline_mode = #tpu.pipeline_mode<synchronous>, transform_indices = @transform_19, window_bounds = array<i64: 1, 32>}, {pipeline_mode = #tpu.pipeline_mode<synchronous>, transform_indices = @transform_20, window_bounds = array<i64: 1, 32>}, {pipeline_mode = #tpu.pipeline_mode<synchronous>, transform_indices = @transform_21, window_bounds = array<i64: 128, 32>}, {pipeline_mode = #tpu.pipeline_mode<synchronous>, transform_indices = @transform_22, window_bounds = array<i64: 1, 128>}, {pipeline_mode = #tpu.pipeline_mode<synchronous>, transform_indices = @transform_23, window_bounds = array<i64: 32, 128>}, {pipeline_mode = #tpu.pipeline_mode<synchronous>, transform_indices = @transform_24, window_bounds = array<i64: 1, 32>}, {pipeline_mode = #tpu.pipeline_mode<synchronous>, transform_indices = @transform_25, window_bounds = array<i64: 1, 32>}, {pipeline_mode = #tpu.pipeline_mode<synchronous>, transform_indices = @transform_26, window_bounds = array<i64: 1, 32>}, {transform_indices = @transform_27, window_bounds = array<i64: 1, 8, 32>}]} {
    %c0 = arith.constant 0 : index
    %c0_0 = arith.constant 0 : index
    %c0_1 = arith.constant 0 : index
    %0 = vector.load %arg2[%c0, %c0_0, %c0_1] : memref<1x8x32xf32, #tpu.memory_space<vmem>>, vector<1x8x32xf32>
    %1 = vector.shape_cast %0 : vector<1x8x32xf32> to vector<8x32xf32>
    %c0_2 = arith.constant 0 : index
    %c0_3 = arith.constant 0 : index
    %c0_4 = arith.constant 0 : index
    %2 = vector.load %arg3[%c0_2, %c0_3, %c0_4] : memref<1x8x32xf32, #tpu.memory_space<vmem>>, vector<1x8x32xf32>
    %3 = vector.shape_cast %2 : vector<1x8x32xf32> to vector<8x32xf32>
    %c8_i32 = arith.constant 8 : i32
    %4 = arith.muli %arg1, %c8_i32 : i32
    %5 = tpu.assume_multiple %4, 8 : i32
    %c0_5 = arith.constant 0 : index
    %6 = arith.index_cast %5 : i32 to index
    %c0_6 = arith.constant 0 : index
    %7 = vector.load %arg2[%c0_5, %6, %c0_6] : memref<1x8x32xf32, #tpu.memory_space<vmem>>, vector<1x8x32xf32>
    %8 = vector.shape_cast %7 : vector<1x8x32xf32> to vector<8x32xf32>
    %9 = arith.truncf %1 : vector<8x32xf32> to vector<8x32xbf16>
    %c0_7 = arith.constant 0 : index
    %c0_8 = arith.constant 0 : index
    %10 = vector.load %arg9[%c0_7, %c0_8] : memref<64x32xbf16, #tpu.memory_space<vmem>>, vector<64x32xbf16>
    %cst = arith.constant dense<0.000000e+00> : vector<8x64xf32>
    %11 = tpu.matmul %9, %10, %cst {dimension_numbers = #tpu.dot_dimension_numbers<[1], [1], [0], [0], [0, 0, 1, 0], [], []>} : vector<8x32xbf16>, vector<64x32xbf16>, vector<8x64xf32> -> vector<8x64xf32>
    %c0_9 = arith.constant 0 : index
    %c0_10 = arith.constant 0 : index
    %12 = vector.load %arg10[%c0_9, %c0_10] : memref<1x64xf32, #tpu.memory_space<vmem>>, vector<1x64xf32>
    %13 = vector.broadcast %12 : vector<1x64xf32> to vector<8x64xf32>
    %14 = arith.addf %11, %13 : vector<8x64xf32>
    %15 = arith.truncf %8 : vector<8x32xf32> to vector<8x32xbf16>
    %c0_11 = arith.constant 0 : index
    %c0_12 = arith.constant 0 : index
    %16 = vector.load %arg7[%c0_11, %c0_12] : memref<32x32xbf16, #tpu.memory_space<vmem>>, vector<32x32xbf16>
    %cst_13 = arith.constant dense<0.000000e+00> : vector<8x32xf32>
    %17 = tpu.matmul %15, %16, %cst_13 {dimension_numbers = #tpu.dot_dimension_numbers<[1], [1], [0], [0], [0, 0, 1, 0], [], []>} : vector<8x32xbf16>, vector<32x32xbf16>, vector<8x32xf32> -> vector<8x32xf32>
    %c0_14 = arith.constant 0 : index
    %c0_15 = arith.constant 0 : index
    %18 = vector.load %arg8[%c0_14, %c0_15] : memref<1x32xf32, #tpu.memory_space<vmem>>, vector<1x32xf32>
    %19 = vector.broadcast %18 : vector<1x32xf32> to vector<8x32xf32>
    %20 = arith.addf %17, %19 : vector<8x32xf32>
    %c0_16 = arith.constant 0 : index
    %c0_17 = arith.constant 0 : index
    %21 = vector.load %arg4[%c0_16, %c0_17] : memref<8x8xf32, #tpu.memory_space<vmem>>, vector<8x8xf32>
    %c0_18 = arith.constant 0 : index
    %c0_19 = arith.constant 0 : index
    %c0_20 = arith.constant 0 : index
    %22 = vector.load %arg5[%c0_18, %c0_19, %c0_20] : memref<1x1x8xf32, #tpu.memory_space<vmem>>, vector<1x1x8xf32>
    %23 = vector.shape_cast %22 : vector<1x1x8xf32> to vector<1x8xf32>
    %24 = vector.broadcast %23 : vector<1x8xf32> to vector<8x8xf32>
    %25 = arith.addf %21, %24 : vector<8x8xf32>
    %26 = vector.extract_strided_slice %14 {offsets = [0, 0], sizes = [8, 32], strides = [1, 1]} : vector<8x64xf32> to vector<8x32xf32>
    %27 = vector.extract_strided_slice %14 {offsets = [0, 32], sizes = [8, 32], strides = [1, 1]} : vector<8x64xf32> to vector<8x32xf32>
    %28 = vector.shape_cast %20 : vector<8x32xf32> to vector<8x4x8xf32>
    %29 = arith.truncf %28 : vector<8x4x8xf32> to vector<8x4x8xbf16>
    %30 = vector.shape_cast %26 : vector<8x32xf32> to vector<8x4x8xf32>
    %31 = arith.truncf %30 : vector<8x4x8xf32> to vector<8x4x8xbf16>
    %32 = vector.shape_cast %27 : vector<8x32xf32> to vector<8x4x8xf32>
    %33 = arith.truncf %32 : vector<8x4x8xf32> to vector<8x4x8xbf16>
    "tpu.trace_start"() <{level = 10 : i32, message = "thd,shd->hts"}> : () -> ()
    %cst_21 = arith.constant dense<0.000000e+00> : vector<4x8x8xf32>
    %34 = tpu.matmul %29, %31, %cst_21 {dimension_numbers = #tpu.dot_dimension_numbers<[2], [2], [0], [0], [0, 1, 0, 0, 1, 0], [1], [1]>} : vector<8x4x8xbf16>, vector<8x4x8xbf16>, vector<4x8x8xf32> -> vector<4x8x8xf32>
    "tpu.trace_stop"() : () -> ()
    %35 = vector.shape_cast %25 : vector<8x8xf32> to vector<1x8x8xf32>
    %36 = vector.broadcast %35 : vector<1x8x8xf32> to vector<4x8x8xf32>
    %37 = arith.addf %34, %36 : vector<4x8x8xf32>
    %cst_22 = arith.constant dense<0xFF800000> : vector<4x8xf32>
    %38 = vector.multi_reduction <maximumf>, %37, %cst_22 [2] : vector<4x8x8xf32> to vector<4x8xf32>
    %39 = vector.shape_cast %38 : vector<4x8xf32> to vector<4x8x1xf32>
    %40 = vector.broadcast %39 : vector<4x8x1xf32> to vector<4x8x8xf32>
    %41 = arith.subf %37, %40 : vector<4x8x8xf32>
    %42 = math.exp %41 : vector<4x8x8xf32>
    %cst_23 = arith.constant dense<0.000000e+00> : vector<4x8xf32>
    %43 = vector.multi_reduction <add>, %42, %cst_23 [2] : vector<4x8x8xf32> to vector<4x8xf32>
    %44 = vector.shape_cast %43 : vector<4x8xf32> to vector<4x8x1xf32>
    %45 = tpu.reciprocal %44 {approx = true} : vector<4x8x1xf32> -> vector<4x8x1xf32>
    %46 = vector.broadcast %45 : vector<4x8x1xf32> to vector<4x8x8xf32>
    %47 = arith.mulf %42, %46 : vector<4x8x8xf32>
    %48 = arith.truncf %47 : vector<4x8x8xf32> to vector<4x8x8xbf16>
    "tpu.trace_start"() <{level = 10 : i32, message = "hts,shd->thd"}> : () -> ()
    %cst_24 = arith.constant dense<0.000000e+00> : vector<4x8x8xf32>
    %49 = tpu.matmul %33, %48, %cst_24 {dimension_numbers = #tpu.dot_dimension_numbers<[0], [2], [2], [1], [0, 1, 0, 2, 1, 1], [1], [0]>} : vector<8x4x8xbf16>, vector<4x8x8xbf16>, vector<4x8x8xf32> -> vector<4x8x8xf32>
    %50 = tpu.transpose %49, [2, 0, 1] : vector<4x8x8xf32> -> vector<8x4x8xf32>
    "tpu.trace_stop"() : () -> ()
    %51 = vector.shape_cast %50 : vector<8x4x8xf32> to vector<8x32xf32>
    %52 = arith.truncf %51 : vector<8x32xf32> to vector<8x32xbf16>
    %c0_25 = arith.constant 0 : index
    %c0_26 = arith.constant 0 : index
    %53 = vector.load %arg11[%c0_25, %c0_26] : memref<32x32xbf16, #tpu.memory_space<vmem>>, vector<32x32xbf16>
    %cst_27 = arith.constant dense<0.000000e+00> : vector<8x32xf32>
    %54 = tpu.matmul %52, %53, %cst_27 {dimension_numbers = #tpu.dot_dimension_numbers<[1], [1], [0], [0], [0, 0, 1, 0], [], []>} : vector<8x32xbf16>, vector<32x32xbf16>, vector<8x32xf32> -> vector<8x32xf32>
    %c0_28 = arith.constant 0 : index
    %c0_29 = arith.constant 0 : index
    %55 = vector.load %arg12[%c0_28, %c0_29] : memref<1x32xf32, #tpu.memory_space<vmem>>, vector<1x32xf32>
    %56 = vector.broadcast %55 : vector<1x32xf32> to vector<8x32xf32>
    %57 = arith.addf %54, %56 : vector<8x32xf32>
    %58 = arith.addf %57, %8 : vector<8x32xf32>
    %cst_30 = arith.constant dense<0.000000e+00> : vector<8xf32>
    %59 = vector.multi_reduction <add>, %58, %cst_30 [1] : vector<8x32xf32> to vector<8xf32>
    %60 = vector.shape_cast %59 : vector<8xf32> to vector<8x1xf32>
    %cst_31 = arith.constant 3.200000e+01 : f32
    %61 = vector.broadcast %cst_31 : f32 to vector<8x1xf32>
    %62 = arith.divf %60, %61 : vector<8x1xf32>
    %63 = vector.broadcast %62 : vector<8x1xf32> to vector<8x32xf32>
    %64 = arith.subf %58, %63 : vector<8x32xf32>
    %65 = arith.mulf %64, %64 : vector<8x32xf32>
    %cst_32 = arith.constant dense<0.000000e+00> : vector<8xf32>
    %66 = vector.multi_reduction <add>, %65, %cst_32 [1] : vector<8x32xf32> to vector<8xf32>
    %67 = vector.shape_cast %66 : vector<8xf32> to vector<8x1xf32>
    %cst_33 = arith.constant 3.200000e+01 : f32
    %68 = vector.broadcast %cst_33 : f32 to vector<8x1xf32>
    %69 = arith.divf %67, %68 : vector<8x1xf32>
    %cst_34 = arith.constant 9.99999974E-6 : f32
    %70 = vector.broadcast %cst_34 : f32 to vector<8x1xf32>
    %71 = arith.addf %69, %70 : vector<8x1xf32>
    %72 = math.rsqrt %71 : vector<8x1xf32>
    %73 = vector.broadcast %72 : vector<8x1xf32> to vector<8x32xf32>
    %74 = arith.mulf %64, %73 : vector<8x32xf32>
    %c0_35 = arith.constant 0 : index
    %c0_36 = arith.constant 0 : index
    %75 = vector.load %arg13[%c0_35, %c0_36] : memref<1x32xf32, #tpu.memory_space<vmem>>, vector<1x32xf32>
    %76 = vector.broadcast %75 : vector<1x32xf32> to vector<8x32xf32>
    %77 = arith.mulf %74, %76 : vector<8x32xf32>
    %c0_37 = arith.constant 0 : index
    %c0_38 = arith.constant 0 : index
    %78 = vector.load %arg14[%c0_37, %c0_38] : memref<1x32xf32, #tpu.memory_space<vmem>>, vector<1x32xf32>
    %79 = vector.broadcast %78 : vector<1x32xf32> to vector<8x32xf32>
    %80 = arith.addf %77, %79 : vector<8x32xf32>
    %81 = arith.truncf %3 : vector<8x32xf32> to vector<8x32xbf16>
    %c0_39 = arith.constant 0 : index
    %c0_40 = arith.constant 0 : index
    %82 = vector.load %arg17[%c0_39, %c0_40] : memref<64x32xbf16, #tpu.memory_space<vmem>>, vector<64x32xbf16>
    %cst_41 = arith.constant dense<0.000000e+00> : vector<8x64xf32>
    %83 = tpu.matmul %81, %82, %cst_41 {dimension_numbers = #tpu.dot_dimension_numbers<[1], [1], [0], [0], [0, 0, 1, 0], [], []>} : vector<8x32xbf16>, vector<64x32xbf16>, vector<8x64xf32> -> vector<8x64xf32>
    %c0_42 = arith.constant 0 : index
    %c0_43 = arith.constant 0 : index
    %84 = vector.load %arg18[%c0_42, %c0_43] : memref<1x64xf32, #tpu.memory_space<vmem>>, vector<1x64xf32>
    %85 = vector.broadcast %84 : vector<1x64xf32> to vector<8x64xf32>
    %86 = arith.addf %83, %85 : vector<8x64xf32>
    %87 = arith.truncf %80 : vector<8x32xf32> to vector<8x32xbf16>
    %c0_44 = arith.constant 0 : index
    %c0_45 = arith.constant 0 : index
    %88 = vector.load %arg15[%c0_44, %c0_45] : memref<32x32xbf16, #tpu.memory_space<vmem>>, vector<32x32xbf16>
    %cst_46 = arith.constant dense<0.000000e+00> : vector<8x32xf32>
    %89 = tpu.matmul %87, %88, %cst_46 {dimension_numbers = #tpu.dot_dimension_numbers<[1], [1], [0], [0], [0, 0, 1, 0], [], []>} : vector<8x32xbf16>, vector<32x32xbf16>, vector<8x32xf32> -> vector<8x32xf32>
    %c0_47 = arith.constant 0 : index
    %c0_48 = arith.constant 0 : index
    %90 = vector.load %arg16[%c0_47, %c0_48] : memref<1x32xf32, #tpu.memory_space<vmem>>, vector<1x32xf32>
    %91 = vector.broadcast %90 : vector<1x32xf32> to vector<8x32xf32>
    %92 = arith.addf %89, %91 : vector<8x32xf32>
    %93 = vector.extract_strided_slice %86 {offsets = [0, 0], sizes = [8, 32], strides = [1, 1]} : vector<8x64xf32> to vector<8x32xf32>
    %94 = vector.extract_strided_slice %86 {offsets = [0, 32], sizes = [8, 32], strides = [1, 1]} : vector<8x64xf32> to vector<8x32xf32>
    %c0_49 = arith.constant 0 : index
    %c0_50 = arith.constant 0 : index
    %c0_51 = arith.constant 0 : index
    %95 = vector.load %arg6[%c0_49, %c0_50, %c0_51] : memref<1x1x8xf32, #tpu.memory_space<vmem>>, vector<1x1x8xf32>
    %96 = vector.shape_cast %95 : vector<1x1x8xf32> to vector<1x8xf32>
    %97 = vector.shape_cast %92 : vector<8x32xf32> to vector<8x4x8xf32>
    %98 = arith.truncf %97 : vector<8x4x8xf32> to vector<8x4x8xbf16>
    %99 = vector.shape_cast %93 : vector<8x32xf32> to vector<8x4x8xf32>
    %100 = arith.truncf %99 : vector<8x4x8xf32> to vector<8x4x8xbf16>
    %101 = vector.shape_cast %94 : vector<8x32xf32> to vector<8x4x8xf32>
    %102 = arith.truncf %101 : vector<8x4x8xf32> to vector<8x4x8xbf16>
    "tpu.trace_start"() <{level = 10 : i32, message = "thd,shd->hts"}> : () -> ()
    %cst_52 = arith.constant dense<0.000000e+00> : vector<4x8x8xf32>
    %103 = tpu.matmul %98, %100, %cst_52 {dimension_numbers = #tpu.dot_dimension_numbers<[2], [2], [0], [0], [0, 1, 0, 0, 1, 0], [1], [1]>} : vector<8x4x8xbf16>, vector<8x4x8xbf16>, vector<4x8x8xf32> -> vector<4x8x8xf32>
    "tpu.trace_stop"() : () -> ()
    %104 = vector.shape_cast %96 : vector<1x8xf32> to vector<1x1x8xf32>
    %105 = vector.broadcast %104 : vector<1x1x8xf32> to vector<4x8x8xf32>
    %106 = arith.addf %103, %105 : vector<4x8x8xf32>
    %cst_53 = arith.constant dense<0xFF800000> : vector<4x8xf32>
    %107 = vector.multi_reduction <maximumf>, %106, %cst_53 [2] : vector<4x8x8xf32> to vector<4x8xf32>
    %108 = vector.shape_cast %107 : vector<4x8xf32> to vector<4x8x1xf32>
    %109 = vector.broadcast %108 : vector<4x8x1xf32> to vector<4x8x8xf32>
    %110 = arith.subf %106, %109 : vector<4x8x8xf32>
    %111 = math.exp %110 : vector<4x8x8xf32>
    %cst_54 = arith.constant dense<0.000000e+00> : vector<4x8xf32>
    %112 = vector.multi_reduction <add>, %111, %cst_54 [2] : vector<4x8x8xf32> to vector<4x8xf32>
    %113 = vector.shape_cast %112 : vector<4x8xf32> to vector<4x8x1xf32>
    %114 = tpu.reciprocal %113 {approx = true} : vector<4x8x1xf32> -> vector<4x8x1xf32>
    %115 = vector.broadcast %114 : vector<4x8x1xf32> to vector<4x8x8xf32>
    %116 = arith.mulf %111, %115 : vector<4x8x8xf32>
    %117 = arith.truncf %116 : vector<4x8x8xf32> to vector<4x8x8xbf16>
    "tpu.trace_start"() <{level = 10 : i32, message = "hts,shd->thd"}> : () -> ()
    %cst_55 = arith.constant dense<0.000000e+00> : vector<4x8x8xf32>
    %118 = tpu.matmul %102, %117, %cst_55 {dimension_numbers = #tpu.dot_dimension_numbers<[0], [2], [2], [1], [0, 1, 0, 2, 1, 1], [1], [0]>} : vector<8x4x8xbf16>, vector<4x8x8xbf16>, vector<4x8x8xf32> -> vector<4x8x8xf32>
    %119 = tpu.transpose %118, [2, 0, 1] : vector<4x8x8xf32> -> vector<8x4x8xf32>
    "tpu.trace_stop"() : () -> ()
    %120 = vector.shape_cast %119 : vector<8x4x8xf32> to vector<8x32xf32>
    %121 = arith.truncf %120 : vector<8x32xf32> to vector<8x32xbf16>
    %c0_56 = arith.constant 0 : index
    %c0_57 = arith.constant 0 : index
    %122 = vector.load %arg19[%c0_56, %c0_57] : memref<32x32xbf16, #tpu.memory_space<vmem>>, vector<32x32xbf16>
    %cst_58 = arith.constant dense<0.000000e+00> : vector<8x32xf32>
    %123 = tpu.matmul %121, %122, %cst_58 {dimension_numbers = #tpu.dot_dimension_numbers<[1], [1], [0], [0], [0, 0, 1, 0], [], []>} : vector<8x32xbf16>, vector<32x32xbf16>, vector<8x32xf32> -> vector<8x32xf32>
    %c0_59 = arith.constant 0 : index
    %c0_60 = arith.constant 0 : index
    %124 = vector.load %arg20[%c0_59, %c0_60] : memref<1x32xf32, #tpu.memory_space<vmem>>, vector<1x32xf32>
    %125 = vector.broadcast %124 : vector<1x32xf32> to vector<8x32xf32>
    %126 = arith.addf %123, %125 : vector<8x32xf32>
    %127 = arith.addf %126, %80 : vector<8x32xf32>
    %cst_61 = arith.constant dense<0.000000e+00> : vector<8xf32>
    %128 = vector.multi_reduction <add>, %127, %cst_61 [1] : vector<8x32xf32> to vector<8xf32>
    %129 = vector.shape_cast %128 : vector<8xf32> to vector<8x1xf32>
    %cst_62 = arith.constant 3.200000e+01 : f32
    %130 = vector.broadcast %cst_62 : f32 to vector<8x1xf32>
    %131 = arith.divf %129, %130 : vector<8x1xf32>
    %132 = vector.broadcast %131 : vector<8x1xf32> to vector<8x32xf32>
    %133 = arith.subf %127, %132 : vector<8x32xf32>
    %134 = arith.mulf %133, %133 : vector<8x32xf32>
    %cst_63 = arith.constant dense<0.000000e+00> : vector<8xf32>
    %135 = vector.multi_reduction <add>, %134, %cst_63 [1] : vector<8x32xf32> to vector<8xf32>
    %136 = vector.shape_cast %135 : vector<8xf32> to vector<8x1xf32>
    %cst_64 = arith.constant 3.200000e+01 : f32
    %137 = vector.broadcast %cst_64 : f32 to vector<8x1xf32>
    %138 = arith.divf %136, %137 : vector<8x1xf32>
    %cst_65 = arith.constant 9.99999974E-6 : f32
    %139 = vector.broadcast %cst_65 : f32 to vector<8x1xf32>
    %140 = arith.addf %138, %139 : vector<8x1xf32>
    %141 = math.rsqrt %140 : vector<8x1xf32>
    %142 = vector.broadcast %141 : vector<8x1xf32> to vector<8x32xf32>
    %143 = arith.mulf %133, %142 : vector<8x32xf32>
    %c0_66 = arith.constant 0 : index
    %c0_67 = arith.constant 0 : index
    %144 = vector.load %arg21[%c0_66, %c0_67] : memref<1x32xf32, #tpu.memory_space<vmem>>, vector<1x32xf32>
    %145 = vector.broadcast %144 : vector<1x32xf32> to vector<8x32xf32>
    %146 = arith.mulf %143, %145 : vector<8x32xf32>
    %c0_68 = arith.constant 0 : index
    %c0_69 = arith.constant 0 : index
    %147 = vector.load %arg22[%c0_68, %c0_69] : memref<1x32xf32, #tpu.memory_space<vmem>>, vector<1x32xf32>
    %148 = vector.broadcast %147 : vector<1x32xf32> to vector<8x32xf32>
    %149 = arith.addf %146, %148 : vector<8x32xf32>
    %150 = arith.truncf %149 : vector<8x32xf32> to vector<8x32xbf16>
    %c0_70 = arith.constant 0 : index
    %c0_71 = arith.constant 0 : index
    %151 = vector.load %arg23[%c0_70, %c0_71] : memref<128x32xbf16, #tpu.memory_space<vmem>>, vector<128x32xbf16>
    %cst_72 = arith.constant dense<0.000000e+00> : vector<8x128xf32>
    %152 = tpu.matmul %150, %151, %cst_72 {dimension_numbers = #tpu.dot_dimension_numbers<[1], [1], [0], [0], [0, 0, 1, 0], [], []>} : vector<8x32xbf16>, vector<128x32xbf16>, vector<8x128xf32> -> vector<8x128xf32>
    %c0_73 = arith.constant 0 : index
    %c0_74 = arith.constant 0 : index
    %153 = vector.load %arg24[%c0_73, %c0_74] : memref<1x128xf32, #tpu.memory_space<vmem>>, vector<1x128xf32>
    %154 = vector.broadcast %153 : vector<1x128xf32> to vector<8x128xf32>
    %155 = arith.addf %152, %154 : vector<8x128xf32>
    %cst_75 = arith.constant 0.000000e+00 : f32
    %156 = vector.broadcast %cst_75 : f32 to vector<8x128xf32>
    %157 = arith.maximumf %155, %156 : vector<8x128xf32>
    %158 = arith.truncf %157 : vector<8x128xf32> to vector<8x128xbf16>
    %c0_76 = arith.constant 0 : index
    %c0_77 = arith.constant 0 : index
    %159 = vector.load %arg25[%c0_76, %c0_77] : memref<32x128xbf16, #tpu.memory_space<vmem>>, vector<32x128xbf16>
    %cst_78 = arith.constant dense<0.000000e+00> : vector<8x32xf32>
    %160 = tpu.matmul %158, %159, %cst_78 {dimension_numbers = #tpu.dot_dimension_numbers<[1], [1], [0], [0], [0, 0, 1, 0], [], []>} : vector<8x128xbf16>, vector<32x128xbf16>, vector<8x32xf32> -> vector<8x32xf32>
    %c0_79 = arith.constant 0 : index
    %c0_80 = arith.constant 0 : index
    %161 = vector.load %arg26[%c0_79, %c0_80] : memref<1x32xf32, #tpu.memory_space<vmem>>, vector<1x32xf32>
    %162 = vector.broadcast %161 : vector<1x32xf32> to vector<8x32xf32>
    %163 = arith.addf %160, %162 : vector<8x32xf32>
    %164 = arith.addf %163, %149 : vector<8x32xf32>
    %cst_81 = arith.constant dense<0.000000e+00> : vector<8xf32>
    %165 = vector.multi_reduction <add>, %164, %cst_81 [1] : vector<8x32xf32> to vector<8xf32>
    %166 = vector.shape_cast %165 : vector<8xf32> to vector<8x1xf32>
    %cst_82 = arith.constant 3.200000e+01 : f32
    %167 = vector.broadcast %cst_82 : f32 to vector<8x1xf32>
    %168 = arith.divf %166, %167 : vector<8x1xf32>
    %169 = vector.broadcast %168 : vector<8x1xf32> to vector<8x32xf32>
    %170 = arith.subf %164, %169 : vector<8x32xf32>
    %171 = arith.mulf %170, %170 : vector<8x32xf32>
    %cst_83 = arith.constant dense<0.000000e+00> : vector<8xf32>
    %172 = vector.multi_reduction <add>, %171, %cst_83 [1] : vector<8x32xf32> to vector<8xf32>
    %173 = vector.shape_cast %172 : vector<8xf32> to vector<8x1xf32>
    %cst_84 = arith.constant 3.200000e+01 : f32
    %174 = vector.broadcast %cst_84 : f32 to vector<8x1xf32>
    %175 = arith.divf %173, %174 : vector<8x1xf32>
    %cst_85 = arith.constant 9.99999974E-6 : f32
    %176 = vector.broadcast %cst_85 : f32 to vector<8x1xf32>
    %177 = arith.addf %175, %176 : vector<8x1xf32>
    %178 = math.rsqrt %177 : vector<8x1xf32>
    %179 = vector.broadcast %178 : vector<8x1xf32> to vector<8x32xf32>
    %180 = arith.mulf %170, %179 : vector<8x32xf32>
    %c0_86 = arith.constant 0 : index
    %c0_87 = arith.constant 0 : index
    %181 = vector.load %arg27[%c0_86, %c0_87] : memref<1x32xf32, #tpu.memory_space<vmem>>, vector<1x32xf32>
    %182 = vector.broadcast %181 : vector<1x32xf32> to vector<8x32xf32>
    %183 = arith.mulf %180, %182 : vector<8x32xf32>
    %c0_88 = arith.constant 0 : index
    %c0_89 = arith.constant 0 : index
    %184 = vector.load %arg28[%c0_88, %c0_89] : memref<1x32xf32, #tpu.memory_space<vmem>>, vector<1x32xf32>
    %185 = vector.broadcast %184 : vector<1x32xf32> to vector<8x32xf32>
    %186 = arith.addf %183, %185 : vector<8x32xf32>
    %c0_90 = arith.constant 0 : index
    %c0_91 = arith.constant 0 : index
    %c0_92 = arith.constant 0 : index
    %187 = vector.load %arg29[%c0_90, %c0_91, %c0_92] : memref<1x8x32xf32, #tpu.memory_space<vmem>>, vector<1x8x32xf32>
    %188 = vector.shape_cast %187 : vector<1x8x32xf32> to vector<8x32xf32>
    %189 = vector.shape_cast %186 : vector<8x32xf32> to vector<1x8x32xf32>
    tpu.vector_store %arg29[%c0_90, %c0_91, %c0_92], %189 {strides = array<i32>} : memref<1x8x32xf32, #tpu.memory_space<vmem>>, vector<1x8x32xf32>,
    return
  }
  func.func @transform_0(%arg0: i32, %arg1: i32) -> (i32, i32, i32) {
    %c0_i32 = arith.constant 0 : i32
    %c0_i32_0 = arith.constant 0 : i32
    %c0_i32_1 = arith.constant 0 : i32
    return %arg0, %c0_i32, %c0_i32_0 : i32, i32, i32
  }
  func.func @transform_1(%arg0: i32, %arg1: i32) -> (i32, i32, i32) {
    %c0_i32 = arith.constant 0 : i32
    %c0_i32_0 = arith.constant 0 : i32
    %c0_i32_1 = arith.constant 0 : i32
    return %arg0, %c0_i32, %c0_i32_0 : i32, i32, i32
  }
  func.func @transform_2(%arg0: i32, %arg1: i32) -> (i32, i32) {
    %c0_i32 = arith.constant 0 : i32
    %c0_i32_0 = arith.constant 0 : i32
    return %arg1, %c0_i32 : i32, i32
  }
  func.func @transform_3(%arg0: i32, %arg1: i32) -> (i32, i32, i32) {
    %c0_i32 = arith.constant 0 : i32
    %c0_i32_0 = arith.constant 0 : i32
    %c0_i32_1 = arith.constant 0 : i32
    return %arg0, %c0_i32, %c0_i32_0 : i32, i32, i32
  }
  func.func @transform_4(%arg0: i32, %arg1: i32) -> (i32, i32, i32) {
    %c0_i32 = arith.constant 0 : i32
    %c0_i32_0 = arith.constant 0 : i32
    %c0_i32_1 = arith.constant 0 : i32
    return %arg0, %c0_i32, %c0_i32_0 : i32, i32, i32
  }
  func.func @transform_5(%arg0: i32, %arg1: i32) -> (i32, i32) {
    %c0_i32 = arith.constant 0 : i32
    %c0_i32_0 = arith.constant 0 : i32
    %c0_i32_1 = arith.constant 0 : i32
    return %c0_i32, %c0_i32_0 : i32, i32
  }
  func.func @transform_6(%arg0: i32, %arg1: i32) -> (i32, i32) {
    %c0_i32 = arith.constant 0 : i32
    %c0_i32_0 = arith.constant 0 : i32
    %c0_i32_1 = arith.constant 0 : i32
    return %c0_i32, %c0_i32_0 : i32, i32
  }
  func.func @transform_7(%arg0: i32, %arg1: i32) -> (i32, i32) {
    %c0_i32 = arith.constant 0 : i32
    %c0_i32_0 = arith.constant 0 : i32
    %c0_i32_1 = arith.constant 0 : i32
    return %c0_i32, %c0_i32_0 : i32, i32
  }
  func.func @transform_8(%arg0: i32, %arg1: i32) -> (i32, i32) {
    %c0_i32 = arith.constant 0 : i32
    %c0_i32_0 = arith.constant 0 : i32
    %c0_i32_1 = arith.constant 0 : i32
    return %c0_i32, %c0_i32_0 : i32, i32
  }
  func.func @transform_9(%arg0: i32, %arg1: i32) -> (i32, i32) {
    %c0_i32 = arith.constant 0 : i32
    %c0_i32_0 = arith.constant 0 : i32
    %c0_i32_1 = arith.constant 0 : i32
    return %c0_i32, %c0_i32_0 : i32, i32
  }
  func.func @transform_10(%arg0: i32, %arg1: i32) -> (i32, i32) {
    %c0_i32 = arith.constant 0 : i32
    %c0_i32_0 = arith.constant 0 : i32
    %c0_i32_1 = arith.constant 0 : i32
    return %c0_i32, %c0_i32_0 : i32, i32
  }
  func.func @transform_11(%arg0: i32, %arg1: i32) -> (i32, i32) {
    %c0_i32 = arith.constant 0 : i32
    %c0_i32_0 = arith.constant 0 : i32
    %c0_i32_1 = arith.constant 0 : i32
    return %c0_i32, %c0_i32_0 : i32, i32
  }
  func.func @transform_12(%arg0: i32, %arg1: i32) -> (i32, i32) {
    %c0_i32 = arith.constant 0 : i32
    %c0_i32_0 = arith.constant 0 : i32
    %c0_i32_1 = arith.constant 0 : i32
    return %c0_i32, %c0_i32_0 : i32, i32
  }
  func.func @transform_13(%arg0: i32, %arg1: i32) -> (i32, i32) {
    %c0_i32 = arith.constant 0 : i32
    %c0_i32_0 = arith.constant 0 : i32
    %c0_i32_1 = arith.constant 0 : i32
    return %c0_i32, %c0_i32_0 : i32, i32
  }
  func.func @transform_14(%arg0: i32, %arg1: i32) -> (i32, i32) {
    %c0_i32 = arith.constant 0 : i32
    %c0_i32_0 = arith.constant 0 : i32
    %c0_i32_1 = arith.constant 0 : i32
    return %c0_i32, %c0_i32_0 : i32, i32
  }
  func.func @transform_15(%arg0: i32, %arg1: i32) -> (i32, i32) {
    %c0_i32 = arith.constant 0 : i32
    %c0_i32_0 = arith.constant 0 : i32
    %c0_i32_1 = arith.constant 0 : i32
    return %c0_i32, %c0_i32_0 : i32, i32
  }
  func.func @transform_16(%arg0: i32, %arg1: i32) -> (i32, i32) {
    %c0_i32 = arith.constant 0 : i32
    %c0_i32_0 = arith.constant 0 : i32
    %c0_i32_1 = arith.constant 0 : i32
    return %c0_i32, %c0_i32_0 : i32, i32
  }
  func.func @transform_17(%arg0: i32, %arg1: i32) -> (i32, i32) {
    %c0_i32 = arith.constant 0 : i32
    %c0_i32_0 = arith.constant 0 : i32
    %c0_i32_1 = arith.constant 0 : i32
    return %c0_i32, %c0_i32_0 : i32, i32
  }
  func.func @transform_18(%arg0: i32, %arg1: i32) -> (i32, i32) {
    %c0_i32 = arith.constant 0 : i32
    %c0_i32_0 = arith.constant 0 : i32
    %c0_i32_1 = arith.constant 0 : i32
    return %c0_i32, %c0_i32_0 : i32, i32
  }
  func.func @transform_19(%arg0: i32, %arg1: i32) -> (i32, i32) {
    %c0_i32 = arith.constant 0 : i32
    %c0_i32_0 = arith.constant 0 : i32
    %c0_i32_1 = arith.constant 0 : i32
    return %c0_i32, %c0_i32_0 : i32, i32
  }
  func.func @transform_20(%arg0: i32, %arg1: i32) -> (i32, i32) {
    %c0_i32 = arith.constant 0 : i32
    %c0_i32_0 = arith.constant 0 : i32
    %c0_i32_1 = arith.constant 0 : i32
    return %c0_i32, %c0_i32_0 : i32, i32
  }
  func.func @transform_21(%arg0: i32, %arg1: i32) -> (i32, i32) {
    %c0_i32 = arith.constant 0 : i32
    %c0_i32_0 = arith.constant 0 : i32
    %c0_i32_1 = arith.constant 0 : i32
    return %c0_i32, %c0_i32_0 : i32, i32
  }
  func.func @transform_22(%arg0: i32, %arg1: i32) -> (i32, i32) {
    %c0_i32 = arith.constant 0 : i32
    %c0_i32_0 = arith.constant 0 : i32
    %c0_i32_1 = arith.constant 0 : i32
    return %c0_i32, %c0_i32_0 : i32, i32
  }
  func.func @transform_23(%arg0: i32, %arg1: i32) -> (i32, i32) {
    %c0_i32 = arith.constant 0 : i32
    %c0_i32_0 = arith.constant 0 : i32
    %c0_i32_1 = arith.constant 0 : i32
    return %c0_i32, %c0_i32_0 : i32, i32
  }
  func.func @transform_24(%arg0: i32, %arg1: i32) -> (i32, i32) {
    %c0_i32 = arith.constant 0 : i32
    %c0_i32_0 = arith.constant 0 : i32
    %c0_i32_1 = arith.constant 0 : i32
    return %c0_i32, %c0_i32_0 : i32, i32
  }
  func.func @transform_25(%arg0: i32, %arg1: i32) -> (i32, i32) {
    %c0_i32 = arith.constant 0 : i32
    %c0_i32_0 = arith.constant 0 : i32
    %c0_i32_1 = arith.constant 0 : i32
    return %c0_i32, %c0_i32_0 : i32, i32
  }
  func.func @transform_26(%arg0: i32, %arg1: i32) -> (i32, i32) {
    %c0_i32 = arith.constant 0 : i32
    %c0_i32_0 = arith.constant 0 : i32
    %c0_i32_1 = arith.constant 0 : i32
    return %c0_i32, %c0_i32_0 : i32, i32
  }
  func.func @transform_27(%arg0: i32, %arg1: i32) -> (i32, i32, i32) {
    %c0_i32 = arith.constant 0 : i32
    %c0_i32_0 = arith.constant 0 : i32
    return %arg0, %arg1, %c0_i32 : i32, i32, i32
  }
}

</mosaic_0001>

<llo_original>
// kernel: decoder_forward.1
$region0: #{decoder_forward.1}
  #allocation0 [shape = 'u32[]', space=smem, size = 0x4, offset = 0x4, fixed_abs, tag = 'smem constant byte address 0x4 - core index']
  #allocation1 [shape = 'u32[72,128]{1,0:T(1,128)}', space=vmem, size = 0x9000, scoped, tag = 'internal scratch']
  %s0 = inlined_call_operand.vmem [shape: f32[2,8,32], index: 0, kind: input, shape index: {}]
  %s1 = inlined_call_operand.vmem [shape: f32[2,8,32], index: 1, kind: input, shape index: {}]
  %s2 = inlined_call_operand.vmem [shape: f32[8,8], index: 2, kind: input, shape index: {}]
  %s3 = inlined_call_operand.vmem [shape: f32[2,1,8], index: 3, kind: input, shape index: {}]
  %s4 = inlined_call_operand.vmem [shape: f32[2,1,8], index: 4, kind: input, shape index: {}]
  %s5 = inlined_call_operand.vmem [shape: bf16[32,32], index: 5, kind: input, shape index: {}]
  %s6 = inlined_call_operand.vmem [shape: f32[1,32], index: 6, kind: input, shape index: {}]
  %s7 = inlined_call_operand.vmem [shape: bf16[64,32], index: 7, kind: input, shape index: {}]
  %s8 = inlined_call_operand.vmem [shape: f32[1,64], index: 8, kind: input, shape index: {}]
  %s9 = inlined_call_operand.vmem [shape: bf16[32,32], index: 9, kind: input, shape index: {}]
  %s10 = inlined_call_operand.vmem [shape: f32[1,32], index: 10, kind: input, shape index: {}]
  %s11 = inlined_call_operand.vmem [shape: f32[1,32], index: 11, kind: input, shape index: {}]
  %s12 = inlined_call_operand.vmem [shape: f32[1,32], index: 12, kind: input, shape index: {}]
  %s13 = inlined_call_operand.vmem [shape: bf16[32,32], index: 13, kind: input, shape index: {}]
  %s14 = inlined_call_operand.vmem [shape: f32[1,32], index: 14, kind: input, shape index: {}]
  %s15 = inlined_call_operand.vmem [shape: bf16[64,32], index: 15, kind: input, shape index: {}]
  %s16 = inlined_call_operand.vmem [shape: f32[1,64], index: 16, kind: input, shape index: {}]
  %s17 = inlined_call_operand.vmem [shape: bf16[32,32], index: 17, kind: input, shape index: {}]
  %s18 = inlined_call_operand.vmem [shape: f32[1,32], index: 18, kind: input, shape index: {}]
  %s19 = inlined_call_operand.vmem [shape: f32[1,32], index: 19, kind: input, shape index: {}]
  %s20 = inlined_call_operand.vmem [shape: f32[1,32], index: 20, kind: input, shape index: {}]
  %s21 = inlined_call_operand.vmem [shape: bf16[128,32], index: 21, kind: input, shape index: {}]
  %s22 = inlined_call_operand.vmem [shape: f32[1,128], index: 22, kind: input, shape index: {}]
  %s23 = inlined_call_operand.vmem [shape: bf16[32,128], index: 23, kind: input, shape index: {}]
  %s24 = inlined_call_operand.vmem [shape: f32[1,32], index: 24, kind: input, shape index: {}]
  %s25 = inlined_call_operand.vmem [shape: f32[1,32], index: 25, kind: input, shape index: {}]
  %s26 = inlined_call_operand.vmem [shape: f32[1,32], index: 26, kind: input, shape index: {}]
  %s27 = inlined_call_operand.hbm [shape: f32[2,8,32], index: 27, kind: output, shape index: {}]
  %s28 = sld [smem:[#allocation0]]
  $region141: #{decoder_forward.1} parent=0
    _
  %s30 = ssub.s32 1, %s28
  %s31 = scalar_select 0, %s30, %s28
  $region1: #{decoder_forward.1} parent=0
    #allocation2 [shape = 'u8[8192]{0}', space=vmem, size = 0x2000, scoped, tag = 'output window, operand 0']
    #allocation3 [shape = 's32[2]{0}', space=sflag, size = 0x8, scoped, tag = 'scoped memory for decoder_forward.1']
    %32 = vsyncpa [#allocation3], 0
    %s33 = scalar_lea.sflag [#allocation3], 1
    %34 = vsyncpa %s33, 0
    loop: start=0, step=1, limit=4
    $region2: #{decoder_forward.1} parent=1 // loop_pre_header
      _
    $region3: #{decoder_forward.1} parent=1 // loop_header
      %s36 = sphi 0, %s40
      %p37 = scmp.ge.s32.totalorder %s36, 4
      %s43 = sphi 0, %s55
      %s44 = sphi 0, %s51
      %s45 = sphi 0, %s43
      %s46 = sphi 0, %s44
      %s47 = sphi 0, %s45
      %s48 = sphi 0, %s46
      %s58 = sphi 0, %s60
      %s61 = sphi 0, %s58
      %s62 = sphi 0, %s61
      %s78 = sphi 0, %s62
      %s84 = sphi 0, %s86
      %s87 = sphi 0, %s84
      %s88 = sphi 0, %s87
      %s104 = sphi 0, %s88
      %s110 = sphi 0, %s112
      %s113 = sphi 0, %s110
      %s114 = sphi 0, %s113
      %s130 = sphi 0, %s114
      %s136 = sphi 0, %s138
      %s139 = sphi 0, %s136
      %s140 = sphi 0, %s139
      %s156 = sphi 0, %s140
      %s162 = sphi 0, %s164
      %s165 = sphi 0, %s162
      %s166 = sphi 0, %s165
      %s182 = sphi 0, %s166
      %s186 = sphi 0, %s186
      %s188 = sphi 0, %s186
      %s189 = sphi 0, %s188
      %s203 = sphi 0, %s189
      %s207 = sphi 0, %s207
      %s209 = sphi 0, %s207
      %s210 = sphi 0, %s209
      %s224 = sphi 0, %s210
      %s228 = sphi 0, %s228
      %s230 = sphi 0, %s228
      %s231 = sphi 0, %s230
      %s245 = sphi 0, %s231
      %s249 = sphi 0, %s249
      %s251 = sphi 0, %s249
      %s252 = sphi 0, %s251
      %s266 = sphi 0, %s252
      %s270 = sphi 0, %s270
      %s272 = sphi 0, %s270
      %s273 = sphi 0, %s272
      %s287 = sphi 0, %s273
      %s291 = sphi 0, %s291
      %s293 = sphi 0, %s291
      %s294 = sphi 0, %s293
      %s308 = sphi 0, %s294
      %s312 = sphi 0, %s312
      %s314 = sphi 0, %s312
      %s315 = sphi 0, %s314
      %s329 = sphi 0, %s315
      %s333 = sphi 0, %s333
      %s335 = sphi 0, %s333
      %s336 = sphi 0, %s335
      %s350 = sphi 0, %s336
      %s354 = sphi 0, %s354
      %s356 = sphi 0, %s354
      %s357 = sphi 0, %s356
      %s371 = sphi 0, %s357
      %s375 = sphi 0, %s375
      %s377 = sphi 0, %s375
      %s378 = sphi 0, %s377
      %s392 = sphi 0, %s378
      %s396 = sphi 0, %s396
      %s398 = sphi 0, %s396
      %s399 = sphi 0, %s398
      %s413 = sphi 0, %s399
      %s417 = sphi 0, %s417
      %s419 = sphi 0, %s417
      %s420 = sphi 0, %s419
      %s434 = sphi 0, %s420
      %s438 = sphi 0, %s438
      %s440 = sphi 0, %s438
      %s441 = sphi 0, %s440
      %s455 = sphi 0, %s441
      %s459 = sphi 0, %s459
      %s461 = sphi 0, %s459
      %s462 = sphi 0, %s461
      %s476 = sphi 0, %s462
      %s480 = sphi 0, %s480
      %s482 = sphi 0, %s480
      %s483 = sphi 0, %s482
      %s497 = sphi 0, %s483
      %s501 = sphi 0, %s501
      %s503 = sphi 0, %s501
      %s504 = sphi 0, %s503
      %s518 = sphi 0, %s504
      %s522 = sphi 0, %s522
      %s524 = sphi 0, %s522
      %s525 = sphi 0, %s524
      %s539 = sphi 0, %s525
      %s543 = sphi 0, %s543
      %s545 = sphi 0, %s543
      %s546 = sphi 0, %s545
      %s560 = sphi 0, %s546
      %s564 = sphi 0, %s564
      %s566 = sphi 0, %s564
      %s567 = sphi 0, %s566
      %s581 = sphi 0, %s567
      %s585 = sphi 0, %s585
      %s587 = sphi 0, %s585
      %s588 = sphi 0, %s587
      %s602 = sphi 0, %s588
      %s606 = sphi 0, %s606
      %s608 = sphi 0, %s606
      %s609 = sphi 0, %s608
      %s623 = sphi 0, %s609
      %s627 = sphi 0, %s627
      %s629 = sphi 0, %s627
      %s630 = sphi 0, %s629
      %s644 = sphi 0, %s630
      %s652 = sphi 0, %s654
      %s655 = sphi 0, %s652
      %s656 = sphi 0, %s655
      %s672 = sphi 0, %s656
    $region4: #{decoder_forward.1} parent=1 // loop_header_branch
      %39 = sbr.rel (%p37) target = $region8
    $region5: #{decoder_forward.1} parent=1 // loop_body
      %s41 = ssub.s32 %s36, 1
      %s42 = ssub.s32 %s36, 2
      %s49 = sadd.s32 1, %s44
      %p50 = scmp.ge.s32.totalorder %s49, 1
      %s51 = scalar_select %p50, 0, %s49
      %s52 = sadd.s32 1, %s43
      %s53 = scalar_select %p50, %s52, %s43
      %p54 = scmp.ge.s32.totalorder %s53, 2
      %s55 = scalar_select %p54, 0, %s53
      %s56 = ssub.s32 %s43, %s55
      %p57 = scmp.eq.s32.totalorder %s56, 0
      %s59 = sadd.s32 %s58, 1
      %s60 = scalar_select %p57, %s58, %s59
      %p63 = pneg %p57
      %p64 = scmp.eq.s32.totalorder %s36, 1
      %p65 = por %p63, %p64
      %p66 = scmp.ne.s32.totalorder %s58, %s61
      %p67 = scmp.eq.s32.totalorder %s36, 0
      %p68 = por %p66, %p67
      %p69 = scmp.ne.s32.totalorder %s58, %s61
      %p70 = scmp.eq.s32.totalorder %s41, 1
      %p71 = por %p69, %p70
      %p72 = scmp.ne.s32.totalorder %s61, %s62
      %p73 = scmp.eq.s32.totalorder %s41, 0
      %p74 = por %p72, %p73
      %p75 = scmp.ne.s32.totalorder %s61, %s62
      %p76 = scmp.eq.s32.totalorder %s42, 1
      %p77 = por %p75, %p76
      %p79 = scmp.ne.s32.totalorder %s62, %s78
      %p80 = scmp.eq.s32.totalorder %s42, 0
      %p81 = por %p79, %p80
      %s82 = ssub.s32 %s43, %s55
      %p83 = scmp.eq.s32.totalorder %s82, 0
      %s85 = sadd.s32 %s84, 1
      %s86 = scalar_select %p83, %s84, %s85
      %p89 = pneg %p83
      %p90 = scmp.eq.s32.totalorder %s36, 1
      %p91 = por %p89, %p90
      %p92 = scmp.ne.s32.totalorder %s84, %s87
      %p93 = scmp.eq.s32.totalorder %s36, 0
      %p94 = por %p92, %p93
      %p95 = scmp.ne.s32.totalorder %s84, %s87
      %p96 = scmp.eq.s32.totalorder %s41, 1
      %p97 = por %p95, %p96
      %p98 = scmp.ne.s32.totalorder %s87, %s88
      %p99 = scmp.eq.s32.totalorder %s41, 0
      %p100 = por %p98, %p99
      %p101 = scmp.ne.s32.totalorder %s87, %s88
      %p102 = scmp.eq.s32.totalorder %s42, 1
      %p103 = por %p101, %p102
      %p105 = scmp.ne.s32.totalorder %s88, %s104
      %p106 = scmp.eq.s32.totalorder %s42, 0
      %p107 = por %p105, %p106
      %s108 = ssub.s32 %s44, %s51
      %p109 = scmp.eq.s32.totalorder %s108, 0
      %s111 = sadd.s32 %s110, 1
      %s112 = scalar_select %p109, %s110, %s111
      %p115 = pneg %p109
      %p116 = scmp.eq.s32.totalorder %s36, 1
      %p117 = por %p115, %p116
      %p118 = scmp.ne.s32.totalorder %s110, %s113
      %p119 = scmp.eq.s32.totalorder %s36, 0
      %p120 = por %p118, %p119
      %p121 = scmp.ne.s32.totalorder %s110, %s113
      %p122 = scmp.eq.s32.totalorder %s41, 1
      %p123 = por %p121, %p122
      %p124 = scmp.ne.s32.totalorder %s113, %s114
      %p125 = scmp.eq.s32.totalorder %s41, 0
      %p126 = por %p124, %p125
      %p127 = scmp.ne.s32.totalorder %s113, %s114
      %p128 = scmp.eq.s32.totalorder %s42, 1
      %p129 = por %p127, %p128
      %p131 = scmp.ne.s32.totalorder %s114, %s130
      %p132 = scmp.eq.s32.totalorder %s42, 0
      %p133 = por %p131, %p132
      %s134 = ssub.s32 %s43, %s55
      %p135 = scmp.eq.s32.totalorder %s134, 0
      %s137 = sadd.s32 %s136, 1
      %s138 = scalar_select %p135, %s136, %s137
      %p141 = pneg %p135
      %p142 = scmp.eq.s32.totalorder %s36, 1
      %p143 = por %p141, %p142
      %p144 = scmp.ne.s32.totalorder %s136, %s139
      %p145 = scmp.eq.s32.totalorder %s36, 0
      %p146 = por %p144, %p145
      %p147 = scmp.ne.s32.totalorder %s136, %s139
      %p148 = scmp.eq.s32.totalorder %s41, 1
      %p149 = por %p147, %p148
      %p150 = scmp.ne.s32.totalorder %s139, %s140
      %p151 = scmp.eq.s32.totalorder %s41, 0
      %p152 = por %p150, %p151
      %p153 = scmp.ne.s32.totalorder %s139, %s140
      %p154 = scmp.eq.s32.totalorder %s42, 1
      %p155 = por %p153, %p154
      %p157 = scmp.ne.s32.totalorder %s140, %s156
      %p158 = scmp.eq.s32.totalorder %s42, 0
      %p159 = por %p157, %p158
      %s160 = ssub.s32 %s43, %s55
      %p161 = scmp.eq.s32.totalorder %s160, 0
      %s163 = sadd.s32 %s162, 1
      %s164 = scalar_select %p161, %s162, %s163
      %p167 = pneg %p161
      %p168 = scmp.eq.s32.totalorder %s36, 1
      %p169 = por %p167, %p168
      %p170 = scmp.ne.s32.totalorder %s162, %s165
      %p171 = scmp.eq.s32.totalorder %s36, 0
      %p172 = por %p170, %p171
      %p173 = scmp.ne.s32.totalorder %s162, %s165
      %p174 = scmp.eq.s32.totalorder %s41, 1
      %p175 = por %p173, %p174
      %p176 = scmp.ne.s32.totalorder %s165, %s166
      %p177 = scmp.eq.s32.totalorder %s41, 0
      %p178 = por %p176, %p177
      %p179 = scmp.ne.s32.totalorder %s165, %s166
      %p180 = scmp.eq.s32.totalorder %s42, 1
      %p181 = por %p179, %p180
      %p183 = scmp.ne.s32.totalorder %s166, %s182
      %p184 = scmp.eq.s32.totalorder %s42, 0
      %p185 = por %p183, %p184
      %s187 = sadd.s32 %s186, 1
      %p190 = scmp.eq.s32.totalorder %s36, 1
      %p191 = scmp.ne.s32.totalorder %s186, %s188
      %p192 = scmp.eq.s32.totalorder %s36, 0
      %p193 = por %p191, %p192
      %p194 = scmp.ne.s32.totalorder %s186, %s188
      %p195 = scmp.eq.s32.totalorder %s41, 1
      %p196 = por %p194, %p195
      %p197 = scmp.ne.s32.totalorder %s188, %s189
      %p198 = scmp.eq.s32.totalorder %s41, 0
      %p199 = por %p197, %p198
      %p200 = scmp.ne.s32.totalorder %s188, %s189
      %p201 = scmp.eq.s32.totalorder %s42, 1
      %p202 = por %p200, %p201
      %p204 = scmp.ne.s32.totalorder %s189, %s203
      %p205 = scmp.eq.s32.totalorder %s42, 0
      %p206 = por %p204, %p205
      %s208 = sadd.s32 %s207, 1
      %p211 = scmp.eq.s32.totalorder %s36, 1
      %p212 = scmp.ne.s32.totalorder %s207, %s209
      %p213 = scmp.eq.s32.totalorder %s36, 0
      %p214 = por %p212, %p213
      %p215 = scmp.ne.s32.totalorder %s207, %s209
      %p216 = scmp.eq.s32.totalorder %s41, 1
      %p217 = por %p215, %p216
      %p218 = scmp.ne.s32.totalorder %s209, %s210
      %p219 = scmp.eq.s32.totalorder %s41, 0
      %p220 = por %p218, %p219
      %p221 = scmp.ne.s32.totalorder %s209, %s210
      %p222 = scmp.eq.s32.totalorder %s42, 1
      %p223 = por %p221, %p222
      %p225 = scmp.ne.s32.totalorder %s210, %s224
      %p226 = scmp.eq.s32.totalorder %s42, 0
      %p227 = por %p225, %p226
      %s229 = sadd.s32 %s228, 1
      %p232 = scmp.eq.s32.totalorder %s36, 1
      %p233 = scmp.ne.s32.totalorder %s228, %s230
      %p234 = scmp.eq.s32.totalorder %s36, 0
      %p235 = por %p233, %p234
      %p236 = scmp.ne.s32.totalorder %s228, %s230
      %p237 = scmp.eq.s32.totalorder %s41, 1
      %p238 = por %p236, %p237
      %p239 = scmp.ne.s32.totalorder %s230, %s231
      %p240 = scmp.eq.s32.totalorder %s41, 0
      %p241 = por %p239, %p240
      %p242 = scmp.ne.s32.totalorder %s230, %s231
      %p243 = scmp.eq.s32.totalorder %s42, 1
      %p244 = por %p242, %p243
      %p246 = scmp.ne.s32.totalorder %s231, %s245
      %p247 = scmp.eq.s32.totalorder %s42, 0
      %p248 = por %p246, %p247
      %s250 = sadd.s32 %s249, 1
      %p253 = scmp.eq.s32.totalorder %s36, 1
      %p254 = scmp.ne.s32.totalorder %s249, %s251
      %p255 = scmp.eq.s32.totalorder %s36, 0
      %p256 = por %p254, %p255
      %p257 = scmp.ne.s32.totalorder %s249, %s251
      %p258 = scmp.eq.s32.totalorder %s41, 1
      %p259 = por %p257, %p258
      %p260 = scmp.ne.s32.totalorder %s251, %s252
      %p261 = scmp.eq.s32.totalorder %s41, 0
      %p262 = por %p260, %p261
      %p263 = scmp.ne.s32.totalorder %s251, %s252
      %p264 = scmp.eq.s32.totalorder %s42, 1
      %p265 = por %p263, %p264
      %p267 = scmp.ne.s32.totalorder %s252, %s266
      %p268 = scmp.eq.s32.totalorder %s42, 0
      %p269 = por %p267, %p268
      %s271 = sadd.s32 %s270, 1
      %p274 = scmp.eq.s32.totalorder %s36, 1
      %p275 = scmp.ne.s32.totalorder %s270, %s272
      %p276 = scmp.eq.s32.totalorder %s36, 0
      %p277 = por %p275, %p276
      %p278 = scmp.ne.s32.totalorder %s270, %s272
      %p279 = scmp.eq.s32.totalorder %s41, 1
      %p280 = por %p278, %p279
      %p281 = scmp.ne.s32.totalorder %s272, %s273
      %p282 = scmp.eq.s32.totalorder %s41, 0
      %p283 = por %p281, %p282
      %p284 = scmp.ne.s32.totalorder %s272, %s273
      %p285 = scmp.eq.s32.totalorder %s42, 1
      %p286 = por %p284, %p285
      %p288 = scmp.ne.s32.totalorder %s273, %s287
      %p289 = scmp.eq.s32.totalorder %s42, 0
      %p290 = por %p288, %p289
      %s292 = sadd.s32 %s291, 1
      %p295 = scmp.eq.s32.totalorder %s36, 1
      %p296 = scmp.ne.s32.totalorder %s291, %s293
      %p297 = scmp.eq.s32.totalorder %s36, 0
      %p298 = por %p296, %p297
      %p299 = scmp.ne.s32.totalorder %s291, %s293
      %p300 = scmp.eq.s32.totalorder %s41, 1
      %p301 = por %p299, %p300
      %p302 = scmp.ne.s32.totalorder %s293, %s294
      %p303 = scmp.eq.s32.totalorder %s41, 0
      %p304 = por %p302, %p303
      %p305 = scmp.ne.s32.totalorder %s293, %s294
      %p306 = scmp.eq.s32.totalorder %s42, 1
      %p307 = por %p305, %p306
      %p309 = scmp.ne.s32.totalorder %s294, %s308
      %p310 = scmp.eq.s32.totalorder %s42, 0
      %p311 = por %p309, %p310
      %s313 = sadd.s32 %s312, 1
      %p316 = scmp.eq.s32.totalorder %s36, 1
      %p317 = scmp.ne.s32.totalorder %s312, %s314
      %p318 = scmp.eq.s32.totalorder %s36, 0
      %p319 = por %p317, %p318
      %p320 = scmp.ne.s32.totalorder %s312, %s314
      %p321 = scmp.eq.s32.totalorder %s41, 1
      %p322 = por %p320, %p321
      %p323 = scmp.ne.s32.totalorder %s314, %s315
      %p324 = scmp.eq.s32.totalorder %s41, 0
      %p325 = por %p323, %p324
      %p326 = scmp.ne.s32.totalorder %s314, %s315
      %p327 = scmp.eq.s32.totalorder %s42, 1
      %p328 = por %p326, %p327
      %p330 = scmp.ne.s32.totalorder %s315, %s329
      %p331 = scmp.eq.s32.totalorder %s42, 0
      %p332 = por %p330, %p331
      %s334 = sadd.s32 %s333, 1
      %p337 = scmp.eq.s32.totalorder %s36, 1
      %p338 = scmp.ne.s32.totalorder %s333, %s335
      %p339 = scmp.eq.s32.totalorder %s36, 0
      %p340 = por %p338, %p339
      %p341 = scmp.ne.s32.totalorder %s333, %s335
      %p342 = scmp.eq.s32.totalorder %s41, 1
      %p343 = por %p341, %p342
      %p344 = scmp.ne.s32.totalorder %s335, %s336
      %p345 = scmp.eq.s32.totalorder %s41, 0
      %p346 = por %p344, %p345
      %p347 = scmp.ne.s32.totalorder %s335, %s336
      %p348 = scmp.eq.s32.totalorder %s42, 1
      %p349 = por %p347, %p348
      %p351 = scmp.ne.s32.totalorder %s336, %s350
      %p352 = scmp.eq.s32.totalorder %s42, 0
      %p353 = por %p351, %p352
      %s355 = sadd.s32 %s354, 1
      %p358 = scmp.eq.s32.totalorder %s36, 1
      %p359 = scmp.ne.s32.totalorder %s354, %s356
      %p360 = scmp.eq.s32.totalorder %s36, 0
      %p361 = por %p359, %p360
      %p362 = scmp.ne.s32.totalorder %s354, %s356
      %p363 = scmp.eq.s32.totalorder %s41, 1
      %p364 = por %p362, %p363
      %p365 = scmp.ne.s32.totalorder %s356, %s357
      %p366 = scmp.eq.s32.totalorder %s41, 0
      %p367 = por %p365, %p366
      %p368 = scmp.ne.s32.totalorder %s356, %s357
      %p369 = scmp.eq.s32.totalorder %s42, 1
      %p370 = por %p368, %p369
      %p372 = scmp.ne.s32.totalorder %s357, %s371
      %p373 = scmp.eq.s32.totalorder %s42, 0
      %p374 = por %p372, %p373
      %s376 = sadd.s32 %s375, 1
      %p379 = scmp.eq.s32.totalorder %s36, 1
      %p380 = scmp.ne.s32.totalorder %s375, %s377
      %p381 = scmp.eq.s32.totalorder %s36, 0
      %p382 = por %p380, %p381
      %p383 = scmp.ne.s32.totalorder %s375, %s377
      %p384 = scmp.eq.s32.totalorder %s41, 1
      %p385 = por %p383, %p384
      %p386 = scmp.ne.s32.totalorder %s377, %s378
      %p387 = scmp.eq.s32.totalorder %s41, 0
      %p388 = por %p386, %p387
      %p389 = scmp.ne.s32.totalorder %s377, %s378
      %p390 = scmp.eq.s32.totalorder %s42, 1
      %p391 = por %p389, %p390
      %p393 = scmp.ne.s32.totalorder %s378, %s392
      %p394 = scmp.eq.s32.totalorder %s42, 0
      %p395 = por %p393, %p394
      %s397 = sadd.s32 %s396, 1
      %p400 = scmp.eq.s32.totalorder %s36, 1
      %p401 = scmp.ne.s32.totalorder %s396, %s398
      %p402 = scmp.eq.s32.totalorder %s36, 0
      %p403 = por %p401, %p402
      %p404 = scmp.ne.s32.totalorder %s396, %s398
      %p405 = scmp.eq.s32.totalorder %s41, 1
      %p406 = por %p404, %p405
      %p407 = scmp.ne.s32.totalorder %s398, %s399
      %p408 = scmp.eq.s32.totalorder %s41, 0
      %p409 = por %p407, %p408
      %p410 = scmp.ne.s32.totalorder %s398, %s399
      %p411 = scmp.eq.s32.totalorder %s42, 1
      %p412 = por %p410, %p411
      %p414 = scmp.ne.s32.totalorder %s399, %s413
      %p415 = scmp.eq.s32.totalorder %s42, 0
      %p416 = por %p414, %p415
      %s418 = sadd.s32 %s417, 1
      %p421 = scmp.eq.s32.totalorder %s36, 1
      %p422 = scmp.ne.s32.totalorder %s417, %s419
      %p423 = scmp.eq.s32.totalorder %s36, 0
      %p424 = por %p422, %p423
      %p425 = scmp.ne.s32.totalorder %s417, %s419
      %p426 = scmp.eq.s32.totalorder %s41, 1
      %p427 = por %p425, %p426
      %p428 = scmp.ne.s32.totalorder %s419, %s420
      %p429 = scmp.eq.s32.totalorder %s41, 0
      %p430 = por %p428, %p429
      %p431 = scmp.ne.s32.totalorder %s419, %s420
      %p432 = scmp.eq.s32.totalorder %s42, 1
      %p433 = por %p431, %p432
      %p435 = scmp.ne.s32.totalorder %s420, %s434
      %p436 = scmp.eq.s32.totalorder %s42, 0
      %p437 = por %p435, %p436
      %s439 = sadd.s32 %s438, 1
      %p442 = scmp.eq.s32.totalorder %s36, 1
      %p443 = scmp.ne.s32.totalorder %s438, %s440
      %p444 = scmp.eq.s32.totalorder %s36, 0
      %p445 = por %p443, %p444
      %p446 = scmp.ne.s32.totalorder %s438, %s440
      %p447 = scmp.eq.s32.totalorder %s41, 1
      %p448 = por %p446, %p447
      %p449 = scmp.ne.s32.totalorder %s440, %s441
      %p450 = scmp.eq.s32.totalorder %s41, 0
      %p451 = por %p449, %p450
      %p452 = scmp.ne.s32.totalorder %s440, %s441
      %p453 = scmp.eq.s32.totalorder %s42, 1
      %p454 = por %p452, %p453
      %p456 = scmp.ne.s32.totalorder %s441, %s455
      %p457 = scmp.eq.s32.totalorder %s42, 0
      %p458 = por %p456, %p457
      %s460 = sadd.s32 %s459, 1
      %p463 = scmp.eq.s32.totalorder %s36, 1
      %p464 = scmp.ne.s32.totalorder %s459, %s461
      %p465 = scmp.eq.s32.totalorder %s36, 0
      %p466 = por %p464, %p465
      %p467 = scmp.ne.s32.totalorder %s459, %s461
      %p468 = scmp.eq.s32.totalorder %s41, 1
      %p469 = por %p467, %p468
      %p470 = scmp.ne.s32.totalorder %s461, %s462
      %p471 = scmp.eq.s32.totalorder %s41, 0
      %p472 = por %p470, %p471
      %p473 = scmp.ne.s32.totalorder %s461, %s462
      %p474 = scmp.eq.s32.totalorder %s42, 1
      %p475 = por %p473, %p474
      %p477 = scmp.ne.s32.totalorder %s462, %s476
      %p478 = scmp.eq.s32.totalorder %s42, 0
      %p479 = por %p477, %p478
      %s481 = sadd.s32 %s480, 1
      %p484 = scmp.eq.s32.totalorder %s36, 1
      %p485 = scmp.ne.s32.totalorder %s480, %s482
      %p486 = scmp.eq.s32.totalorder %s36, 0
      %p487 = por %p485, %p486
      %p488 = scmp.ne.s32.totalorder %s480, %s482
      %p489 = scmp.eq.s32.totalorder %s41, 1
      %p490 = por %p488, %p489
      %p491 = scmp.ne.s32.totalorder %s482, %s483
      %p492 = scmp.eq.s32.totalorder %s41, 0
      %p493 = por %p491, %p492
      %p494 = scmp.ne.s32.totalorder %s482, %s483
      %p495 = scmp.eq.s32.totalorder %s42, 1
      %p496 = por %p494, %p495
      %p498 = scmp.ne.s32.totalorder %s483, %s497
      %p499 = scmp.eq.s32.totalorder %s42, 0
      %p500 = por %p498, %p499
      %s502 = sadd.s32 %s501, 1
      %p505 = scmp.eq.s32.totalorder %s36, 1
      %p506 = scmp.ne.s32.totalorder %s501, %s503
      %p507 = scmp.eq.s32.totalorder %s36, 0
      %p508 = por %p506, %p507
      %p509 = scmp.ne.s32.totalorder %s501, %s503
      %p510 = scmp.eq.s32.totalorder %s41, 1
      %p511 = por %p509, %p510
      %p512 = scmp.ne.s32.totalorder %s503, %s504
      %p513 = scmp.eq.s32.totalorder %s41, 0
      %p514 = por %p512, %p513
      %p515 = scmp.ne.s32.totalorder %s503, %s504
      %p516 = scmp.eq.s32.totalorder %s42, 1
      %p517 = por %p515, %p516
      %p519 = scmp.ne.s32.totalorder %s504, %s518
      %p520 = scmp.eq.s32.totalorder %s42, 0
      %p521 = por %p519, %p520
      %s523 = sadd.s32 %s522, 1
      %p526 = scmp.eq.s32.totalorder %s36, 1
      %p527 = scmp.ne.s32.totalorder %s522, %s524
      %p528 = scmp.eq.s32.totalorder %s36, 0
      %p529 = por %p527, %p528
      %p530 = scmp.ne.s32.totalorder %s522, %s524
      %p531 = scmp.eq.s32.totalorder %s41, 1
      %p532 = por %p530, %p531
      %p533 = scmp.ne.s32.totalorder %s524, %s525
      %p534 = scmp.eq.s32.totalorder %s41, 0
      %p535 = por %p533, %p534
      %p536 = scmp.ne.s32.totalorder %s524, %s525
      %p537 = scmp.eq.s32.totalorder %s42, 1
      %p538 = por %p536, %p537
      %p540 = scmp.ne.s32.totalorder %s525, %s539
      %p541 = scmp.eq.s32.totalorder %s42, 0
      %p542 = por %p540, %p541
      %s544 = sadd.s32 %s543, 1
      %p547 = scmp.eq.s32.totalorder %s36, 1
      %p548 = scmp.ne.s32.totalorder %s543, %s545
      %p549 = scmp.eq.s32.totalorder %s36, 0
      %p550 = por %p548, %p549
      %p551 = scmp.ne.s32.totalorder %s543, %s545
      %p552 = scmp.eq.s32.totalorder %s41, 1
      %p553 = por %p551, %p552
      %p554 = scmp.ne.s32.totalorder %s545, %s546
      %p555 = scmp.eq.s32.totalorder %s41, 0
      %p556 = por %p554, %p555
      %p557 = scmp.ne.s32.totalorder %s545, %s546
      %p558 = scmp.eq.s32.totalorder %s42, 1
      %p559 = por %p557, %p558
      %p561 = scmp.ne.s32.totalorder %s546, %s560
      %p562 = scmp.eq.s32.totalorder %s42, 0
      %p563 = por %p561, %p562
      %s565 = sadd.s32 %s564, 1
      %p568 = scmp.eq.s32.totalorder %s36, 1
      %p569 = scmp.ne.s32.totalorder %s564, %s566
      %p570 = scmp.eq.s32.totalorder %s36, 0
      %p571 = por %p569, %p570
      %p572 = scmp.ne.s32.totalorder %s564, %s566
      %p573 = scmp.eq.s32.totalorder %s41, 1
      %p574 = por %p572, %p573
      %p575 = scmp.ne.s32.totalorder %s566, %s567
      %p576 = scmp.eq.s32.totalorder %s41, 0
      %p577 = por %p575, %p576
      %p578 = scmp.ne.s32.totalorder %s566, %s567
      %p579 = scmp.eq.s32.totalorder %s42, 1
      %p580 = por %p578, %p579
      %p582 = scmp.ne.s32.totalorder %s567, %s581
      %p583 = scmp.eq.s32.totalorder %s42, 0
      %p584 = por %p582, %p583
      %s586 = sadd.s32 %s585, 1
      %p589 = scmp.eq.s32.totalorder %s36, 1
      %p590 = scmp.ne.s32.totalorder %s585, %s587
      %p591 = scmp.eq.s32.totalorder %s36, 0
      %p592 = por %p590, %p591
      %p593 = scmp.ne.s32.totalorder %s585, %s587
      %p594 = scmp.eq.s32.totalorder %s41, 1
      %p595 = por %p593, %p594
      %p596 = scmp.ne.s32.totalorder %s587, %s588
      %p597 = scmp.eq.s32.totalorder %s41, 0
      %p598 = por %p596, %p597
      %p599 = scmp.ne.s32.totalorder %s587, %s588
      %p600 = scmp.eq.s32.totalorder %s42, 1
      %p601 = por %p599, %p600
      %p603 = scmp.ne.s32.totalorder %s588, %s602
      %p604 = scmp.eq.s32.totalorder %s42, 0
      %p605 = por %p603, %p604
      %s607 = sadd.s32 %s606, 1
      %p610 = scmp.eq.s32.totalorder %s36, 1
      %p611 = scmp.ne.s32.totalorder %s606, %s608
      %p612 = scmp.eq.s32.totalorder %s36, 0
      %p613 = por %p611, %p612
      %p614 = scmp.ne.s32.totalorder %s606, %s608
      %p615 = scmp.eq.s32.totalorder %s41, 1
      %p616 = por %p614, %p615
      %p617 = scmp.ne.s32.totalorder %s608, %s609
      %p618 = scmp.eq.s32.totalorder %s41, 0
      %p619 = por %p617, %p618
      %p620 = scmp.ne.s32.totalorder %s608, %s609
      %p621 = scmp.eq.s32.totalorder %s42, 1
      %p622 = por %p620, %p621
      %p624 = scmp.ne.s32.totalorder %s609, %s623
      %p625 = scmp.eq.s32.totalorder %s42, 0
      %p626 = por %p624, %p625
      %s628 = sadd.s32 %s627, 1
      %p631 = scmp.eq.s32.totalorder %s36, 1
      %p632 = scmp.ne.s32.totalorder %s627, %s629
      %p633 = scmp.eq.s32.totalorder %s36, 0
      %p634 = por %p632, %p633
      %p635 = scmp.ne.s32.totalorder %s627, %s629
      %p636 = scmp.eq.s32.totalorder %s41, 1
      %p637 = por %p635, %p636
      %p638 = scmp.ne.s32.totalorder %s629, %s630
      %p639 = scmp.eq.s32.totalorder %s41, 0
      %p640 = por %p638, %p639
      %p641 = scmp.ne.s32.totalorder %s629, %s630
      %p642 = scmp.eq.s32.totalorder %s42, 1
      %p643 = por %p641, %p642
      %p645 = scmp.ne.s32.totalorder %s630, %s644
      %p646 = scmp.eq.s32.totalorder %s42, 0
      %p647 = por %p645, %p646
      %s648 = ssub.s32 %s43, %s55
      %s649 = ssub.s32 %s44, %s51
      %s650 = sor.u32 %s648, %s649
      %p651 = scmp.eq.s32.totalorder %s650, 0
      %s653 = sadd.s32 %s652, 1
      %s654 = scalar_select %p651, %s652, %s653
      %p657 = pneg %p651
      %p658 = scmp.eq.s32.totalorder %s36, 1
      %p659 = por %p657, %p658
      %p660 = scmp.ne.s32.totalorder %s652, %s655
      %p661 = scmp.eq.s32.totalorder %s36, 0
      %p662 = por %p660, %p661
      %p663 = scmp.ne.s32.totalorder %s652, %s655
      %p664 = scmp.eq.s32.totalorder %s41, 1
      %p665 = por %p663, %p664
      %p666 = scmp.ne.s32.totalorder %s655, %s656
      %p667 = scmp.eq.s32.totalorder %s41, 0
      %p668 = por %p666, %p667
      %p669 = scmp.ne.s32.totalorder %s655, %s656
      %p670 = scmp.eq.s32.totalorder %s42, 1
      %p671 = por %p669, %p670
      %p673 = scmp.ne.s32.totalorder %s656, %s672
      %p674 = scmp.eq.s32.totalorder %s42, 0
      %p675 = por %p673, %p674
      %p676 = scmp.le.s32.totalorder 1, %s36
      %p677 = scmp.lt.s32.totalorder %s36, 3
      %p678 = pnand %p676, %p677
      %p679 = pneg %p678
      // Predicated region
      $region9: #{decoder_forward.1} parent=5 // pred_check
        _
      $region10: #{decoder_forward.1} parent=5 // pred_check_branch
        %681 = sbr.rel (%p678) target = $region12
      $region11: #{decoder_forward.1} parent=5 // pred_region
        %s682 = ssub.s32 %s36, 1
        // Predicated region
        $region13: #{decoder_forward.1} parent=11 // pred_check
          %p683 = pneg %p126
        $region14: #{decoder_forward.1} parent=11 // pred_check_branch
          %685 = sbr.rel (%p683) target = $region16
        $region15: #{decoder_forward.1} parent=11 // pred_region
          %p686 = scmp.lt.s32.totalorder %s46, 0
          %s687 = scalar_select %p686, %s46, 0
          %s688 = smul.addr %s687, 8
          %s689 = scalar_lea.vmem %s2, %s688
        $region16: #{decoder_forward.1} parent=11 // pred_fallthru
          _
        // Predicated region
        $region17: #{decoder_forward.1} parent=11 // pred_check
          %p690 = pneg %p199
        $region18: #{decoder_forward.1} parent=11 // pred_check_branch
          %692 = sbr.rel (%p690) target = $region20
        $region19: #{decoder_forward.1} parent=11 // pred_region
          _
        $region20: #{decoder_forward.1} parent=11 // pred_fallthru
          _
        // Predicated region
        $region21: #{decoder_forward.1} parent=11 // pred_check
          %p693 = pneg %p220
        $region22: #{decoder_forward.1} parent=11 // pred_check_branch
          %695 = sbr.rel (%p693) target = $region24
        $region23: #{decoder_forward.1} parent=11 // pred_region
          _
        $region24: #{decoder_forward.1} parent=11 // pred_fallthru
          _
        // Predicated region
        $region25: #{decoder_forward.1} parent=11 // pred_check
          %p696 = pneg %p241
        $region26: #{decoder_forward.1} parent=11 // pred_check_branch
          %698 = sbr.rel (%p696) target = $region28
        $region27: #{decoder_forward.1} parent=11 // pred_region
          _
        $region28: #{decoder_forward.1} parent=11 // pred_fallthru
          _
        // Predicated region
        $region29: #{decoder_forward.1} parent=11 // pred_check
          %p699 = pneg %p262
        $region30: #{decoder_forward.1} parent=11 // pred_check_branch
          %701 = sbr.rel (%p699) target = $region32
        $region31: #{decoder_forward.1} parent=11 // pred_region
          _
        $region32: #{decoder_forward.1} parent=11 // pred_fallthru
          _
        // Predicated region
        $region33: #{decoder_forward.1} parent=11 // pred_check
          %p702 = pneg %p283
        $region34: #{decoder_forward.1} parent=11 // pred_check_branch
          %704 = sbr.rel (%p702) target = $region36
        $region35: #{decoder_forward.1} parent=11 // pred_region
          _
        $region36: #{decoder_forward.1} parent=11 // pred_fallthru
          _
        // Predicated region
        $region37: #{decoder_forward.1} parent=11 // pred_check
          %p705 = pneg %p304
        $region38: #{decoder_forward.1} parent=11 // pred_check_branch
          %707 = sbr.rel (%p705) target = $region40
        $region39: #{decoder_forward.1} parent=11 // pred_region
          _
        $region40: #{decoder_forward.1} parent=11 // pred_fallthru
          _
        // Predicated region
        $region41: #{decoder_forward.1} parent=11 // pred_check
          %p708 = pneg %p325
        $region42: #{decoder_forward.1} parent=11 // pred_check_branch
          %710 = sbr.rel (%p708) target = $region44
        $region43: #{decoder_forward.1} parent=11 // pred_region
          _
        $region44: #{decoder_forward.1} parent=11 // pred_fallthru
          _
        // Predicated region
        $region45: #{decoder_forward.1} parent=11 // pred_check
          %p711 = pneg %p346
        $region46: #{decoder_forward.1} parent=11 // pred_check_branch
          %713 = sbr.rel (%p711) target = $region48
        $region47: #{decoder_forward.1} parent=11 // pred_region
          _
        $region48: #{decoder_forward.1} parent=11 // pred_fallthru
          _
        // Predicated region
        $region49: #{decoder_forward.1} parent=11 // pred_check
          %p714 = pneg %p367
        $region50: #{decoder_forward.1} parent=11 // pred_check_branch
          %716 = sbr.rel (%p714) target = $region52
        $region51: #{decoder_forward.1} parent=11 // pred_region
          _
        $region52: #{decoder_forward.1} parent=11 // pred_fallthru
          _
        // Predicated region
        $region53: #{decoder_forward.1} parent=11 // pred_check
          %p717 = pneg %p388
        $region54: #{decoder_forward.1} parent=11 // pred_check_branch
          %719 = sbr.rel (%p717) target = $region56
        $region55: #{decoder_forward.1} parent=11 // pred_region
          _
        $region56: #{decoder_forward.1} parent=11 // pred_fallthru
          _
        // Predicated region
        $region57: #{decoder_forward.1} parent=11 // pred_check
          %p720 = pneg %p409
        $region58: #{decoder_forward.1} parent=11 // pred_check_branch
          %722 = sbr.rel (%p720) target = $region60
        $region59: #{decoder_forward.1} parent=11 // pred_region
          _
        $region60: #{decoder_forward.1} parent=11 // pred_fallthru
          _
        // Predicated region
        $region61: #{decoder_forward.1} parent=11 // pred_check
          %p723 = pneg %p430
        $region62: #{decoder_forward.1} parent=11 // pred_check_branch
          %725 = sbr.rel (%p723) target = $region64
        $region63: #{decoder_forward.1} parent=11 // pred_region
          _
        $region64: #{decoder_forward.1} parent=11 // pred_fallthru
          _
        // Predicated region
        $region65: #{decoder_forward.1} parent=11 // pred_check
          %p726 = pneg %p451
        $region66: #{decoder_forward.1} parent=11 // pred_check_branch
          %728 = sbr.rel (%p726) target = $region68
        $region67: #{decoder_forward.1} parent=11 // pred_region
          _
        $region68: #{decoder_forward.1} parent=11 // pred_fallthru
          _
        // Predicated region
        $region69: #{decoder_forward.1} parent=11 // pred_check
          %p729 = pneg %p472
        $region70: #{decoder_forward.1} parent=11 // pred_check_branch
          %731 = sbr.rel (%p729) target = $region72
        $region71: #{decoder_forward.1} parent=11 // pred_region
          _
        $region72: #{decoder_forward.1} parent=11 // pred_fallthru
          _
        // Predicated region
        $region73: #{decoder_forward.1} parent=11 // pred_check
          %p732 = pneg %p493
        $region74: #{decoder_forward.1} parent=11 // pred_check_branch
          %734 = sbr.rel (%p732) target = $region76
        $region75: #{decoder_forward.1} parent=11 // pred_region
          _
        $region76: #{decoder_forward.1} parent=11 // pred_fallthru
          _
        // Predicated region
        $region77: #{decoder_forward.1} parent=11 // pred_check
          %p735 = pneg %p514
        $region78: #{decoder_forward.1} parent=11 // pred_check_branch
          %737 = sbr.rel (%p735) target = $region80
        $region79: #{decoder_forward.1} parent=11 // pred_region
          _
        $region80: #{decoder_forward.1} parent=11 // pred_fallthru
          _
        // Predicated region
        $region81: #{decoder_forward.1} parent=11 // pred_check
          %p738 = pneg %p535
        $region82: #{decoder_forward.1} parent=11 // pred_check_branch
          %740 = sbr.rel (%p738) target = $region84
        $region83: #{decoder_forward.1} parent=11 // pred_region
          _
        $region84: #{decoder_forward.1} parent=11 // pred_fallthru
          _
        // Predicated region
        $region85: #{decoder_forward.1} parent=11 // pred_check
          %p741 = pneg %p556
        $region86: #{decoder_forward.1} parent=11 // pred_check_branch
          %743 = sbr.rel (%p741) target = $region88
        $region87: #{decoder_forward.1} parent=11 // pred_region
          _
        $region88: #{decoder_forward.1} parent=11 // pred_fallthru
          _
        // Predicated region
        $region89: #{decoder_forward.1} parent=11 // pred_check
          %p744 = pneg %p577
        $region90: #{decoder_forward.1} parent=11 // pred_check_branch
          %746 = sbr.rel (%p744) target = $region92
        $region91: #{decoder_forward.1} parent=11 // pred_region
          _
        $region92: #{decoder_forward.1} parent=11 // pred_fallthru
          _
        // Predicated region
        $region93: #{decoder_forward.1} parent=11 // pred_check
          %p747 = pneg %p598
        $region94: #{decoder_forward.1} parent=11 // pred_check_branch
          %749 = sbr.rel (%p747) target = $region96
        $region95: #{decoder_forward.1} parent=11 // pred_region
          _
        $region96: #{decoder_forward.1} parent=11 // pred_fallthru
          _
        // Predicated region
        $region97: #{decoder_forward.1} parent=11 // pred_check
          %p750 = pneg %p619
        $region98: #{decoder_forward.1} parent=11 // pred_check_branch
          %752 = sbr.rel (%p750) target = $region100
        $region99: #{decoder_forward.1} parent=11 // pred_region
          _
        $region100: #{decoder_forward.1} parent=11 // pred_fallthru
          _
        // Predicated region
        $region101: #{decoder_forward.1} parent=11 // pred_check
          %p753 = pneg %p640
        $region102: #{decoder_forward.1} parent=11 // pred_check_branch
          %755 = sbr.rel (%p753) target = $region104
        $region103: #{decoder_forward.1} parent=11 // pred_region
          _
        $region104: #{decoder_forward.1} parent=11 // pred_fallthru
          _
      $region12: #{decoder_forward.1} parent=5 // pred_fallthru
        _
      %p756 = scmp.lt.s32.totalorder %s36, 2
      // Predicated region
      $region105: #{decoder_forward.1} parent=5 // pred_check
        %p757 = pneg %p756
      $region106: #{decoder_forward.1} parent=5 // pred_check_branch
        %759 = sbr.rel (%p757) target = $region108
      $region107: #{decoder_forward.1} parent=5 // pred_region
        // Predicated region
        $region109: #{decoder_forward.1} parent=107 // pred_check
          %p760 = pneg %p68
        $region110: #{decoder_forward.1} parent=107 // pred_check_branch
          %762 = sbr.rel (%p760) target = $region112
        $region111: #{decoder_forward.1} parent=107 // pred_region
          %p763 = scmp.lt.s32.totalorder %s43, 1
          %s764 = scalar_select %p763, %s43, 1
          %s765 = smul.addr %s764, 8
          %s766 = scalar_lea.vmem %s0, %s765
        $region112: #{decoder_forward.1} parent=107 // pred_fallthru
          _
        // Predicated region
        $region113: #{decoder_forward.1} parent=107 // pred_check
          %p767 = pneg %p94
        $region114: #{decoder_forward.1} parent=107 // pred_check_branch
          %769 = sbr.rel (%p767) target = $region116
        $region115: #{decoder_forward.1} parent=107 // pred_region
          %p770 = scmp.lt.s32.totalorder %s43, 1
          %s771 = scalar_select %p770, %s43, 1
          %s772 = smul.addr %s771, 8
          %s773 = scalar_lea.vmem %s1, %s772
        $region116: #{decoder_forward.1} parent=107 // pred_fallthru
          _
        // Predicated region
        $region117: #{decoder_forward.1} parent=107 // pred_check
          %p774 = pneg %p146
        $region118: #{decoder_forward.1} parent=107 // pred_check_branch
          %776 = sbr.rel (%p774) target = $region120
        $region119: #{decoder_forward.1} parent=107 // pred_region
          %p777 = scmp.lt.s32.totalorder %s43, 1
          %s778 = scalar_select %p777, %s43, 1
          %s779 = scalar_lea.vmem %s3, %s778
        $region120: #{decoder_forward.1} parent=107 // pred_fallthru
          _
        // Predicated region
        $region121: #{decoder_forward.1} parent=107 // pred_check
          %p780 = pneg %p172
        $region122: #{decoder_forward.1} parent=107 // pred_check_branch
          %782 = sbr.rel (%p780) target = $region124
        $region123: #{decoder_forward.1} parent=107 // pred_region
          %p783 = scmp.lt.s32.totalorder %s43, 1
          %s784 = scalar_select %p783, %s43, 1
          %s785 = scalar_lea.vmem %s4, %s784
        $region124: #{decoder_forward.1} parent=107 // pred_fallthru
          _
      $region108: #{decoder_forward.1} parent=5 // pred_fallthru
        _
      %p786 = scmp.le.s32.totalorder 1, %s36
      %p787 = scmp.lt.s32.totalorder %s36, 3
      %p788 = pnand %p786, %p787
      %p789 = pneg %p788
      // Predicated region
      $region125: #{decoder_forward.1} parent=5 // pred_check
        _
      $region126: #{decoder_forward.1} parent=5 // pred_check_branch
        %791 = sbr.rel (%p788) target = $region128
      $region127: #{decoder_forward.1} parent=5 // pred_region
        %s792 = ssub.s32 %s36, 1
        %p793 = scmp.lt.s32.totalorder %s45, 1
        %s794 = scalar_select %p793, %s45, 1
        %s795 = smul.addr %s794, 8
        %s796 = scalar_lea.vmem %s0, %s795
        %p797 = pneg %p74
        %p798 = pneg %p71
        %p799 = scmp.lt.s32.totalorder %s45, 1
        %s800 = scalar_select %p799, %s45, 1
        %s801 = smul.addr %s800, 8
        %s802 = scalar_lea.vmem %s1, %s801
        %p803 = pneg %p100
        %p804 = pneg %p97
        %p805 = scmp.lt.s32.totalorder %s46, 0
        %s806 = scalar_select %p805, %s46, 0
        %s807 = smul.addr %s806, 8
        %s808 = scalar_lea.vmem %s2, %s807
        %p809 = pneg %p126
        %p810 = pneg %p123
        %p811 = scmp.lt.s32.totalorder %s45, 1
        %s812 = scalar_select %p811, %s45, 1
        %s813 = scalar_lea.vmem %s3, %s812
        %p814 = pneg %p152
        %p815 = pneg %p149
        %p816 = scmp.lt.s32.totalorder %s45, 1
        %s817 = scalar_select %p816, %s45, 1
        %s818 = scalar_lea.vmem %s4, %s817
        %p819 = pneg %p178
        %p820 = pneg %p175
        %p821 = pneg %p199
        %p822 = pneg %p196
        %p823 = pneg %p220
        %p824 = pneg %p217
        %p825 = pneg %p241
        %p826 = pneg %p238
        %p827 = pneg %p262
        %p828 = pneg %p259
        %p829 = pneg %p283
        %p830 = pneg %p280
        %p831 = pneg %p304
        %p832 = pneg %p301
        %p833 = pneg %p325
        %p834 = pneg %p322
        %p835 = pneg %p346
        %p836 = pneg %p343
        %p837 = pneg %p367
        %p838 = pneg %p364
        %p839 = pneg %p388
        %p840 = pneg %p385
        %p841 = pneg %p409
        %p842 = pneg %p406
        %p843 = pneg %p430
        %p844 = pneg %p427
        %p845 = pneg %p451
        %p846 = pneg %p448
        %p847 = pneg %p472
        %p848 = pneg %p469
        %p849 = pneg %p493
        %p850 = pneg %p490
        %p851 = pneg %p514
        %p852 = pneg %p511
        %p853 = pneg %p535
        %p854 = pneg %p532
        %p855 = pneg %p556
        %p856 = pneg %p553
        %p857 = pneg %p577
        %p858 = pneg %p574
        %p859 = pneg %p598
        %p860 = pneg %p595
        %p861 = pneg %p619
        %p862 = pneg %p616
        %p863 = pneg %p640
        %p864 = pneg %p637
        %p865 = pneg %p668
        %p866 = pneg %p665
        %s867 = sand.u32 %s655, 1
        %s868 = scalar_lea.sflag [#allocation3], %s867
        %s869 = sand.u32 %s655, 1
        %s870 = smul.addr %s869, 8
        %s871 = scalar_lea.vmem [#allocation2], %s870
        %p872 = scmp.lt.s32.totalorder %s45, 1
        %s873 = scalar_select %p872, %s45, 1
        %s874 = smul.addr %s873, 8
        %s875 = scalar_lea.vmem %s0, %s874
        %p876 = scmp.lt.s32.totalorder %s45, 1
        %s877 = scalar_select %p876, %s45, 1
        %s878 = smul.addr %s877, 8
        %s879 = scalar_lea.vmem %s1, %s878
        %p880 = scmp.lt.s32.totalorder %s46, 0
        %s881 = scalar_select %p880, %s46, 0
        %s882 = smul.addr %s881, 8
        %s883 = scalar_lea.vmem %s2, %s882
        %p884 = scmp.lt.s32.totalorder %s45, 1
        %s885 = scalar_select %p884, %s45, 1
        %s886 = scalar_lea.vmem %s3, %s885
        %p887 = scmp.lt.s32.totalorder %s45, 1
        %s888 = scalar_select %p887, %s45, 1
        %s889 = scalar_lea.vmem %s4, %s888
        %v891 = vld [vmem:[%s875] sm:$0xff]
        %v892 = vld [vmem:[%s879] sm:$0xff]
        %s893 = smul.u32 %s46, 8
        %s894 = scalar_lea.vmem %s875, %s893
        %v895 = vld [vmem:[%s894] sm:$0xff]
        %v896 = vpack.c.bf16 %v891, %v891
        %v897 = vld [vmem:[%s7] sm:$0xf]
        %v898 = vld [vmem:[%s7 + $0x4] sm:$0xf]
        %v899 = vld [vmem:[%s7 + $0x8] sm:$0xf]
        %v900 = vld [vmem:[%s7 + $0xc] sm:$0xf]
        %v901 = vld [vmem:[%s7 + $0x10] sm:$0xf]
        %v902 = vld [vmem:[%s7 + $0x14] sm:$0xf]
        %v903 = vld [vmem:[%s7 + $0x18] sm:$0xf]
        %v904 = vld [vmem:[%s7 + $0x1c] sm:$0xf]
        %v905 = vld [vmem:[%s8] sm:$0x1]
        %v907 = vperm.slane %v905, 0
        %v917 = vunpack.c.l.b16 %v897
        %v918 = vunpack.c.l.b16 %v898
        %v919 = vunpack.c.l.b16 %v899
        %v920 = vunpack.c.l.b16 %v900
        %v921 = vunpack.c.l.b16 %v901
        %v922 = vunpack.c.l.b16 %v902
        %v923 = vunpack.c.l.b16 %v903
        %v924 = vunpack.c.l.b16 %v904
        %v925 = vpack.c.b16 %v918, %v917
        %v926 = vpack.c.b16 %v920, %v919
        %v927 = vpack.c.b16 %v922, %v921
        %v928 = vpack.c.b16 %v924, %v923
        %vm929 = vcmask 261120
        %v931 = vsel %vm929, %v896, 0
        %v934 = vsel %vm929, %v925, 0
        %v937 = vsel %vm929, %v926, 0
        %v940 = vsel %vm929, %v927, 0
        %v943 = vsel %vm929, %v928, 0
        %945 = vmatpush.bf16.xpose.msra.mxu0 0
        %946 = vmatpush.bf16.xpose.msra.mxu0 0
        %947 = vmatpush.bf16.xpose.msra.mxu0 0
        %948 = vmatpush.bf16.xpose.msra.mxu0 0
        %949 = vmatpush.bf16.xpose.msra.mxu0 %v943
        %950 = vmatpush.bf16.xpose.msra.mxu0 %v940
        %951 = vmatpush.bf16.xpose.msra.mxu0 %v937
        %952 = vmatpush.bf16.xpose.msra.mxu0 %v934
        %953 = vmatmul.bf16.gmra.mxu0 %v931
        %v954 = vpop.f32.mrf.mxu0
        %v955 = vadd.f32 %v907, %v954
        %v956 = vpop.f32.mrf.mxu0
        %957 = vdwg.mxu0
        %v958 = vpack.c.bf16 %v895, %v895
        %v959 = vld [vmem:[%s5] sm:$0xf]
        %v960 = vld [vmem:[%s5 + $0x4] sm:$0xf]
        %v961 = vld [vmem:[%s5 + $0x8] sm:$0xf]
        %v962 = vld [vmem:[%s5 + $0xc] sm:$0xf]
        %v963 = vld [vmem:[%s6] sm:$0x1]
        %v965 = vperm.slane %v963, 0
        %v971 = vunpack.c.l.b16 %v959
        %v972 = vunpack.c.l.b16 %v960
        %v973 = vunpack.c.l.b16 %v961
        %v974 = vunpack.c.l.b16 %v962
        %v975 = vpack.c.b16 %v972, %v971
        %v976 = vpack.c.b16 %v974, %v973
        %v978 = vsel %vm929, %v958, 0
        %v981 = vsel %vm929, %v975, 0
        %v984 = vsel %vm929, %v976, 0
        %986 = vmatpush.bf16.xpose.msra.mxu0 0
        %987 = vmatpush.bf16.xpose.msra.mxu0 0
        %988 = vmatpush.bf16.xpose.msra.mxu0 0
        %989 = vmatpush.bf16.xpose.msra.mxu0 0
        %990 = vmatpush.bf16.xpose.msra.mxu0 0
        %991 = vmatpush.bf16.xpose.msra.mxu0 0
        %992 = vmatpush.bf16.xpose.msra.mxu0 %v984
        %993 = vmatpush.bf16.xpose.msra.mxu0 %v981
        %994 = vmatmul.bf16.gmra.mxu0 %v978
        %v995 = vpop.f32.mrf.mxu0
        %v996 = vadd.f32 %v965, %v995
        %v997 = vpop.f32.mrf.mxu0
        %998 = vdwg.mxu0
        %v999 = vld [vmem:[%s883] sm:$0xff]
        %v1000 = vld [vmem:[%s886] sm:$0x1]
        %v1002 = vperm.slane %v1000, 0
        %v1004 = vadd.f32 %v999, %v1002
        %1006 = vrot.lane.b32.xlu0 %v996, 120
        %v1007 = vpop.permute.xlu0 %1006
        %1009 = vrot.lane.b32.xlu0 %v996, 112
        %v1010 = vpop.permute.xlu0 %1009
        %1012 = vrot.lane.b32.xlu0 %v996, 104
        %v1013 = vpop.permute.xlu0 %1012
        %v1015 = vrot.slane %v1010, 4
        %vm1016 = vcmask 1047556
        %v1017 = vsel %vm1016, %v1015, %v996
        %v1018 = vrot.slane %v996, 4
        %v1019 = vsel %vm1016, %v1010, %v1018
        %v1021 = vunpack.c.l.s4 1983009808
        %v1022 = vunpack.c.0.s8 %v1021
        %v1023 = vperm.slane %v1017, %v1022
        %v1025 = vunpack.c.l.s4 1983009808
        %v1026 = vunpack.c.0.s8 %v1025
        %v1027 = vperm.slane %v1019, %v1026
        %v1028 = vrot.slane %v1013, 4
        %v1029 = vsel %vm1016, %v1028, %v1007
        %v1030 = vrot.slane %v1007, 4
        %v1031 = vsel %vm1016, %v1013, %v1030
        %v1033 = vunpack.c.l.s4 1983009808
        %v1034 = vunpack.c.0.s8 %v1033
        %v1035 = vperm.slane %v1029, %v1034
        %v1037 = vunpack.c.l.s4 1983009808
        %v1038 = vunpack.c.0.s8 %v1037
        %v1039 = vperm.slane %v1031, %v1038
        %v1040 = vrot.slane %v1035, 4
        %v1041 = vsel %vm1016, %v1040, %v1023
        %v1042 = vrot.slane %v1023, 4
        %v1043 = vsel %vm1016, %v1035, %v1042
        %v1045 = vunpack.c.l.s4 1934713408
        %v1046 = vunpack.c.0.s8 %v1045
        %v1047 = vperm.slane %v1041, %v1046
        %v1049 = vunpack.c.l.s4 1934713408
        %v1050 = vunpack.c.0.s8 %v1049
        %v1051 = vperm.slane %v1043, %v1050
        %v1052 = vrot.slane %v1039, 4
        %v1053 = vsel %vm1016, %v1052, %v1027
        %v1054 = vrot.slane %v1027, 4
        %v1055 = vsel %vm1016, %v1039, %v1054
        %v1057 = vunpack.c.l.s4 1934713408
        %v1058 = vunpack.c.0.s8 %v1057
        %v1059 = vperm.slane %v1053, %v1058
        %v1061 = vunpack.c.l.s4 1934713408
        %v1062 = vunpack.c.0.s8 %v1061
        %v1063 = vperm.slane %v1055, %v1062
        %v1064 = vrot.slane %v1047, 4
        %v1065 = vsel %vm1016, 0.0, %v1064
        %v1066 = vrot.slane %v1051, 4
        %v1067 = vsel %vm1016, 0.0, %v1066
        %v1068 = vrot.slane %v1059, 4
        %v1069 = vsel %vm1016, 0.0, %v1068
        %v1070 = vrot.slane %v1063, 4
        %v1071 = vsel %vm1016, 0.0, %v1070
        %v1072 = vpack.c.bf16 %v1047, %v1047
        %v1073 = vpack.c.bf16 %v1065, %v1065
        %v1074 = vpack.c.bf16 %v1051, %v1051
        %v1075 = vpack.c.bf16 %v1067, %v1067
        %v1076 = vpack.c.bf16 %v1059, %v1059
        %v1077 = vpack.c.bf16 %v1069, %v1069
        %v1078 = vpack.c.bf16 %v1063, %v1063
        %v1079 = vpack.c.bf16 %v1071, %v1071
        %1081 = vrot.lane.b32.xlu0 %v955, 120
        %v1082 = vpop.permute.xlu0 %1081
        %1084 = vrot.lane.b32.xlu0 %v955, 112
        %v1085 = vpop.permute.xlu0 %1084
        %1087 = vrot.lane.b32.xlu0 %v955, 104
        %v1088 = vpop.permute.xlu0 %1087
        %v1090 = vrot.slane %v1085, 4
        %v1091 = vsel %vm1016, %v1090, %v955
        %v1092 = vrot.slane %v955, 4
        %v1093 = vsel %vm1016, %v1085, %v1092
        %v1095 = vunpack.c.l.s4 1983009808
        %v1096 = vunpack.c.0.s8 %v1095
        %v1097 = vperm.slane %v1091, %v1096
        %v1099 = vunpack.c.l.s4 1983009808
        %v1100 = vunpack.c.0.s8 %v1099
        %v1101 = vperm.slane %v1093, %v1100
        %v1102 = vrot.slane %v1088, 4
        %v1103 = vsel %vm1016, %v1102, %v1082
        %v1104 = vrot.slane %v1082, 4
        %v1105 = vsel %vm1016, %v1088, %v1104
        %v1107 = vunpack.c.l.s4 1983009808
        %v1108 = vunpack.c.0.s8 %v1107
        %v1109 = vperm.slane %v1103, %v1108
        %v1111 = vunpack.c.l.s4 1983009808
        %v1112 = vunpack.c.0.s8 %v1111
        %v1113 = vperm.slane %v1105, %v1112
        %v1114 = vrot.slane %v1109, 4
        %v1115 = vsel %vm1016, %v1114, %v1097
        %v1116 = vrot.slane %v1097, 4
        %v1117 = vsel %vm1016, %v1109, %v1116
        %v1119 = vunpack.c.l.s4 1934713408
        %v1120 = vunpack.c.0.s8 %v1119
        %v1121 = vperm.slane %v1115, %v1120
        %v1123 = vunpack.c.l.s4 1934713408
        %v1124 = vunpack.c.0.s8 %v1123
        %v1125 = vperm.slane %v1117, %v1124
        %v1126 = vrot.slane %v1113, 4
        %v1127 = vsel %vm1016, %v1126, %v1101
        %v1128 = vrot.slane %v1101, 4
        %v1129 = vsel %vm1016, %v1113, %v1128
        %v1131 = vunpack.c.l.s4 1934713408
        %v1132 = vunpack.c.0.s8 %v1131
        %v1133 = vperm.slane %v1127, %v1132
        %v1135 = vunpack.c.l.s4 1934713408
        %v1136 = vunpack.c.0.s8 %v1135
        %v1137 = vperm.slane %v1129, %v1136
        %v1138 = vrot.slane %v1121, 4
        %v1139 = vsel %vm1016, 0.0, %v1138
        %v1140 = vrot.slane %v1125, 4
        %v1141 = vsel %vm1016, 0.0, %v1140
        %v1142 = vrot.slane %v1133, 4
        %v1143 = vsel %vm1016, 0.0, %v1142
        %v1144 = vrot.slane %v1137, 4
        %v1145 = vsel %vm1016, 0.0, %v1144
        %v1146 = vpack.c.bf16 %v1121, %v1121
        %v1147 = vpack.c.bf16 %v1139, %v1139
        %v1148 = vpack.c.bf16 %v1125, %v1125
        %v1149 = vpack.c.bf16 %v1141, %v1141
        %v1150 = vpack.c.bf16 %v1133, %v1133
        %v1151 = vpack.c.bf16 %v1143, %v1143
        %v1152 = vpack.c.bf16 %v1137, %v1137
        %v1153 = vpack.c.bf16 %v1145, %v1145
        %1154 = vrot.lane.b32.xlu0 %v955, 96
        %v1155 = vpop.permute.xlu0 %1154
        %1156 = vrot.lane.b32.xlu0 %v1082, 96
        %v1157 = vpop.permute.xlu0 %1156
        %1158 = vrot.lane.b32.xlu0 %v1085, 96
        %v1159 = vpop.permute.xlu0 %1158
        %1160 = vrot.lane.b32.xlu0 %v1088, 96
        %v1161 = vpop.permute.xlu0 %1160
        %v1166 = vrot.slane %v1159, 4
        %v1167 = vsel %vm1016, %v1166, %v1155
        %v1168 = vrot.slane %v1155, 4
        %v1169 = vsel %vm1016, %v1159, %v1168
        %v1171 = vunpack.c.l.s4 1983009808
        %v1172 = vunpack.c.0.s8 %v1171
        %v1173 = vperm.slane %v1167, %v1172
        %v1175 = vunpack.c.l.s4 1983009808
        %v1176 = vunpack.c.0.s8 %v1175
        %v1177 = vperm.slane %v1169, %v1176
        %v1178 = vrot.slane %v1161, 4
        %v1179 = vsel %vm1016, %v1178, %v1157
        %v1180 = vrot.slane %v1157, 4
        %v1181 = vsel %vm1016, %v1161, %v1180
        %v1183 = vunpack.c.l.s4 1983009808
        %v1184 = vunpack.c.0.s8 %v1183
        %v1185 = vperm.slane %v1179, %v1184
        %v1187 = vunpack.c.l.s4 1983009808
        %v1188 = vunpack.c.0.s8 %v1187
        %v1189 = vperm.slane %v1181, %v1188
        %v1190 = vrot.slane %v1185, 4
        %v1191 = vsel %vm1016, %v1190, %v1173
        %v1192 = vrot.slane %v1173, 4
        %v1193 = vsel %vm1016, %v1185, %v1192
        %v1195 = vunpack.c.l.s4 1934713408
        %v1196 = vunpack.c.0.s8 %v1195
        %v1197 = vperm.slane %v1191, %v1196
        %v1199 = vunpack.c.l.s4 1934713408
        %v1200 = vunpack.c.0.s8 %v1199
        %v1201 = vperm.slane %v1193, %v1200
        %v1202 = vrot.slane %v1189, 4
        %v1203 = vsel %vm1016, %v1202, %v1177
        %v1204 = vrot.slane %v1177, 4
        %v1205 = vsel %vm1016, %v1189, %v1204
        %v1207 = vunpack.c.l.s4 1934713408
        %v1208 = vunpack.c.0.s8 %v1207
        %v1209 = vperm.slane %v1203, %v1208
        %v1211 = vunpack.c.l.s4 1934713408
        %v1212 = vunpack.c.0.s8 %v1211
        %v1213 = vperm.slane %v1205, %v1212
        %v1214 = vrot.slane %v1197, 4
        %v1215 = vsel %vm1016, 0.0, %v1214
        %v1216 = vrot.slane %v1201, 4
        %v1217 = vsel %vm1016, 0.0, %v1216
        %v1218 = vrot.slane %v1209, 4
        %v1219 = vsel %vm1016, 0.0, %v1218
        %v1220 = vrot.slane %v1213, 4
        %v1221 = vsel %vm1016, 0.0, %v1220
        %v1222 = vpack.c.bf16 %v1197, %v1197
        %v1223 = vpack.c.bf16 %v1215, %v1215
        %v1224 = vpack.c.bf16 %v1201, %v1201
        %v1225 = vpack.c.bf16 %v1217, %v1217
        %v1226 = vpack.c.bf16 %v1209, %v1209
        %v1227 = vpack.c.bf16 %v1219, %v1219
        %v1228 = vpack.c.bf16 %v1213, %v1213
        %v1229 = vpack.c.bf16 %v1221, %v1221
        %v1230 = vrot.slane %v1076, 4
        %vm1231 = vcmask 1047556
        %v1232 = vsel %vm1231, %v1230, %v1072
        %v1234 = vunpack.c.l.s4 1983009808
        %v1235 = vunpack.c.0.s8 %v1234
        %v1236 = vperm.slane %v1232, %v1235
        %v1237 = vrot.slane %v1078, 4
        %v1238 = vsel %vm1231, %v1237, %v1074
        %v1240 = vunpack.c.l.s4 1983009808
        %v1241 = vunpack.c.0.s8 %v1240
        %v1242 = vperm.slane %v1238, %v1241
        %v1243 = vrot.slane %v1242, 4
        %v1244 = vsel %vm1231, %v1243, %v1236
        %v1246 = vunpack.c.l.s4 1934713408
        %v1247 = vunpack.c.0.s8 %v1246
        %v1248 = vperm.slane %v1244, %v1247
        %v1249 = vrot.slane %v1248, 4
        %v1250 = vsel %vm1231, 0, %v1249
        %v1251 = vrot.slane %v1077, 4
        %v1252 = vsel %vm1231, %v1251, %v1073
        %v1254 = vunpack.c.l.s4 1983009808
        %v1255 = vunpack.c.0.s8 %v1254
        %v1256 = vperm.slane %v1252, %v1255
        %v1257 = vrot.slane %v1079, 4
        %v1258 = vsel %vm1231, %v1257, %v1075
        %v1260 = vunpack.c.l.s4 1983009808
        %v1261 = vunpack.c.0.s8 %v1260
        %v1262 = vperm.slane %v1258, %v1261
        %v1263 = vrot.slane %v1262, 4
        %v1264 = vsel %vm1231, %v1263, %v1256
        %v1266 = vunpack.c.l.s4 1934713408
        %v1267 = vunpack.c.0.s8 %v1266
        %v1268 = vperm.slane %v1264, %v1267
        %v1269 = vrot.slane %v1268, 4
        %v1270 = vsel %vm1231, 0, %v1269
        %v1273 = vpack.i.b16 %v1268, %v1248
        %v1274 = vshrl.u32 %v1248, 16
        %v1275 = vshrl.u32 %v1268, 16
        %v1276 = vpack.i.b16 %v1275, %v1274
        %v1279 = vpack.i.b16 %v1270, %v1250
        %v1280 = vshrl.u32 %v1250, 16
        %v1281 = vshrl.u32 %v1270, 16
        %v1282 = vpack.i.b16 %v1281, %v1280
        %1283 = vxpose.xlu0.c.b16.start [1/8] %v1146, 128
        %1284 = vxpose.xlu0.c.b16.cont [2/8] 0, 128
        %1285 = vxpose.xlu0.c.b16.cont [3/8] 0, 128
        %1286 = vxpose.xlu0.c.b16.cont [4/8] 0, 128
        %1287 = vxpose.xlu0.c.b16.cont [5/8] 0, 128
        %1288 = vxpose.xlu0.c.b16.cont [6/8] 0, 128
        %1289 = vxpose.xlu0.c.b16.cont [7/8] 0, 128
        %1290 = vxpose.xlu0.c.b16.end [8/8] 0, 128
        %v1291 = vpop.trf.xlu0
        %v1292 = vpop.trf.xlu0
        %v1293 = vpop.trf.xlu0
        %v1294 = vpop.trf.xlu0
        %v1295 = vpop.trf.xlu0
        %v1296 = vpop.trf.xlu0
        %v1297 = vpop.trf.xlu0
        %v1298 = vpop.trf.xlu0
        %1299 = vxpose.xlu0.c.b16.start [1/8] %v1147, 128
        %1300 = vxpose.xlu0.c.b16.cont [2/8] 0, 128
        %1301 = vxpose.xlu0.c.b16.cont [3/8] 0, 128
        %1302 = vxpose.xlu0.c.b16.cont [4/8] 0, 128
        %1303 = vxpose.xlu0.c.b16.cont [5/8] 0, 128
        %1304 = vxpose.xlu0.c.b16.cont [6/8] 0, 128
        %1305 = vxpose.xlu0.c.b16.cont [7/8] 0, 128
        %1306 = vxpose.xlu0.c.b16.end [8/8] 0, 128
        %v1307 = vpop.trf.xlu0
        %v1308 = vpop.trf.xlu0
        %v1309 = vpop.trf.xlu0
        %v1310 = vpop.trf.xlu0
        %v1311 = vpop.trf.xlu0
        %v1312 = vpop.trf.xlu0
        %v1313 = vpop.trf.xlu0
        %v1314 = vpop.trf.xlu0
        %1315 = vxpose.xlu0.c.b16.start [1/8] %v1148, 128
        %1316 = vxpose.xlu0.c.b16.cont [2/8] 0, 128
        %1317 = vxpose.xlu0.c.b16.cont [3/8] 0, 128
        %1318 = vxpose.xlu0.c.b16.cont [4/8] 0, 128
        %1319 = vxpose.xlu0.c.b16.cont [5/8] 0, 128
        %1320 = vxpose.xlu0.c.b16.cont [6/8] 0, 128
        %1321 = vxpose.xlu0.c.b16.cont [7/8] 0, 128
        %1322 = vxpose.xlu0.c.b16.end [8/8] 0, 128
        %v1323 = vpop.trf.xlu0
        %v1324 = vpop.trf.xlu0
        %v1325 = vpop.trf.xlu0
        %v1326 = vpop.trf.xlu0
        %v1327 = vpop.trf.xlu0
        %v1328 = vpop.trf.xlu0
        %v1329 = vpop.trf.xlu0
        %v1330 = vpop.trf.xlu0
        %1331 = vxpose.xlu0.c.b16.start [1/8] %v1149, 128
        %1332 = vxpose.xlu0.c.b16.cont [2/8] 0, 128
        %1333 = vxpose.xlu0.c.b16.cont [3/8] 0, 128
        %1334 = vxpose.xlu0.c.b16.cont [4/8] 0, 128
        %1335 = vxpose.xlu0.c.b16.cont [5/8] 0, 128
        %1336 = vxpose.xlu0.c.b16.cont [6/8] 0, 128
        %1337 = vxpose.xlu0.c.b16.cont [7/8] 0, 128
        %1338 = vxpose.xlu0.c.b16.end [8/8] 0, 128
        %v1339 = vpop.trf.xlu0
        %v1340 = vpop.trf.xlu0
        %v1341 = vpop.trf.xlu0
        %v1342 = vpop.trf.xlu0
        %v1343 = vpop.trf.xlu0
        %v1344 = vpop.trf.xlu0
        %v1345 = vpop.trf.xlu0
        %v1346 = vpop.trf.xlu0
        %1347 = vxpose.xlu0.c.b16.start [1/8] %v1150, 128
        %1348 = vxpose.xlu0.c.b16.cont [2/8] 0, 128
        %1349 = vxpose.xlu0.c.b16.cont [3/8] 0, 128
        %1350 = vxpose.xlu0.c.b16.cont [4/8] 0, 128
        %1351 = vxpose.xlu0.c.b16.cont [5/8] 0, 128
        %1352 = vxpose.xlu0.c.b16.cont [6/8] 0, 128
        %1353 = vxpose.xlu0.c.b16.cont [7/8] 0, 128
        %1354 = vxpose.xlu0.c.b16.end [8/8] 0, 128
        %v1355 = vpop.trf.xlu0
        %v1356 = vpop.trf.xlu0
        %v1357 = vpop.trf.xlu0
        %v1358 = vpop.trf.xlu0
        %v1359 = vpop.trf.xlu0
        %v1360 = vpop.trf.xlu0
        %v1361 = vpop.trf.xlu0
        %v1362 = vpop.trf.xlu0
        %1363 = vxpose.xlu0.c.b16.start [1/8] %v1151, 128
        %1364 = vxpose.xlu0.c.b16.cont [2/8] 0, 128
        %1365 = vxpose.xlu0.c.b16.cont [3/8] 0, 128
        %1366 = vxpose.xlu0.c.b16.cont [4/8] 0, 128
        %1367 = vxpose.xlu0.c.b16.cont [5/8] 0, 128
        %1368 = vxpose.xlu0.c.b16.cont [6/8] 0, 128
        %1369 = vxpose.xlu0.c.b16.cont [7/8] 0, 128
        %1370 = vxpose.xlu0.c.b16.end [8/8] 0, 128
        %v1371 = vpop.trf.xlu0
        %v1372 = vpop.trf.xlu0
        %v1373 = vpop.trf.xlu0
        %v1374 = vpop.trf.xlu0
        %v1375 = vpop.trf.xlu0
        %v1376 = vpop.trf.xlu0
        %v1377 = vpop.trf.xlu0
        %v1378 = vpop.trf.xlu0
        %1379 = vxpose.xlu0.c.b16.start [1/8] %v1152, 128
        %1380 = vxpose.xlu0.c.b16.cont [2/8] 0, 128
        %1381 = vxpose.xlu0.c.b16.cont [3/8] 0, 128
        %1382 = vxpose.xlu0.c.b16.cont [4/8] 0, 128
        %1383 = vxpose.xlu0.c.b16.cont [5/8] 0, 128
        %1384 = vxpose.xlu0.c.b16.cont [6/8] 0, 128
        %1385 = vxpose.xlu0.c.b16.cont [7/8] 0, 128
        %1386 = vxpose.xlu0.c.b16.end [8/8] 0, 128
        %v1387 = vpop.trf.xlu0
        %v1388 = vpop.trf.xlu0
        %v1389 = vpop.trf.xlu0
        %v1390 = vpop.trf.xlu0
        %v1391 = vpop.trf.xlu0
        %v1392 = vpop.trf.xlu0
        %v1393 = vpop.trf.xlu0
        %v1394 = vpop.trf.xlu0
        %1395 = vxpose.xlu0.c.b16.start [1/8] %v1153, 128
        %1396 = vxpose.xlu0.c.b16.cont [2/8] 0, 128
        %1397 = vxpose.xlu0.c.b16.cont [3/8] 0, 128
        %1398 = vxpose.xlu0.c.b16.cont [4/8] 0, 128
        %1399 = vxpose.xlu0.c.b16.cont [5/8] 0, 128
        %1400 = vxpose.xlu0.c.b16.cont [6/8] 0, 128
        %1401 = vxpose.xlu0.c.b16.cont [7/8] 0, 128
        %1402 = vxpose.xlu0.c.b16.end [8/8] 0, 128
        %v1403 = vpop.trf.xlu0
        %v1404 = vpop.trf.xlu0
        %v1405 = vpop.trf.xlu0
        %v1406 = vpop.trf.xlu0
        %v1407 = vpop.trf.xlu0
        %v1408 = vpop.trf.xlu0
        %v1409 = vpop.trf.xlu0
        %v1410 = vpop.trf.xlu0
        %v1411 = vrot.slane %v1355, 4
        %v1412 = vsel %vm1231, %v1411, %v1291
        %v1414 = vunpack.c.l.s4 1983009808
        %v1415 = vunpack.c.0.s8 %v1414
        %v1416 = vperm.slane %v1412, %v1415
        %v1417 = vrot.slane %v1387, 4
        %v1418 = vsel %vm1231, %v1417, %v1323
        %v1420 = vunpack.c.l.s4 1983009808
        %v1421 = vunpack.c.0.s8 %v1420
        %v1422 = vperm.slane %v1418, %v1421
        %v1423 = vrot.slane %v1422, 4
        %v1424 = vsel %vm1231, %v1423, %v1416
        %v1425 = vrot.slane %v1416, 4
        %v1426 = vsel %vm1231, %v1422, %v1425
        %v1428 = vunpack.c.l.s4 1934713408
        %v1429 = vunpack.c.0.s8 %v1428
        %v1430 = vperm.slane %v1424, %v1429
        %v1432 = vunpack.c.l.s4 1934713408
        %v1433 = vunpack.c.0.s8 %v1432
        %v1434 = vperm.slane %v1426, %v1433
        %v1435 = vrot.slane %v1430, 4
        %v1436 = vsel %vm1231, 0, %v1435
        %v1437 = vrot.slane %v1434, 4
        %v1438 = vsel %vm1231, 0, %v1437
        %v1439 = vrot.slane %v1371, 4
        %v1440 = vsel %vm1231, %v1439, %v1307
        %v1442 = vunpack.c.l.s4 1983009808
        %v1443 = vunpack.c.0.s8 %v1442
        %v1444 = vperm.slane %v1440, %v1443
        %v1445 = vrot.slane %v1403, 4
        %v1446 = vsel %vm1231, %v1445, %v1339
        %v1448 = vunpack.c.l.s4 1983009808
        %v1449 = vunpack.c.0.s8 %v1448
        %v1450 = vperm.slane %v1446, %v1449
        %v1451 = vrot.slane %v1450, 4
        %v1452 = vsel %vm1231, %v1451, %v1444
        %v1453 = vrot.slane %v1444, 4
        %v1454 = vsel %vm1231, %v1450, %v1453
        %v1456 = vunpack.c.l.s4 1934713408
        %v1457 = vunpack.c.0.s8 %v1456
        %v1458 = vperm.slane %v1452, %v1457
        %v1460 = vunpack.c.l.s4 1934713408
        %v1461 = vunpack.c.0.s8 %v1460
        %v1462 = vperm.slane %v1454, %v1461
        %v1463 = vrot.slane %v1458, 4
        %v1464 = vsel %vm1231, 0, %v1463
        %v1465 = vrot.slane %v1462, 4
        %v1466 = vsel %vm1231, 0, %v1465
        %v1469 = vpack.i.b16 %v1458, %v1430
        %v1471 = vshrl.u32 %v1430, 16
        %v1472 = vshrl.u32 %v1458, 16
        %v1473 = vpack.i.b16 %v1472, %v1471
        %v1477 = vpack.i.b16 %v1464, %v1436
        %v1479 = vshrl.u32 %v1436, 16
        %v1480 = vshrl.u32 %v1464, 16
        %v1481 = vpack.i.b16 %v1480, %v1479
        %v1485 = vpack.i.b16 %v1462, %v1434
        %v1487 = vshrl.u32 %v1434, 16
        %v1488 = vshrl.u32 %v1462, 16
        %v1489 = vpack.i.b16 %v1488, %v1487
        %v1493 = vpack.i.b16 %v1466, %v1438
        %v1495 = vshrl.u32 %v1438, 16
        %v1496 = vshrl.u32 %v1466, 16
        %v1497 = vpack.i.b16 %v1496, %v1495
        %1499 = vxpose.xlu0.c.b16.start [1/8] %v1469, 128
        %1500 = vxpose.xlu0.c.b16.cont [2/8] 0, 128
        %1501 = vxpose.xlu0.c.b16.cont [3/8] 0, 128
        %1502 = vxpose.xlu0.c.b16.cont [4/8] 0, 128
        %1503 = vxpose.xlu0.c.b16.cont [5/8] 0, 128
        %1504 = vxpose.xlu0.c.b16.cont [6/8] 0, 128
        %1505 = vxpose.xlu0.c.b16.cont [7/8] 0, 128
        %1506 = vxpose.xlu0.c.b16.end [8/8] 0, 128
        %v1507 = vpop.trf.xlu0
        %v1508 = vpop.trf.xlu0
        %v1509 = vpop.trf.xlu0
        %v1510 = vpop.trf.xlu0
        %v1511 = vpop.trf.xlu0
        %v1512 = vpop.trf.xlu0
        %v1513 = vpop.trf.xlu0
        %v1514 = vpop.trf.xlu0
        %1515 = vxpose.xlu0.c.b16.start [1/8] %v1473, 128
        %1516 = vxpose.xlu0.c.b16.cont [2/8] 0, 128
        %1517 = vxpose.xlu0.c.b16.cont [3/8] 0, 128
        %1518 = vxpose.xlu0.c.b16.cont [4/8] 0, 128
        %1519 = vxpose.xlu0.c.b16.cont [5/8] 0, 128
        %1520 = vxpose.xlu0.c.b16.cont [6/8] 0, 128
        %1521 = vxpose.xlu0.c.b16.cont [7/8] 0, 128
        %1522 = vxpose.xlu0.c.b16.end [8/8] 0, 128
        %v1523 = vpop.trf.xlu0
        %v1524 = vpop.trf.xlu0
        %v1525 = vpop.trf.xlu0
        %v1526 = vpop.trf.xlu0
        %v1527 = vpop.trf.xlu0
        %v1528 = vpop.trf.xlu0
        %v1529 = vpop.trf.xlu0
        %v1530 = vpop.trf.xlu0
        %1531 = vxpose.xlu0.c.b16.start [1/8] %v1477, 128
        %1532 = vxpose.xlu0.c.b16.cont [2/8] 0, 128
        %1533 = vxpose.xlu0.c.b16.cont [3/8] 0, 128
        %1534 = vxpose.xlu0.c.b16.cont [4/8] 0, 128
        %1535 = vxpose.xlu0.c.b16.cont [5/8] 0, 128
        %1536 = vxpose.xlu0.c.b16.cont [6/8] 0, 128
        %1537 = vxpose.xlu0.c.b16.cont [7/8] 0, 128
        %1538 = vxpose.xlu0.c.b16.end [8/8] 0, 128
        %v1539 = vpop.trf.xlu0
        %v1540 = vpop.trf.xlu0
        %v1541 = vpop.trf.xlu0
        %v1542 = vpop.trf.xlu0
        %v1543 = vpop.trf.xlu0
        %v1544 = vpop.trf.xlu0
        %v1545 = vpop.trf.xlu0
        %v1546 = vpop.trf.xlu0
        %1547 = vxpose.xlu0.c.b16.start [1/8] %v1481, 128
        %1548 = vxpose.xlu0.c.b16.cont [2/8] 0, 128
        %1549 = vxpose.xlu0.c.b16.cont [3/8] 0, 128
        %1550 = vxpose.xlu0.c.b16.cont [4/8] 0, 128
        %1551 = vxpose.xlu0.c.b16.cont [5/8] 0, 128
        %1552 = vxpose.xlu0.c.b16.cont [6/8] 0, 128
        %1553 = vxpose.xlu0.c.b16.cont [7/8] 0, 128
        %1554 = vxpose.xlu0.c.b16.end [8/8] 0, 128
        %v1555 = vpop.trf.xlu0
        %v1556 = vpop.trf.xlu0
        %v1557 = vpop.trf.xlu0
        %v1558 = vpop.trf.xlu0
        %v1559 = vpop.trf.xlu0
        %v1560 = vpop.trf.xlu0
        %v1561 = vpop.trf.xlu0
        %v1562 = vpop.trf.xlu0
        %1563 = vxpose.xlu0.c.b16.start [1/8] %v1485, 128
        %1564 = vxpose.xlu0.c.b16.cont [2/8] 0, 128
        %1565 = vxpose.xlu0.c.b16.cont [3/8] 0, 128
        %1566 = vxpose.xlu0.c.b16.cont [4/8] 0, 128
        %1567 = vxpose.xlu0.c.b16.cont [5/8] 0, 128
        %1568 = vxpose.xlu0.c.b16.cont [6/8] 0, 128
        %1569 = vxpose.xlu0.c.b16.cont [7/8] 0, 128
        %1570 = vxpose.xlu0.c.b16.end [8/8] 0, 128
        %v1571 = vpop.trf.xlu0
        %v1572 = vpop.trf.xlu0
        %v1573 = vpop.trf.xlu0
        %v1574 = vpop.trf.xlu0
        %v1575 = vpop.trf.xlu0
        %v1576 = vpop.trf.xlu0
        %v1577 = vpop.trf.xlu0
        %v1578 = vpop.trf.xlu0
        %1579 = vxpose.xlu0.c.b16.start [1/8] %v1489, 128
        %1580 = vxpose.xlu0.c.b16.cont [2/8] 0, 128
        %1581 = vxpose.xlu0.c.b16.cont [3/8] 0, 128
        %1582 = vxpose.xlu0.c.b16.cont [4/8] 0, 128
        %1583 = vxpose.xlu0.c.b16.cont [5/8] 0, 128
        %1584 = vxpose.xlu0.c.b16.cont [6/8] 0, 128
        %1585 = vxpose.xlu0.c.b16.cont [7/8] 0, 128
        %1586 = vxpose.xlu0.c.b16.end [8/8] 0, 128
        %v1587 = vpop.trf.xlu0
        %v1588 = vpop.trf.xlu0
        %v1589 = vpop.trf.xlu0
        %v1590 = vpop.trf.xlu0
        %v1591 = vpop.trf.xlu0
        %v1592 = vpop.trf.xlu0
        %v1593 = vpop.trf.xlu0
        %v1594 = vpop.trf.xlu0
        %1595 = vxpose.xlu0.c.b16.start [1/8] %v1493, 128
        %1596 = vxpose.xlu0.c.b16.cont [2/8] 0, 128
        %1597 = vxpose.xlu0.c.b16.cont [3/8] 0, 128
        %1598 = vxpose.xlu0.c.b16.cont [4/8] 0, 128
        %1599 = vxpose.xlu0.c.b16.cont [5/8] 0, 128
        %1600 = vxpose.xlu0.c.b16.cont [6/8] 0, 128
        %1601 = vxpose.xlu0.c.b16.cont [7/8] 0, 128
        %1602 = vxpose.xlu0.c.b16.end [8/8] 0, 128
        %v1603 = vpop.trf.xlu0
        %v1604 = vpop.trf.xlu0
        %v1605 = vpop.trf.xlu0
        %v1606 = vpop.trf.xlu0
        %v1607 = vpop.trf.xlu0
        %v1608 = vpop.trf.xlu0
        %v1609 = vpop.trf.xlu0
        %v1610 = vpop.trf.xlu0
        %1611 = vxpose.xlu0.c.b16.start [1/8] %v1497, 128
        %1612 = vxpose.xlu0.c.b16.cont [2/8] 0, 128
        %1613 = vxpose.xlu0.c.b16.cont [3/8] 0, 128
        %1614 = vxpose.xlu0.c.b16.cont [4/8] 0, 128
        %1615 = vxpose.xlu0.c.b16.cont [5/8] 0, 128
        %1616 = vxpose.xlu0.c.b16.cont [6/8] 0, 128
        %1617 = vxpose.xlu0.c.b16.cont [7/8] 0, 128
        %1618 = vxpose.xlu0.c.b16.end [8/8] 0, 128
        %v1619 = vpop.trf.xlu0
        %v1620 = vpop.trf.xlu0
        %v1621 = vpop.trf.xlu0
        %v1622 = vpop.trf.xlu0
        %v1623 = vpop.trf.xlu0
        %v1624 = vpop.trf.xlu0
        %v1625 = vpop.trf.xlu0
        %v1626 = vpop.trf.xlu0
        %v1627 = vrot.slane %v1571, 4
        %v1628 = vsel %vm1231, %v1627, %v1507
        %v1630 = vunpack.c.l.s4 1983009808
        %v1631 = vunpack.c.0.s8 %v1630
        %v1632 = vperm.slane %v1628, %v1631
        %v1633 = vrot.slane %v1603, 4
        %v1634 = vsel %vm1231, %v1633, %v1539
        %v1636 = vunpack.c.l.s4 1983009808
        %v1637 = vunpack.c.0.s8 %v1636
        %v1638 = vperm.slane %v1634, %v1637
        %v1639 = vrot.slane %v1638, 4
        %v1640 = vsel %vm1231, %v1639, %v1632
        %v1642 = vunpack.c.l.s4 1934713408
        %v1643 = vunpack.c.0.s8 %v1642
        %v1644 = vperm.slane %v1640, %v1643
        %v1645 = vrot.slane %v1644, 4
        %v1646 = vsel %vm1231, 0, %v1645
        %v1647 = vrot.slane %v1587, 4
        %v1648 = vsel %vm1231, %v1647, %v1523
        %v1650 = vunpack.c.l.s4 1983009808
        %v1651 = vunpack.c.0.s8 %v1650
        %v1652 = vperm.slane %v1648, %v1651
        %v1653 = vrot.slane %v1619, 4
        %v1654 = vsel %vm1231, %v1653, %v1555
        %v1656 = vunpack.c.l.s4 1983009808
        %v1657 = vunpack.c.0.s8 %v1656
        %v1658 = vperm.slane %v1654, %v1657
        %v1659 = vrot.slane %v1658, 4
        %v1660 = vsel %vm1231, %v1659, %v1652
        %v1662 = vunpack.c.l.s4 1934713408
        %v1663 = vunpack.c.0.s8 %v1662
        %v1664 = vperm.slane %v1660, %v1663
        %v1665 = vrot.slane %v1664, 4
        %v1666 = vsel %vm1231, 0, %v1665
        %v1669 = vpack.i.b16 %v1664, %v1644
        %v1670 = vshrl.u32 %v1644, 16
        %v1671 = vshrl.u32 %v1664, 16
        %v1672 = vpack.i.b16 %v1671, %v1670
        %v1675 = vpack.i.b16 %v1666, %v1646
        %v1676 = vshrl.u32 %v1646, 16
        %v1677 = vshrl.u32 %v1666, 16
        %v1678 = vpack.i.b16 %v1677, %v1676
        %vm1679 = vcmask 64512
        %v1681 = vsel %vm1679, %v1273, 0
        %vm1683 = vcmask 1043456
        %v1685 = vsel %vm1683, %v1669, 0
        %1687 = vmatpush.bf16.msra.mxu0 0
        %1688 = vmatpush.bf16.msra.mxu0 0
        %1689 = vmatpush.bf16.msra.mxu0 0
        %1690 = vmatpush.bf16.msra.mxu0 0
        %1691 = vmatpush.bf16.msra.mxu0 0
        %1692 = vmatpush.bf16.msra.mxu0 0
        %1693 = vmatpush.bf16.msra.mxu0 0
        %1694 = vmatpush.bf16.msra.mxu0 %v1685
        %1695 = vmatmul.bf16.gmra.mxu0 %v1681
        %v1696 = vpop.f32.mrf.mxu0
        %v1697 = vadd.f32 %v1004, %v1696
        %v1698 = vpop.f32.mrf.mxu0
        %1699 = vdwg.mxu0
        %v1701 = vsel %vm1679, %v1276, 0
        %v1704 = vsel %vm1683, %v1672, 0
        %1706 = vmatpush.bf16.msra.mxu0 0
        %1707 = vmatpush.bf16.msra.mxu0 0
        %1708 = vmatpush.bf16.msra.mxu0 0
        %1709 = vmatpush.bf16.msra.mxu0 0
        %1710 = vmatpush.bf16.msra.mxu0 0
        %1711 = vmatpush.bf16.msra.mxu0 0
        %1712 = vmatpush.bf16.msra.mxu0 0
        %1713 = vmatpush.bf16.msra.mxu0 %v1704
        %1714 = vmatmul.bf16.gmra.mxu0 %v1701
        %v1715 = vpop.f32.mrf.mxu0
        %v1716 = vadd.f32 %v1004, %v1715
        %v1717 = vpop.f32.mrf.mxu0
        %1718 = vdwg.mxu0
        %v1720 = vsel %vm1679, %v1279, 0
        %v1723 = vsel %vm1683, %v1675, 0
        %1725 = vmatpush.bf16.msra.mxu0 0
        %1726 = vmatpush.bf16.msra.mxu0 0
        %1727 = vmatpush.bf16.msra.mxu0 0
        %1728 = vmatpush.bf16.msra.mxu0 0
        %1729 = vmatpush.bf16.msra.mxu0 0
        %1730 = vmatpush.bf16.msra.mxu0 0
        %1731 = vmatpush.bf16.msra.mxu0 0
        %1732 = vmatpush.bf16.msra.mxu0 %v1723
        %1733 = vmatmul.bf16.gmra.mxu0 %v1720
        %v1734 = vpop.f32.mrf.mxu0
        %v1735 = vadd.f32 %v1004, %v1734
        %v1736 = vpop.f32.mrf.mxu0
        %1737 = vdwg.mxu0
        %v1739 = vsel %vm1679, %v1282, 0
        %v1742 = vsel %vm1683, %v1678, 0
        %1744 = vmatpush.bf16.msra.mxu0 0
        %1745 = vmatpush.bf16.msra.mxu0 0
        %1746 = vmatpush.bf16.msra.mxu0 0
        %1747 = vmatpush.bf16.msra.mxu0 0
        %1748 = vmatpush.bf16.msra.mxu0 0
        %1749 = vmatpush.bf16.msra.mxu0 0
        %1750 = vmatpush.bf16.msra.mxu0 0
        %1751 = vmatpush.bf16.msra.mxu0 %v1742
        %1752 = vmatmul.bf16.gmra.mxu0 %v1739
        %v1753 = vpop.f32.mrf.mxu0
        %v1754 = vadd.f32 %v1004, %v1753
        %v1755 = vpop.f32.mrf.mxu0
        %1756 = vdwg.mxu0
        %v1757 = vsel %vm1679, %v1697, -inf
        %1758 = vmax.xlane.f32.xlu0 %v1757
        %v1759 = vpop.xlane.xlu0 %1758
        %v1760 = vsel %vm1679, %v1716, -inf
        %1761 = vmax.xlane.f32.xlu0 %v1760
        %v1762 = vpop.xlane.xlu0 %1761
        %v1763 = vsel %vm1679, %v1735, -inf
        %1764 = vmax.xlane.f32.xlu0 %v1763
        %v1765 = vpop.xlane.xlu0 %1764
        %v1766 = vsel %vm1679, %v1754, -inf
        %1767 = vmax.xlane.f32.xlu0 %v1766
        %v1768 = vpop.xlane.xlu0 %1767
        %v1769 = vsub.f32 %v1697, %v1759
        %v1770 = vsub.f32 %v1716, %v1762
        %v1771 = vsub.f32 %v1735, %v1765
        %v1772 = vsub.f32 %v1754, %v1768
        %v1773 = vmul.f32 %v1769, 1.442695
        %v1774 = vpow.pop %v1773
        %v1775 = vmul.f32 %v1770, 1.442695
        %v1776 = vpow.pop %v1775
        %v1777 = vmul.f32 %v1771, 1.442695
        %v1778 = vpow.pop %v1777
        %v1779 = vmul.f32 %v1772, 1.442695
        %v1780 = vpow.pop %v1779
        %v1781 = vsel %vm1679, %v1774, 0.0
        %1782 = vadd.xlane.f32.xlu0 %v1781
        %v1783 = vpop.xlane.xlu0 %1782
        %v1784 = vsel %vm1679, %v1776, 0.0
        %1785 = vadd.xlane.f32.xlu0 %v1784
        %v1786 = vpop.xlane.xlu0 %1785
        %v1787 = vsel %vm1679, %v1778, 0.0
        %1788 = vadd.xlane.f32.xlu0 %v1787
        %v1789 = vpop.xlane.xlu0 %1788
        %v1790 = vsel %vm1679, %v1780, 0.0
        %1791 = vadd.xlane.f32.xlu0 %v1790
        %v1792 = vpop.xlane.xlu0 %1791
        %v1793 = vrcp.pop %v1783
        %v1794 = vrcp.pop %v1786
        %v1795 = vrcp.pop %v1789
        %v1796 = vrcp.pop %v1792
        %v1797 = vmul.f32 %v1774, %v1793
        %v1798 = vmul.f32 %v1776, %v1794
        %v1799 = vmul.f32 %v1778, %v1795
        %v1800 = vmul.f32 %v1780, %v1796
        %v1801 = vpack.c.bf16 %v1797, %v1797
        %v1802 = vpack.c.bf16 %v1798, %v1798
        %v1803 = vpack.c.bf16 %v1799, %v1799
        %v1804 = vpack.c.bf16 %v1800, %v1800
        %1805 = vxpose.xlu0.c.b16.start [1/8] %v1222, 128
        %1806 = vxpose.xlu0.c.b16.cont [2/8] 0, 128
        %1807 = vxpose.xlu0.c.b16.cont [3/8] 0, 128
        %1808 = vxpose.xlu0.c.b16.cont [4/8] 0, 128
        %1809 = vxpose.xlu0.c.b16.cont [5/8] 0, 128
        %1810 = vxpose.xlu0.c.b16.cont [6/8] 0, 128
        %1811 = vxpose.xlu0.c.b16.cont [7/8] 0, 128
        %1812 = vxpose.xlu0.c.b16.end [8/8] 0, 128
        %v1813 = vpop.trf.xlu0
        %v1814 = vpop.trf.xlu0
        %v1815 = vpop.trf.xlu0
        %v1816 = vpop.trf.xlu0
        %v1817 = vpop.trf.xlu0
        %v1818 = vpop.trf.xlu0
        %v1819 = vpop.trf.xlu0
        %v1820 = vpop.trf.xlu0
        %1821 = vxpose.xlu0.c.b16.start [1/8] %v1223, 128
        %1822 = vxpose.xlu0.c.b16.cont [2/8] 0, 128
        %1823 = vxpose.xlu0.c.b16.cont [3/8] 0, 128
        %1824 = vxpose.xlu0.c.b16.cont [4/8] 0, 128
        %1825 = vxpose.xlu0.c.b16.cont [5/8] 0, 128
        %1826 = vxpose.xlu0.c.b16.cont [6/8] 0, 128
        %1827 = vxpose.xlu0.c.b16.cont [7/8] 0, 128
        %1828 = vxpose.xlu0.c.b16.end [8/8] 0, 128
        %v1829 = vpop.trf.xlu0
        %v1830 = vpop.trf.xlu0
        %v1831 = vpop.trf.xlu0
        %v1832 = vpop.trf.xlu0
        %v1833 = vpop.trf.xlu0
        %v1834 = vpop.trf.xlu0
        %v1835 = vpop.trf.xlu0
        %v1836 = vpop.trf.xlu0
        %1837 = vxpose.xlu0.c.b16.start [1/8] %v1224, 128
        %1838 = vxpose.xlu0.c.b16.cont [2/8] 0, 128
        %1839 = vxpose.xlu0.c.b16.cont [3/8] 0, 128
        %1840 = vxpose.xlu0.c.b16.cont [4/8] 0, 128
        %1841 = vxpose.xlu0.c.b16.cont [5/8] 0, 128
        %1842 = vxpose.xlu0.c.b16.cont [6/8] 0, 128
        %1843 = vxpose.xlu0.c.b16.cont [7/8] 0, 128
        %1844 = vxpose.xlu0.c.b16.end [8/8] 0, 128
        %v1845 = vpop.trf.xlu0
        %v1846 = vpop.trf.xlu0
        %v1847 = vpop.trf.xlu0
        %v1848 = vpop.trf.xlu0
        %v1849 = vpop.trf.xlu0
        %v1850 = vpop.trf.xlu0
        %v1851 = vpop.trf.xlu0
        %v1852 = vpop.trf.xlu0
        %1853 = vxpose.xlu0.c.b16.start [1/8] %v1225, 128
        %1854 = vxpose.xlu0.c.b16.cont [2/8] 0, 128
        %1855 = vxpose.xlu0.c.b16.cont [3/8] 0, 128
        %1856 = vxpose.xlu0.c.b16.cont [4/8] 0, 128
        %1857 = vxpose.xlu0.c.b16.cont [5/8] 0, 128
        %1858 = vxpose.xlu0.c.b16.cont [6/8] 0, 128
        %1859 = vxpose.xlu0.c.b16.cont [7/8] 0, 128
        %1860 = vxpose.xlu0.c.b16.end [8/8] 0, 128
        %v1861 = vpop.trf.xlu0
        %v1862 = vpop.trf.xlu0
        %v1863 = vpop.trf.xlu0
        %v1864 = vpop.trf.xlu0
        %v1865 = vpop.trf.xlu0
        %v1866 = vpop.trf.xlu0
        %v1867 = vpop.trf.xlu0
        %v1868 = vpop.trf.xlu0
        %1869 = vxpose.xlu0.c.b16.start [1/8] %v1226, 128
        %1870 = vxpose.xlu0.c.b16.cont [2/8] 0, 128
        %1871 = vxpose.xlu0.c.b16.cont [3/8] 0, 128
        %1872 = vxpose.xlu0.c.b16.cont [4/8] 0, 128
        %1873 = vxpose.xlu0.c.b16.cont [5/8] 0, 128
        %1874 = vxpose.xlu0.c.b16.cont [6/8] 0, 128
        %1875 = vxpose.xlu0.c.b16.cont [7/8] 0, 128
        %1876 = vxpose.xlu0.c.b16.end [8/8] 0, 128
        %v1877 = vpop.trf.xlu0
        %v1878 = vpop.trf.xlu0
        %v1879 = vpop.trf.xlu0
        %v1880 = vpop.trf.xlu0
        %v1881 = vpop.trf.xlu0
        %v1882 = vpop.trf.xlu0
        %v1883 = vpop.trf.xlu0
        %v1884 = vpop.trf.xlu0
        %1885 = vxpose.xlu0.c.b16.start [1/8] %v1227, 128
        %1886 = vxpose.xlu0.c.b16.cont [2/8] 0, 128
        %1887 = vxpose.xlu0.c.b16.cont [3/8] 0, 128
        %1888 = vxpose.xlu0.c.b16.cont [4/8] 0, 128
        %1889 = vxpose.xlu0.c.b16.cont [5/8] 0, 128
        %1890 = vxpose.xlu0.c.b16.cont [6/8] 0, 128
        %1891 = vxpose.xlu0.c.b16.cont [7/8] 0, 128
        %1892 = vxpose.xlu0.c.b16.end [8/8] 0, 128
        %v1893 = vpop.trf.xlu0
        %v1894 = vpop.trf.xlu0
        %v1895 = vpop.trf.xlu0
        %v1896 = vpop.trf.xlu0
        %v1897 = vpop.trf.xlu0
        %v1898 = vpop.trf.xlu0
        %v1899 = vpop.trf.xlu0
        %v1900 = vpop.trf.xlu0
        %1901 = vxpose.xlu0.c.b16.start [1/8] %v1228, 128
        %1902 = vxpose.xlu0.c.b16.cont [2/8] 0, 128
        %1903 = vxpose.xlu0.c.b16.cont [3/8] 0, 128
        %1904 = vxpose.xlu0.c.b16.cont [4/8] 0, 128
        %1905 = vxpose.xlu0.c.b16.cont [5/8] 0, 128
        %1906 = vxpose.xlu0.c.b16.cont [6/8] 0, 128
        %1907 = vxpose.xlu0.c.b16.cont [7/8] 0, 128
        %1908 = vxpose.xlu0.c.b16.end [8/8] 0, 128
        %v1909 = vpop.trf.xlu0
        %v1910 = vpop.trf.xlu0
        %v1911 = vpop.trf.xlu0
        %v1912 = vpop.trf.xlu0
        %v1913 = vpop.trf.xlu0
        %v1914 = vpop.trf.xlu0
        %v1915 = vpop.trf.xlu0
        %v1916 = vpop.trf.xlu0
        %1917 = vxpose.xlu0.c.b16.start [1/8] %v1229, 128
        %1918 = vxpose.xlu0.c.b16.cont [2/8] 0, 128
        %1919 = vxpose.xlu0.c.b16.cont [3/8] 0, 128
        %1920 = vxpose.xlu0.c.b16.cont [4/8] 0, 128
        %1921 = vxpose.xlu0.c.b16.cont [5/8] 0, 128
        %1922 = vxpose.xlu0.c.b16.cont [6/8] 0, 128
        %1923 = vxpose.xlu0.c.b16.cont [7/8] 0, 128
        %1924 = vxpose.xlu0.c.b16.end [8/8] 0, 128
        %v1925 = vpop.trf.xlu0
        %v1926 = vpop.trf.xlu0
        %v1927 = vpop.trf.xlu0
        %v1928 = vpop.trf.xlu0
        %v1929 = vpop.trf.xlu0
        %v1930 = vpop.trf.xlu0
        %v1931 = vpop.trf.xlu0
        %v1932 = vpop.trf.xlu0
        %v1933 = vrot.slane %v1877, 4
        %v1934 = vsel %vm1231, %v1933, %v1813
        %v1936 = vunpack.c.l.s4 1983009808
        %v1937 = vunpack.c.0.s8 %v1936
        %v1938 = vperm.slane %v1934, %v1937
        %v1939 = vrot.slane %v1909, 4
        %v1940 = vsel %vm1231, %v1939, %v1845
        %v1942 = vunpack.c.l.s4 1983009808
        %v1943 = vunpack.c.0.s8 %v1942
        %v1944 = vperm.slane %v1940, %v1943
        %v1945 = vrot.slane %v1944, 4
        %v1946 = vsel %vm1231, %v1945, %v1938
        %v1947 = vrot.slane %v1938, 4
        %v1948 = vsel %vm1231, %v1944, %v1947
        %v1950 = vunpack.c.l.s4 1934713408
        %v1951 = vunpack.c.0.s8 %v1950
        %v1952 = vperm.slane %v1946, %v1951
        %v1954 = vunpack.c.l.s4 1934713408
        %v1955 = vunpack.c.0.s8 %v1954
        %v1956 = vperm.slane %v1948, %v1955
        %v1957 = vrot.slane %v1952, 4
        %v1958 = vsel %vm1231, 0, %v1957
        %v1959 = vrot.slane %v1956, 4
        %v1960 = vsel %vm1231, 0, %v1959
        %v1961 = vrot.slane %v1893, 4
        %v1962 = vsel %vm1231, %v1961, %v1829
        %v1964 = vunpack.c.l.s4 1983009808
        %v1965 = vunpack.c.0.s8 %v1964
        %v1966 = vperm.slane %v1962, %v1965
        %v1967 = vrot.slane %v1925, 4
        %v1968 = vsel %vm1231, %v1967, %v1861
        %v1970 = vunpack.c.l.s4 1983009808
        %v1971 = vunpack.c.0.s8 %v1970
        %v1972 = vperm.slane %v1968, %v1971
        %v1973 = vrot.slane %v1972, 4
        %v1974 = vsel %vm1231, %v1973, %v1966
        %v1975 = vrot.slane %v1966, 4
        %v1976 = vsel %vm1231, %v1972, %v1975
        %v1978 = vunpack.c.l.s4 1934713408
        %v1979 = vunpack.c.0.s8 %v1978
        %v1980 = vperm.slane %v1974, %v1979
        %v1982 = vunpack.c.l.s4 1934713408
        %v1983 = vunpack.c.0.s8 %v1982
        %v1984 = vperm.slane %v1976, %v1983
        %v1985 = vrot.slane %v1980, 4
        %v1986 = vsel %vm1231, 0, %v1985
        %v1987 = vrot.slane %v1984, 4
        %v1988 = vsel %vm1231, 0, %v1987
        %v1991 = vpack.i.b16 %v1980, %v1952
        %v1993 = vshrl.u32 %v1952, 16
        %v1994 = vshrl.u32 %v1980, 16
        %v1995 = vpack.i.b16 %v1994, %v1993
        %v1999 = vpack.i.b16 %v1986, %v1958
        %v2001 = vshrl.u32 %v1958, 16
        %v2002 = vshrl.u32 %v1986, 16
        %v2003 = vpack.i.b16 %v2002, %v2001
        %v2007 = vpack.i.b16 %v1984, %v1956
        %v2009 = vshrl.u32 %v1956, 16
        %v2010 = vshrl.u32 %v1984, 16
        %v2011 = vpack.i.b16 %v2010, %v2009
        %v2015 = vpack.i.b16 %v1988, %v1960
        %v2017 = vshrl.u32 %v1960, 16
        %v2018 = vshrl.u32 %v1988, 16
        %v2019 = vpack.i.b16 %v2018, %v2017
        %2021 = vxpose.xlu0.c.b16.start [1/8] %v1991, 128
        %2022 = vxpose.xlu0.c.b16.cont [2/8] 0, 128
        %2023 = vxpose.xlu0.c.b16.cont [3/8] 0, 128
        %2024 = vxpose.xlu0.c.b16.cont [4/8] 0, 128
        %2025 = vxpose.xlu0.c.b16.cont [5/8] 0, 128
        %2026 = vxpose.xlu0.c.b16.cont [6/8] 0, 128
        %2027 = vxpose.xlu0.c.b16.cont [7/8] 0, 128
        %2028 = vxpose.xlu0.c.b16.end [8/8] 0, 128
        %v2029 = vpop.trf.xlu0
        %v2030 = vpop.trf.xlu0
        %v2031 = vpop.trf.xlu0
        %v2032 = vpop.trf.xlu0
        %v2033 = vpop.trf.xlu0
        %v2034 = vpop.trf.xlu0
        %v2035 = vpop.trf.xlu0
        %v2036 = vpop.trf.xlu0
        %2037 = vxpose.xlu0.c.b16.start [1/8] %v1995, 128
        %2038 = vxpose.xlu0.c.b16.cont [2/8] 0, 128
        %2039 = vxpose.xlu0.c.b16.cont [3/8] 0, 128
        %2040 = vxpose.xlu0.c.b16.cont [4/8] 0, 128
        %2041 = vxpose.xlu0.c.b16.cont [5/8] 0, 128
        %2042 = vxpose.xlu0.c.b16.cont [6/8] 0, 128
        %2043 = vxpose.xlu0.c.b16.cont [7/8] 0, 128
        %2044 = vxpose.xlu0.c.b16.end [8/8] 0, 128
        %v2045 = vpop.trf.xlu0
        %v2046 = vpop.trf.xlu0
        %v2047 = vpop.trf.xlu0
        %v2048 = vpop.trf.xlu0
        %v2049 = vpop.trf.xlu0
        %v2050 = vpop.trf.xlu0
        %v2051 = vpop.trf.xlu0
        %v2052 = vpop.trf.xlu0
        %2053 = vxpose.xlu0.c.b16.start [1/8] %v1999, 128
        %2054 = vxpose.xlu0.c.b16.cont [2/8] 0, 128
        %2055 = vxpose.xlu0.c.b16.cont [3/8] 0, 128
        %2056 = vxpose.xlu0.c.b16.cont [4/8] 0, 128
        %2057 = vxpose.xlu0.c.b16.cont [5/8] 0, 128
        %2058 = vxpose.xlu0.c.b16.cont [6/8] 0, 128
        %2059 = vxpose.xlu0.c.b16.cont [7/8] 0, 128
        %2060 = vxpose.xlu0.c.b16.end [8/8] 0, 128
        %v2061 = vpop.trf.xlu0
        %v2062 = vpop.trf.xlu0
        %v2063 = vpop.trf.xlu0
        %v2064 = vpop.trf.xlu0
        %v2065 = vpop.trf.xlu0
        %v2066 = vpop.trf.xlu0
        %v2067 = vpop.trf.xlu0
        %v2068 = vpop.trf.xlu0
        %2069 = vxpose.xlu0.c.b16.start [1/8] %v2003, 128
        %2070 = vxpose.xlu0.c.b16.cont [2/8] 0, 128
        %2071 = vxpose.xlu0.c.b16.cont [3/8] 0, 128
        %2072 = vxpose.xlu0.c.b16.cont [4/8] 0, 128
        %2073 = vxpose.xlu0.c.b16.cont [5/8] 0, 128
        %2074 = vxpose.xlu0.c.b16.cont [6/8] 0, 128
        %2075 = vxpose.xlu0.c.b16.cont [7/8] 0, 128
        %2076 = vxpose.xlu0.c.b16.end [8/8] 0, 128
        %v2077 = vpop.trf.xlu0
        %v2078 = vpop.trf.xlu0
        %v2079 = vpop.trf.xlu0
        %v2080 = vpop.trf.xlu0
        %v2081 = vpop.trf.xlu0
        %v2082 = vpop.trf.xlu0
        %v2083 = vpop.trf.xlu0
        %v2084 = vpop.trf.xlu0
        %2085 = vxpose.xlu0.c.b16.start [1/8] %v2007, 128
        %2086 = vxpose.xlu0.c.b16.cont [2/8] 0, 128
        %2087 = vxpose.xlu0.c.b16.cont [3/8] 0, 128
        %2088 = vxpose.xlu0.c.b16.cont [4/8] 0, 128
        %2089 = vxpose.xlu0.c.b16.cont [5/8] 0, 128
        %2090 = vxpose.xlu0.c.b16.cont [6/8] 0, 128
        %2091 = vxpose.xlu0.c.b16.cont [7/8] 0, 128
        %2092 = vxpose.xlu0.c.b16.end [8/8] 0, 128
        %v2093 = vpop.trf.xlu0
        %v2094 = vpop.trf.xlu0
        %v2095 = vpop.trf.xlu0
        %v2096 = vpop.trf.xlu0
        %v2097 = vpop.trf.xlu0
        %v2098 = vpop.trf.xlu0
        %v2099 = vpop.trf.xlu0
        %v2100 = vpop.trf.xlu0
        %2101 = vxpose.xlu0.c.b16.start [1/8] %v2011, 128
        %2102 = vxpose.xlu0.c.b16.cont [2/8] 0, 128
        %2103 = vxpose.xlu0.c.b16.cont [3/8] 0, 128
        %2104 = vxpose.xlu0.c.b16.cont [4/8] 0, 128
        %2105 = vxpose.xlu0.c.b16.cont [5/8] 0, 128
        %2106 = vxpose.xlu0.c.b16.cont [6/8] 0, 128
        %2107 = vxpose.xlu0.c.b16.cont [7/8] 0, 128
        %2108 = vxpose.xlu0.c.b16.end [8/8] 0, 128
        %v2109 = vpop.trf.xlu0
        %v2110 = vpop.trf.xlu0
        %v2111 = vpop.trf.xlu0
        %v2112 = vpop.trf.xlu0
        %v2113 = vpop.trf.xlu0
        %v2114 = vpop.trf.xlu0
        %v2115 = vpop.trf.xlu0
        %v2116 = vpop.trf.xlu0
        %2117 = vxpose.xlu0.c.b16.start [1/8] %v2015, 128
        %2118 = vxpose.xlu0.c.b16.cont [2/8] 0, 128
        %2119 = vxpose.xlu0.c.b16.cont [3/8] 0, 128
        %2120 = vxpose.xlu0.c.b16.cont [4/8] 0, 128
        %2121 = vxpose.xlu0.c.b16.cont [5/8] 0, 128
        %2122 = vxpose.xlu0.c.b16.cont [6/8] 0, 128
        %2123 = vxpose.xlu0.c.b16.cont [7/8] 0, 128
        %2124 = vxpose.xlu0.c.b16.end [8/8] 0, 128
        %v2125 = vpop.trf.xlu0
        %v2126 = vpop.trf.xlu0
        %v2127 = vpop.trf.xlu0
        %v2128 = vpop.trf.xlu0
        %v2129 = vpop.trf.xlu0
        %v2130 = vpop.trf.xlu0
        %v2131 = vpop.trf.xlu0
        %v2132 = vpop.trf.xlu0
        %2133 = vxpose.xlu0.c.b16.start [1/8] %v2019, 128
        %2134 = vxpose.xlu0.c.b16.cont [2/8] 0, 128
        %2135 = vxpose.xlu0.c.b16.cont [3/8] 0, 128
        %2136 = vxpose.xlu0.c.b16.cont [4/8] 0, 128
        %2137 = vxpose.xlu0.c.b16.cont [5/8] 0, 128
        %2138 = vxpose.xlu0.c.b16.cont [6/8] 0, 128
        %2139 = vxpose.xlu0.c.b16.cont [7/8] 0, 128
        %2140 = vxpose.xlu0.c.b16.end [8/8] 0, 128
        %v2141 = vpop.trf.xlu0
        %v2142 = vpop.trf.xlu0
        %v2143 = vpop.trf.xlu0
        %v2144 = vpop.trf.xlu0
        %v2145 = vpop.trf.xlu0
        %v2146 = vpop.trf.xlu0
        %v2147 = vpop.trf.xlu0
        %v2148 = vpop.trf.xlu0
        %v2149 = vrot.slane %v2093, 4
        %v2150 = vsel %vm1231, %v2149, %v2029
        %v2152 = vunpack.c.l.s4 1983009808
        %v2153 = vunpack.c.0.s8 %v2152
        %v2154 = vperm.slane %v2150, %v2153
        %v2155 = vrot.slane %v2125, 4
        %v2156 = vsel %vm1231, %v2155, %v2061
        %v2158 = vunpack.c.l.s4 1983009808
        %v2159 = vunpack.c.0.s8 %v2158
        %v2160 = vperm.slane %v2156, %v2159
        %v2161 = vrot.slane %v2160, 4
        %v2162 = vsel %vm1231, %v2161, %v2154
        %v2164 = vunpack.c.l.s4 1934713408
        %v2165 = vunpack.c.0.s8 %v2164
        %v2166 = vperm.slane %v2162, %v2165
        %v2167 = vrot.slane %v2166, 4
        %v2168 = vsel %vm1231, 0, %v2167
        %v2169 = vrot.slane %v2109, 4
        %v2170 = vsel %vm1231, %v2169, %v2045
        %v2172 = vunpack.c.l.s4 1983009808
        %v2173 = vunpack.c.0.s8 %v2172
        %v2174 = vperm.slane %v2170, %v2173
        %v2175 = vrot.slane %v2141, 4
        %v2176 = vsel %vm1231, %v2175, %v2077
        %v2178 = vunpack.c.l.s4 1983009808
        %v2179 = vunpack.c.0.s8 %v2178
        %v2180 = vperm.slane %v2176, %v2179
        %v2181 = vrot.slane %v2180, 4
        %v2182 = vsel %vm1231, %v2181, %v2174
        %v2184 = vunpack.c.l.s4 1934713408
        %v2185 = vunpack.c.0.s8 %v2184
        %v2186 = vperm.slane %v2182, %v2185
        %v2187 = vrot.slane %v2186, 4
        %v2188 = vsel %vm1231, 0, %v2187
        %v2191 = vpack.i.b16 %v2186, %v2166
        %v2192 = vshrl.u32 %v2166, 16
        %v2193 = vshrl.u32 %v2186, 16
        %v2194 = vpack.i.b16 %v2193, %v2192
        %v2197 = vpack.i.b16 %v2188, %v2168
        %v2198 = vshrl.u32 %v2168, 16
        %v2199 = vshrl.u32 %v2188, 16
        %v2200 = vpack.i.b16 %v2199, %v2198
        %v2202 = vsel %vm1679, %v2191, 0
        %v2205 = vsel %vm1679, %v1801, 0
        %2207 = vmatpush.bf16.xpose.msra.mxu0 0
        %2208 = vmatpush.bf16.xpose.msra.mxu0 0
        %2209 = vmatpush.bf16.xpose.msra.mxu0 0
        %2210 = vmatpush.bf16.xpose.msra.mxu0 0
        %2211 = vmatpush.bf16.xpose.msra.mxu0 0
        %2212 = vmatpush.bf16.xpose.msra.mxu0 0
        %2213 = vmatpush.bf16.xpose.msra.mxu0 0
        %2214 = vmatpush.bf16.xpose.msra.mxu0 %v2205
        %2215 = vmatmul.bf16.gmra.mxu0 %v2202
        %v2216 = vpop.f32.mrf.mxu0
        %v2217 = vadd.f32 0.0, %v2216
        %v2218 = vpop.f32.mrf.mxu0
        %2219 = vdwg.mxu0
        %v2221 = vsel %vm1679, %v2194, 0
        %v2224 = vsel %vm1679, %v1802, 0
        %2226 = vmatpush.bf16.xpose.msra.mxu0 0
        %2227 = vmatpush.bf16.xpose.msra.mxu0 0
        %2228 = vmatpush.bf16.xpose.msra.mxu0 0
        %2229 = vmatpush.bf16.xpose.msra.mxu0 0
        %2230 = vmatpush.bf16.xpose.msra.mxu0 0
        %2231 = vmatpush.bf16.xpose.msra.mxu0 0
        %2232 = vmatpush.bf16.xpose.msra.mxu0 0
        %2233 = vmatpush.bf16.xpose.msra.mxu0 %v2224
        %2234 = vmatmul.bf16.gmra.mxu0 %v2221
        %v2235 = vpop.f32.mrf.mxu0
        %v2236 = vadd.f32 0.0, %v2235
        %v2237 = vpop.f32.mrf.mxu0
        %2238 = vdwg.mxu0
        %v2240 = vsel %vm1679, %v2197, 0
        %v2243 = vsel %vm1679, %v1803, 0
        %2245 = vmatpush.bf16.xpose.msra.mxu0 0
        %2246 = vmatpush.bf16.xpose.msra.mxu0 0
        %2247 = vmatpush.bf16.xpose.msra.mxu0 0
        %2248 = vmatpush.bf16.xpose.msra.mxu0 0
        %2249 = vmatpush.bf16.xpose.msra.mxu0 0
        %2250 = vmatpush.bf16.xpose.msra.mxu0 0
        %2251 = vmatpush.bf16.xpose.msra.mxu0 0
        %2252 = vmatpush.bf16.xpose.msra.mxu0 %v2243
        %2253 = vmatmul.bf16.gmra.mxu0 %v2240
        %v2254 = vpop.f32.mrf.mxu0
        %v2255 = vadd.f32 0.0, %v2254
        %v2256 = vpop.f32.mrf.mxu0
        %2257 = vdwg.mxu0
        %v2259 = vsel %vm1679, %v2200, 0
        %v2262 = vsel %vm1679, %v1804, 0
        %2264 = vmatpush.bf16.xpose.msra.mxu0 0
        %2265 = vmatpush.bf16.xpose.msra.mxu0 0
        %2266 = vmatpush.bf16.xpose.msra.mxu0 0
        %2267 = vmatpush.bf16.xpose.msra.mxu0 0
        %2268 = vmatpush.bf16.xpose.msra.mxu0 0
        %2269 = vmatpush.bf16.xpose.msra.mxu0 0
        %2270 = vmatpush.bf16.xpose.msra.mxu0 0
        %2271 = vmatpush.bf16.xpose.msra.mxu0 %v2262
        %2272 = vmatmul.bf16.gmra.mxu0 %v2259
        %v2273 = vpop.f32.mrf.mxu0
        %v2274 = vadd.f32 0.0, %v2273
        %v2275 = vpop.f32.mrf.mxu0
        %2276 = vdwg.mxu0
        %2277 = vxpose.xlu0.b32.start [1/16] %v2217, 128
        %2278 = vxpose.xlu0.b32.cont [2/16] 0.0, 128
        %2279 = vxpose.xlu0.b32.cont [3/16] 0.0, 128
        %2280 = vxpose.xlu0.b32.cont [4/16] 0.0, 128
        %2281 = vxpose.xlu0.b32.cont [5/16] 0.0, 128
        %2282 = vxpose.xlu0.b32.cont [6/16] 0.0, 128
        %2283 = vxpose.xlu0.b32.cont [7/16] 0.0, 128
        %2284 = vxpose.xlu0.b32.cont [8/16] 0.0, 128
        %2285 = vxpose.xlu0.b32.cont [9/16] 0.0, 128
        %2286 = vxpose.xlu0.b32.cont [10/16] 0.0, 128
        %2287 = vxpose.xlu0.b32.cont [11/16] 0.0, 128
        %2288 = vxpose.xlu0.b32.cont [12/16] 0.0, 128
        %2289 = vxpose.xlu0.b32.cont [13/16] 0.0, 128
        %2290 = vxpose.xlu0.b32.cont [14/16] 0.0, 128
        %2291 = vxpose.xlu0.b32.cont [15/16] 0.0, 128
        %2292 = vxpose.xlu0.b32.end [16/16] 0.0, 128
        %v2293 = vpop.trf.xlu0
        %v2294 = vpop.trf.xlu0
        %v2295 = vpop.trf.xlu0
        %v2296 = vpop.trf.xlu0
        %v2297 = vpop.trf.xlu0
        %v2298 = vpop.trf.xlu0
        %v2299 = vpop.trf.xlu0
        %v2300 = vpop.trf.xlu0
        %v2301 = vpop.trf.xlu0
        %v2302 = vpop.trf.xlu0
        %v2303 = vpop.trf.xlu0
        %v2304 = vpop.trf.xlu0
        %v2305 = vpop.trf.xlu0
        %v2306 = vpop.trf.xlu0
        %v2307 = vpop.trf.xlu0
        %v2308 = vpop.trf.xlu0
        %2309 = vxpose.xlu0.b32.start [1/16] %v2236, 128
        %2310 = vxpose.xlu0.b32.cont [2/16] 0.0, 128
        %2311 = vxpose.xlu0.b32.cont [3/16] 0.0, 128
        %2312 = vxpose.xlu0.b32.cont [4/16] 0.0, 128
        %2313 = vxpose.xlu0.b32.cont [5/16] 0.0, 128
        %2314 = vxpose.xlu0.b32.cont [6/16] 0.0, 128
        %2315 = vxpose.xlu0.b32.cont [7/16] 0.0, 128
        %2316 = vxpose.xlu0.b32.cont [8/16] 0.0, 128
        %2317 = vxpose.xlu0.b32.cont [9/16] 0.0, 128
        %2318 = vxpose.xlu0.b32.cont [10/16] 0.0, 128
        %2319 = vxpose.xlu0.b32.cont [11/16] 0.0, 128
        %2320 = vxpose.xlu0.b32.cont [12/16] 0.0, 128
        %2321 = vxpose.xlu0.b32.cont [13/16] 0.0, 128
        %2322 = vxpose.xlu0.b32.cont [14/16] 0.0, 128
        %2323 = vxpose.xlu0.b32.cont [15/16] 0.0, 128
        %2324 = vxpose.xlu0.b32.end [16/16] 0.0, 128
        %v2325 = vpop.trf.xlu0
        %v2326 = vpop.trf.xlu0
        %v2327 = vpop.trf.xlu0
        %v2328 = vpop.trf.xlu0
        %v2329 = vpop.trf.xlu0
        %v2330 = vpop.trf.xlu0
        %v2331 = vpop.trf.xlu0
        %v2332 = vpop.trf.xlu0
        %v2333 = vpop.trf.xlu0
        %v2334 = vpop.trf.xlu0
        %v2335 = vpop.trf.xlu0
        %v2336 = vpop.trf.xlu0
        %v2337 = vpop.trf.xlu0
        %v2338 = vpop.trf.xlu0
        %v2339 = vpop.trf.xlu0
        %v2340 = vpop.trf.xlu0
        %2341 = vxpose.xlu0.b32.start [1/16] %v2255, 128
        %2342 = vxpose.xlu0.b32.cont [2/16] 0.0, 128
        %2343 = vxpose.xlu0.b32.cont [3/16] 0.0, 128
        %2344 = vxpose.xlu0.b32.cont [4/16] 0.0, 128
        %2345 = vxpose.xlu0.b32.cont [5/16] 0.0, 128
        %2346 = vxpose.xlu0.b32.cont [6/16] 0.0, 128
        %2347 = vxpose.xlu0.b32.cont [7/16] 0.0, 128
        %2348 = vxpose.xlu0.b32.cont [8/16] 0.0, 128
        %2349 = vxpose.xlu0.b32.cont [9/16] 0.0, 128
        %2350 = vxpose.xlu0.b32.cont [10/16] 0.0, 128
        %2351 = vxpose.xlu0.b32.cont [11/16] 0.0, 128
        %2352 = vxpose.xlu0.b32.cont [12/16] 0.0, 128
        %2353 = vxpose.xlu0.b32.cont [13/16] 0.0, 128
        %2354 = vxpose.xlu0.b32.cont [14/16] 0.0, 128
        %2355 = vxpose.xlu0.b32.cont [15/16] 0.0, 128
        %2356 = vxpose.xlu0.b32.end [16/16] 0.0, 128
        %v2357 = vpop.trf.xlu0
        %v2358 = vpop.trf.xlu0
        %v2359 = vpop.trf.xlu0
        %v2360 = vpop.trf.xlu0
        %v2361 = vpop.trf.xlu0
        %v2362 = vpop.trf.xlu0
        %v2363 = vpop.trf.xlu0
        %v2364 = vpop.trf.xlu0
        %v2365 = vpop.trf.xlu0
        %v2366 = vpop.trf.xlu0
        %v2367 = vpop.trf.xlu0
        %v2368 = vpop.trf.xlu0
        %v2369 = vpop.trf.xlu0
        %v2370 = vpop.trf.xlu0
        %v2371 = vpop.trf.xlu0
        %v2372 = vpop.trf.xlu0
        %2373 = vxpose.xlu0.b32.start [1/16] %v2274, 128
        %2374 = vxpose.xlu0.b32.cont [2/16] 0.0, 128
        %2375 = vxpose.xlu0.b32.cont [3/16] 0.0, 128
        %2376 = vxpose.xlu0.b32.cont [4/16] 0.0, 128
        %2377 = vxpose.xlu0.b32.cont [5/16] 0.0, 128
        %2378 = vxpose.xlu0.b32.cont [6/16] 0.0, 128
        %2379 = vxpose.xlu0.b32.cont [7/16] 0.0, 128
        %2380 = vxpose.xlu0.b32.cont [8/16] 0.0, 128
        %2381 = vxpose.xlu0.b32.cont [9/16] 0.0, 128
        %2382 = vxpose.xlu0.b32.cont [10/16] 0.0, 128
        %2383 = vxpose.xlu0.b32.cont [11/16] 0.0, 128
        %2384 = vxpose.xlu0.b32.cont [12/16] 0.0, 128
        %2385 = vxpose.xlu0.b32.cont [13/16] 0.0, 128
        %2386 = vxpose.xlu0.b32.cont [14/16] 0.0, 128
        %2387 = vxpose.xlu0.b32.cont [15/16] 0.0, 128
        %2388 = vxpose.xlu0.b32.end [16/16] 0.0, 128
        %v2389 = vpop.trf.xlu0
        %v2390 = vpop.trf.xlu0
        %v2391 = vpop.trf.xlu0
        %v2392 = vpop.trf.xlu0
        %v2393 = vpop.trf.xlu0
        %v2394 = vpop.trf.xlu0
        %v2395 = vpop.trf.xlu0
        %v2396 = vpop.trf.xlu0
        %v2397 = vpop.trf.xlu0
        %v2398 = vpop.trf.xlu0
        %v2399 = vpop.trf.xlu0
        %v2400 = vpop.trf.xlu0
        %v2401 = vpop.trf.xlu0
        %v2402 = vpop.trf.xlu0
        %v2403 = vpop.trf.xlu0
        %v2404 = vpop.trf.xlu0
        %v2405 = vrot.slane %v2357, 4
        %v2406 = vsel %vm1016, %v2405, %v2293
        %v2407 = vrot.slane %v2293, 4
        %v2408 = vsel %vm1016, %v2357, %v2407
        %v2410 = vunpack.c.l.s4 1983009808
        %v2411 = vunpack.c.0.s8 %v2410
        %v2412 = vperm.slane %v2406, %v2411
        %v2414 = vunpack.c.l.s4 1983009808
        %v2415 = vunpack.c.0.s8 %v2414
        %v2416 = vperm.slane %v2408, %v2415
        %v2417 = vrot.slane %v2389, 4
        %v2418 = vsel %vm1016, %v2417, %v2325
        %v2419 = vrot.slane %v2325, 4
        %v2420 = vsel %vm1016, %v2389, %v2419
        %v2422 = vunpack.c.l.s4 1983009808
        %v2423 = vunpack.c.0.s8 %v2422
        %v2424 = vperm.slane %v2418, %v2423
        %v2426 = vunpack.c.l.s4 1983009808
        %v2427 = vunpack.c.0.s8 %v2426
        %v2428 = vperm.slane %v2420, %v2427
        %v2429 = vrot.slane %v2424, 4
        %v2430 = vsel %vm1016, %v2429, %v2412
        %v2431 = vrot.slane %v2412, 4
        %v2432 = vsel %vm1016, %v2424, %v2431
        %v2434 = vunpack.c.l.s4 1934713408
        %v2435 = vunpack.c.0.s8 %v2434
        %v2436 = vperm.slane %v2430, %v2435
        %v2438 = vunpack.c.l.s4 1934713408
        %v2439 = vunpack.c.0.s8 %v2438
        %v2440 = vperm.slane %v2432, %v2439
        %v2441 = vrot.slane %v2428, 4
        %v2442 = vsel %vm1016, %v2441, %v2416
        %v2443 = vrot.slane %v2416, 4
        %v2444 = vsel %vm1016, %v2428, %v2443
        %v2446 = vunpack.c.l.s4 1934713408
        %v2447 = vunpack.c.0.s8 %v2446
        %v2448 = vperm.slane %v2442, %v2447
        %v2450 = vunpack.c.l.s4 1934713408
        %v2451 = vunpack.c.0.s8 %v2450
        %v2452 = vperm.slane %v2444, %v2451
        %v2453 = vrot.slane %v2436, 4
        %v2454 = vsel %vm1016, 0.0, %v2453
        %v2455 = vrot.slane %v2440, 4
        %v2456 = vsel %vm1016, 0.0, %v2455
        %v2457 = vrot.slane %v2448, 4
        %v2458 = vsel %vm1016, 0.0, %v2457
        %v2459 = vrot.slane %v2452, 4
        %v2460 = vsel %vm1016, 0.0, %v2459
        %v2461 = vsel %vm1016, %v2455, %v2436
        %v2463 = vunpack.c.l.s4 1983009808
        %v2464 = vunpack.c.0.s8 %v2463
        %v2465 = vperm.slane %v2461, %v2464
        %v2466 = vrot.slane %v2456, 4
        %v2467 = vsel %vm1016, %v2466, %v2454
        %v2469 = vunpack.c.l.s4 1983009808
        %v2470 = vunpack.c.0.s8 %v2469
        %v2471 = vperm.slane %v2467, %v2470
        %v2472 = vsel %vm1016, %v2459, %v2448
        %v2474 = vunpack.c.l.s4 1983009808
        %v2475 = vunpack.c.0.s8 %v2474
        %v2476 = vperm.slane %v2472, %v2475
        %v2477 = vrot.slane %v2460, 4
        %v2478 = vsel %vm1016, %v2477, %v2458
        %v2480 = vunpack.c.l.s4 1983009808
        %v2481 = vunpack.c.0.s8 %v2480
        %v2482 = vperm.slane %v2478, %v2481
        %v2483 = vrot.slane %v2471, 4
        %v2484 = vsel %vm1016, %v2483, %v2465
        %v2485 = vrot.slane %v2465, 4
        %v2486 = vsel %vm1016, %v2471, %v2485
        %v2488 = vunpack.c.l.s4 1934713408
        %v2489 = vunpack.c.0.s8 %v2488
        %v2490 = vperm.slane %v2484, %v2489
        %v2492 = vunpack.c.l.s4 1934713408
        %v2493 = vunpack.c.0.s8 %v2492
        %v2494 = vperm.slane %v2486, %v2493
        %v2495 = vrot.slane %v2482, 4
        %v2496 = vsel %vm1016, %v2495, %v2476
        %v2497 = vrot.slane %v2476, 4
        %v2498 = vsel %vm1016, %v2482, %v2497
        %v2500 = vunpack.c.l.s4 1934713408
        %v2501 = vunpack.c.0.s8 %v2500
        %v2502 = vperm.slane %v2496, %v2501
        %v2504 = vunpack.c.l.s4 1934713408
        %v2505 = vunpack.c.0.s8 %v2504
        %v2506 = vperm.slane %v2498, %v2505
        %v2507 = vrot.slane %v2502, 4
        %v2508 = vsel %vm1016, %v2507, %v2490
        %v2509 = vrot.slane %v2490, 4
        %v2510 = vsel %vm1016, %v2502, %v2509
        %v2511 = vrot.slane %v2506, 4
        %v2512 = vsel %vm1016, %v2511, %v2494
        %v2513 = vrot.slane %v2494, 4
        %v2514 = vsel %vm1016, %v2506, %v2513
        %2516 = vrot.lane.b32.xlu0 %v2510, 8
        %v2517 = vpop.permute.xlu0 %2516
        %2520 = vrot.lane.b32.xlu0 %v2512, 16
        %v2521 = vpop.permute.xlu0 %2520
        %2524 = vrot.lane.b32.xlu0 %v2514, 24
        %v2525 = vpop.permute.xlu0 %2524
        %v2527 = vsel %vm1679, %v2508, %v2517
        %vm2528 = vcmask 130048
        %v2529 = vsel %vm2528, %v2527, %v2521
        %vm2530 = vcmask 195584
        %v2531 = vsel %vm2530, %v2529, %v2525
        %v2532 = vpack.c.bf16 %v2531, %v2531
        %v2533 = vld [vmem:[%s9] sm:$0xf]
        %v2534 = vld [vmem:[%s9 + $0x4] sm:$0xf]
        %v2535 = vld [vmem:[%s9 + $0x8] sm:$0xf]
        %v2536 = vld [vmem:[%s9 + $0xc] sm:$0xf]
        %v2537 = vld [vmem:[%s10] sm:$0x1]
        %v2539 = vperm.slane %v2537, 0
        %v2545 = vunpack.c.l.b16 %v2533
        %v2546 = vunpack.c.l.b16 %v2534
        %v2547 = vunpack.c.l.b16 %v2535
        %v2548 = vunpack.c.l.b16 %v2536
        %v2549 = vpack.c.b16 %v2546, %v2545
        %v2550 = vpack.c.b16 %v2548, %v2547
        %v2552 = vsel %vm929, %v2532, 0
        %v2555 = vsel %vm929, %v2549, 0
        %v2558 = vsel %vm929, %v2550, 0
        %2560 = vmatpush.bf16.xpose.msra.mxu0 0
        %2561 = vmatpush.bf16.xpose.msra.mxu0 0
        %2562 = vmatpush.bf16.xpose.msra.mxu0 0
        %2563 = vmatpush.bf16.xpose.msra.mxu0 0
        %2564 = vmatpush.bf16.xpose.msra.mxu0 0
        %2565 = vmatpush.bf16.xpose.msra.mxu0 0
        %2566 = vmatpush.bf16.xpose.msra.mxu0 %v2558
        %2567 = vmatpush.bf16.xpose.msra.mxu0 %v2555
        %2568 = vmatmul.bf16.gmra.mxu0 %v2552
        %v2569 = vpop.f32.mrf.mxu0
        %v2570 = vadd.f32 %v2539, %v2569
        %v2571 = vpop.f32.mrf.mxu0
        %2572 = vdwg.mxu0
        %v2573 = vadd.f32 %v2570, %v895
        %v2574 = vsel %vm929, %v2573, 0.0
        %2575 = vadd.xlane.f32.xlu0 %v2574
        %v2576 = vpop.xlane.xlu0 %2575
        %v2577 = vrcp.pop 32.0
        %v2578 = vmul.f32 32.0, %v2577
        %v2579 = vsub.f32 1.0, %v2578
        %v2580 = vmul.f32 %v2577, %v2579
        %v2581 = vadd.f32 %v2577, %v2580
        %vm2582 = vweird.f32 %v2577
        %v2583 = vsel %vm2582, %v2577, %v2581
        %v2584 = vmul.f32 %v2576, %v2583
        %v2585 = vsub.f32 %v2573, %v2584
        %v2586 = vmul.f32 %v2585, %v2585
        %v2587 = vsel %vm929, %v2586, 0.0
        %2588 = vadd.xlane.f32.xlu0 %v2587
        %v2589 = vpop.xlane.xlu0 %2588
        %v2590 = vmul.f32 %v2589, %v2583
        %v2591 = vadd.f32 %v2590, 1e-05
        %v2592 = vrsqrt.pop %v2591
        %v2593 = vmul.f32 %v2592, %v2591
        %v2594 = vmul.f32 %v2593, %v2592
        %v2595 = vmul.f32 0.5, %v2594
        %v2596 = vsub.f32 1.5, %v2595
        %v2597 = vmul.f32 %v2592, %v2596
        %vm2598 = vweird.f32 %v2591
        %vm2599 = vweird.f32 %v2592
        %vm2600 = vmor %vm2598, %vm2599
        %v2601 = vsel %vm2600, %v2592, %v2597
        %v2602 = vmul.f32 %v2585, %v2601
        %v2603 = vld [vmem:[%s11] sm:$0x1]
        %v2605 = vperm.slane %v2603, 0
        %v2607 = vmul.f32 %v2602, %v2605
        %v2608 = vld [vmem:[%s12] sm:$0x1]
        %v2610 = vperm.slane %v2608, 0
        %v2612 = vadd.f32 %v2607, %v2610
        %v2613 = vpack.c.bf16 %v892, %v892
        %v2614 = vld [vmem:[%s15] sm:$0xf]
        %v2615 = vld [vmem:[%s15 + $0x4] sm:$0xf]
        %v2616 = vld [vmem:[%s15 + $0x8] sm:$0xf]
        %v2617 = vld [vmem:[%s15 + $0xc] sm:$0xf]
        %v2618 = vld [vmem:[%s15 + $0x10] sm:$0xf]
        %v2619 = vld [vmem:[%s15 + $0x14] sm:$0xf]
        %v2620 = vld [vmem:[%s15 + $0x18] sm:$0xf]
        %v2621 = vld [vmem:[%s15 + $0x1c] sm:$0xf]
        %v2622 = vld [vmem:[%s16] sm:$0x1]
        %v2624 = vperm.slane %v2622, 0
        %v2634 = vunpack.c.l.b16 %v2614
        %v2635 = vunpack.c.l.b16 %v2615
        %v2636 = vunpack.c.l.b16 %v2616
        %v2637 = vunpack.c.l.b16 %v2617
        %v2638 = vunpack.c.l.b16 %v2618
        %v2639 = vunpack.c.l.b16 %v2619
        %v2640 = vunpack.c.l.b16 %v2620
        %v2641 = vunpack.c.l.b16 %v2621
        %v2642 = vpack.c.b16 %v2635, %v2634
        %v2643 = vpack.c.b16 %v2637, %v2636
        %v2644 = vpack.c.b16 %v2639, %v2638
        %v2645 = vpack.c.b16 %v2641, %v2640
        %v2647 = vsel %vm929, %v2613, 0
        %v2650 = vsel %vm929, %v2642, 0
        %v2653 = vsel %vm929, %v2643, 0
        %v2656 = vsel %vm929, %v2644, 0
        %v2659 = vsel %vm929, %v2645, 0
        %2661 = vmatpush.bf16.xpose.msra.mxu0 0
        %2662 = vmatpush.bf16.xpose.msra.mxu0 0
        %2663 = vmatpush.bf16.xpose.msra.mxu0 0
        %2664 = vmatpush.bf16.xpose.msra.mxu0 0
        %2665 = vmatpush.bf16.xpose.msra.mxu0 %v2659
        %2666 = vmatpush.bf16.xpose.msra.mxu0 %v2656
        %2667 = vmatpush.bf16.xpose.msra.mxu0 %v2653
        %2668 = vmatpush.bf16.xpose.msra.mxu0 %v2650
        %2669 = vmatmul.bf16.gmra.mxu0 %v2647
        %v2670 = vpop.f32.mrf.mxu0
        %v2671 = vadd.f32 %v2624, %v2670
        %v2672 = vpop.f32.mrf.mxu0
        %2673 = vdwg.mxu0
        %v2674 = vpack.c.bf16 %v2612, %v2612
        %v2675 = vld [vmem:[%s13] sm:$0xf]
        %v2676 = vld [vmem:[%s13 + $0x4] sm:$0xf]
        %v2677 = vld [vmem:[%s13 + $0x8] sm:$0xf]
        %v2678 = vld [vmem:[%s13 + $0xc] sm:$0xf]
        %v2679 = vld [vmem:[%s14] sm:$0x1]
        %v2681 = vperm.slane %v2679, 0
        %v2687 = vunpack.c.l.b16 %v2675
        %v2688 = vunpack.c.l.b16 %v2676
        %v2689 = vunpack.c.l.b16 %v2677
        %v2690 = vunpack.c.l.b16 %v2678
        %v2691 = vpack.c.b16 %v2688, %v2687
        %v2692 = vpack.c.b16 %v2690, %v2689
        %v2694 = vsel %vm929, %v2674, 0
        %v2697 = vsel %vm929, %v2691, 0
        %v2700 = vsel %vm929, %v2692, 0
        %2702 = vmatpush.bf16.xpose.msra.mxu0 0
        %2703 = vmatpush.bf16.xpose.msra.mxu0 0
        %2704 = vmatpush.bf16.xpose.msra.mxu0 0
        %2705 = vmatpush.bf16.xpose.msra.mxu0 0
        %2706 = vmatpush.bf16.xpose.msra.mxu0 0
        %2707 = vmatpush.bf16.xpose.msra.mxu0 0
        %2708 = vmatpush.bf16.xpose.msra.mxu0 %v2700
        %2709 = vmatpush.bf16.xpose.msra.mxu0 %v2697
        %2710 = vmatmul.bf16.gmra.mxu0 %v2694
        %v2711 = vpop.f32.mrf.mxu0
        %v2712 = vadd.f32 %v2681, %v2711
        %v2713 = vpop.f32.mrf.mxu0
        %2714 = vdwg.mxu0
        %v2715 = vld [vmem:[%s889] sm:$0x1]
        %2717 = vrot.lane.b32.xlu0 %v2712, 120
        %v2718 = vpop.permute.xlu0 %2717
        %2720 = vrot.lane.b32.xlu0 %v2712, 112
        %v2721 = vpop.permute.xlu0 %2720
        %2723 = vrot.lane.b32.xlu0 %v2712, 104
        %v2724 = vpop.permute.xlu0 %2723
        %v2726 = vrot.slane %v2721, 4
        %v2727 = vsel %vm1016, %v2726, %v2712
        %v2728 = vrot.slane %v2712, 4
        %v2729 = vsel %vm1016, %v2721, %v2728
        %v2731 = vunpack.c.l.s4 1983009808
        %v2732 = vunpack.c.0.s8 %v2731
        %v2733 = vperm.slane %v2727, %v2732
        %v2735 = vunpack.c.l.s4 1983009808
        %v2736 = vunpack.c.0.s8 %v2735
        %v2737 = vperm.slane %v2729, %v2736
        %v2738 = vrot.slane %v2724, 4
        %v2739 = vsel %vm1016, %v2738, %v2718
        %v2740 = vrot.slane %v2718, 4
        %v2741 = vsel %vm1016, %v2724, %v2740
        %v2743 = vunpack.c.l.s4 1983009808
        %v2744 = vunpack.c.0.s8 %v2743
        %v2745 = vperm.slane %v2739, %v2744
        %v2747 = vunpack.c.l.s4 1983009808
        %v2748 = vunpack.c.0.s8 %v2747
        %v2749 = vperm.slane %v2741, %v2748
        %v2750 = vrot.slane %v2745, 4
        %v2751 = vsel %vm1016, %v2750, %v2733
        %v2752 = vrot.slane %v2733, 4
        %v2753 = vsel %vm1016, %v2745, %v2752
        %v2755 = vunpack.c.l.s4 1934713408
        %v2756 = vunpack.c.0.s8 %v2755
        %v2757 = vperm.slane %v2751, %v2756
        %v2759 = vunpack.c.l.s4 1934713408
        %v2760 = vunpack.c.0.s8 %v2759
        %v2761 = vperm.slane %v2753, %v2760
        %v2762 = vrot.slane %v2749, 4
        %v2763 = vsel %vm1016, %v2762, %v2737
        %v2764 = vrot.slane %v2737, 4
        %v2765 = vsel %vm1016, %v2749, %v2764
        %v2767 = vunpack.c.l.s4 1934713408
        %v2768 = vunpack.c.0.s8 %v2767
        %v2769 = vperm.slane %v2763, %v2768
        %v2771 = vunpack.c.l.s4 1934713408
        %v2772 = vunpack.c.0.s8 %v2771
        %v2773 = vperm.slane %v2765, %v2772
        %v2774 = vrot.slane %v2757, 4
        %v2775 = vsel %vm1016, 0.0, %v2774
        %v2776 = vrot.slane %v2761, 4
        %v2777 = vsel %vm1016, 0.0, %v2776
        %v2778 = vrot.slane %v2769, 4
        %v2779 = vsel %vm1016, 0.0, %v2778
        %v2780 = vrot.slane %v2773, 4
        %v2781 = vsel %vm1016, 0.0, %v2780
        %v2782 = vpack.c.bf16 %v2757, %v2757
        %v2783 = vpack.c.bf16 %v2775, %v2775
        %v2784 = vpack.c.bf16 %v2761, %v2761
        %v2785 = vpack.c.bf16 %v2777, %v2777
        %v2786 = vpack.c.bf16 %v2769, %v2769
        %v2787 = vpack.c.bf16 %v2779, %v2779
        %v2788 = vpack.c.bf16 %v2773, %v2773
        %v2789 = vpack.c.bf16 %v2781, %v2781
        %2791 = vrot.lane.b32.xlu0 %v2671, 120
        %v2792 = vpop.permute.xlu0 %2791
        %2794 = vrot.lane.b32.xlu0 %v2671, 112
        %v2795 = vpop.permute.xlu0 %2794
        %2797 = vrot.lane.b32.xlu0 %v2671, 104
        %v2798 = vpop.permute.xlu0 %2797
        %v2800 = vrot.slane %v2795, 4
        %v2801 = vsel %vm1016, %v2800, %v2671
        %v2802 = vrot.slane %v2671, 4
        %v2803 = vsel %vm1016, %v2795, %v2802
        %v2805 = vunpack.c.l.s4 1983009808
        %v2806 = vunpack.c.0.s8 %v2805
        %v2807 = vperm.slane %v2801, %v2806
        %v2809 = vunpack.c.l.s4 1983009808
        %v2810 = vunpack.c.0.s8 %v2809
        %v2811 = vperm.slane %v2803, %v2810
        %v2812 = vrot.slane %v2798, 4
        %v2813 = vsel %vm1016, %v2812, %v2792
        %v2814 = vrot.slane %v2792, 4
        %v2815 = vsel %vm1016, %v2798, %v2814
        %v2817 = vunpack.c.l.s4 1983009808
        %v2818 = vunpack.c.0.s8 %v2817
        %v2819 = vperm.slane %v2813, %v2818
        %v2821 = vunpack.c.l.s4 1983009808
        %v2822 = vunpack.c.0.s8 %v2821
        %v2823 = vperm.slane %v2815, %v2822
        %v2824 = vrot.slane %v2819, 4
        %v2825 = vsel %vm1016, %v2824, %v2807
        %v2826 = vrot.slane %v2807, 4
        %v2827 = vsel %vm1016, %v2819, %v2826
        %v2829 = vunpack.c.l.s4 1934713408
        %v2830 = vunpack.c.0.s8 %v2829
        %v2831 = vperm.slane %v2825, %v2830
        %v2833 = vunpack.c.l.s4 1934713408
        %v2834 = vunpack.c.0.s8 %v2833
        %v2835 = vperm.slane %v2827, %v2834
        %v2836 = vrot.slane %v2823, 4
        %v2837 = vsel %vm1016, %v2836, %v2811
        %v2838 = vrot.slane %v2811, 4
        %v2839 = vsel %vm1016, %v2823, %v2838
        %v2841 = vunpack.c.l.s4 1934713408
        %v2842 = vunpack.c.0.s8 %v2841
        %v2843 = vperm.slane %v2837, %v2842
        %v2845 = vunpack.c.l.s4 1934713408
        %v2846 = vunpack.c.0.s8 %v2845
        %v2847 = vperm.slane %v2839, %v2846
        %v2848 = vrot.slane %v2831, 4
        %v2849 = vsel %vm1016, 0.0, %v2848
        %v2850 = vrot.slane %v2835, 4
        %v2851 = vsel %vm1016, 0.0, %v2850
        %v2852 = vrot.slane %v2843, 4
        %v2853 = vsel %vm1016, 0.0, %v2852
        %v2854 = vrot.slane %v2847, 4
        %v2855 = vsel %vm1016, 0.0, %v2854
        %v2856 = vpack.c.bf16 %v2831, %v2831
        %v2857 = vpack.c.bf16 %v2849, %v2849
        %v2858 = vpack.c.bf16 %v2835, %v2835
        %v2859 = vpack.c.bf16 %v2851, %v2851
        %v2860 = vpack.c.bf16 %v2843, %v2843
        %v2861 = vpack.c.bf16 %v2853, %v2853
        %v2862 = vpack.c.bf16 %v2847, %v2847
        %v2863 = vpack.c.bf16 %v2855, %v2855
        %2864 = vrot.lane.b32.xlu0 %v2671, 96
        %v2865 = vpop.permute.xlu0 %2864
        %2866 = vrot.lane.b32.xlu0 %v2792, 96
        %v2867 = vpop.permute.xlu0 %2866
        %2868 = vrot.lane.b32.xlu0 %v2795, 96
        %v2869 = vpop.permute.xlu0 %2868
        %2870 = vrot.lane.b32.xlu0 %v2798, 96
        %v2871 = vpop.permute.xlu0 %2870
        %v2876 = vrot.slane %v2869, 4
        %v2877 = vsel %vm1016, %v2876, %v2865
        %v2878 = vrot.slane %v2865, 4
        %v2879 = vsel %vm1016, %v2869, %v2878
        %v2881 = vunpack.c.l.s4 1983009808
        %v2882 = vunpack.c.0.s8 %v2881
        %v2883 = vperm.slane %v2877, %v2882
        %v2885 = vunpack.c.l.s4 1983009808
        %v2886 = vunpack.c.0.s8 %v2885
        %v2887 = vperm.slane %v2879, %v2886
        %v2888 = vrot.slane %v2871, 4
        %v2889 = vsel %vm1016, %v2888, %v2867
        %v2890 = vrot.slane %v2867, 4
        %v2891 = vsel %vm1016, %v2871, %v2890
        %v2893 = vunpack.c.l.s4 1983009808
        %v2894 = vunpack.c.0.s8 %v2893
        %v2895 = vperm.slane %v2889, %v2894
        %v2897 = vunpack.c.l.s4 1983009808
        %v2898 = vunpack.c.0.s8 %v2897
        %v2899 = vperm.slane %v2891, %v2898
        %v2900 = vrot.slane %v2895, 4
        %v2901 = vsel %vm1016, %v2900, %v2883
        %v2902 = vrot.slane %v2883, 4
        %v2903 = vsel %vm1016, %v2895, %v2902
        %v2905 = vunpack.c.l.s4 1934713408
        %v2906 = vunpack.c.0.s8 %v2905
        %v2907 = vperm.slane %v2901, %v2906
        %v2909 = vunpack.c.l.s4 1934713408
        %v2910 = vunpack.c.0.s8 %v2909
        %v2911 = vperm.slane %v2903, %v2910
        %v2912 = vrot.slane %v2899, 4
        %v2913 = vsel %vm1016, %v2912, %v2887
        %v2914 = vrot.slane %v2887, 4
        %v2915 = vsel %vm1016, %v2899, %v2914
        %v2917 = vunpack.c.l.s4 1934713408
        %v2918 = vunpack.c.0.s8 %v2917
        %v2919 = vperm.slane %v2913, %v2918
        %v2921 = vunpack.c.l.s4 1934713408
        %v2922 = vunpack.c.0.s8 %v2921
        %v2923 = vperm.slane %v2915, %v2922
        %v2924 = vrot.slane %v2907, 4
        %v2925 = vsel %vm1016, 0.0, %v2924
        %v2926 = vrot.slane %v2911, 4
        %v2927 = vsel %vm1016, 0.0, %v2926
        %v2928 = vrot.slane %v2919, 4
        %v2929 = vsel %vm1016, 0.0, %v2928
        %v2930 = vrot.slane %v2923, 4
        %v2931 = vsel %vm1016, 0.0, %v2930
        %v2932 = vpack.c.bf16 %v2907, %v2907
        %v2933 = vpack.c.bf16 %v2925, %v2925
        %v2934 = vpack.c.bf16 %v2911, %v2911
        %v2935 = vpack.c.bf16 %v2927, %v2927
        %v2936 = vpack.c.bf16 %v2919, %v2919
        %v2937 = vpack.c.bf16 %v2929, %v2929
        %v2938 = vpack.c.bf16 %v2923, %v2923
        %v2939 = vpack.c.bf16 %v2931, %v2931
        %v2941 = vperm.slane %v2715, 0
        %v2943 = vrot.slane %v2786, 4
        %v2944 = vsel %vm1231, %v2943, %v2782
        %v2946 = vunpack.c.l.s4 1983009808
        %v2947 = vunpack.c.0.s8 %v2946
        %v2948 = vperm.slane %v2944, %v2947
        %v2949 = vrot.slane %v2788, 4
        %v2950 = vsel %vm1231, %v2949, %v2784
        %v2952 = vunpack.c.l.s4 1983009808
        %v2953 = vunpack.c.0.s8 %v2952
        %v2954 = vperm.slane %v2950, %v2953
        %v2955 = vrot.slane %v2954, 4
        %v2956 = vsel %vm1231, %v2955, %v2948
        %v2958 = vunpack.c.l.s4 1934713408
        %v2959 = vunpack.c.0.s8 %v2958
        %v2960 = vperm.slane %v2956, %v2959
        %v2961 = vrot.slane %v2960, 4
        %v2962 = vsel %vm1231, 0, %v2961
        %v2963 = vrot.slane %v2787, 4
        %v2964 = vsel %vm1231, %v2963, %v2783
        %v2966 = vunpack.c.l.s4 1983009808
        %v2967 = vunpack.c.0.s8 %v2966
        %v2968 = vperm.slane %v2964, %v2967
        %v2969 = vrot.slane %v2789, 4
        %v2970 = vsel %vm1231, %v2969, %v2785
        %v2972 = vunpack.c.l.s4 1983009808
        %v2973 = vunpack.c.0.s8 %v2972
        %v2974 = vperm.slane %v2970, %v2973
        %v2975 = vrot.slane %v2974, 4
        %v2976 = vsel %vm1231, %v2975, %v2968
        %v2978 = vunpack.c.l.s4 1934713408
        %v2979 = vunpack.c.0.s8 %v2978
        %v2980 = vperm.slane %v2976, %v2979
        %v2981 = vrot.slane %v2980, 4
        %v2982 = vsel %vm1231, 0, %v2981
        %v2985 = vpack.i.b16 %v2980, %v2960
        %v2986 = vshrl.u32 %v2960, 16
        %v2987 = vshrl.u32 %v2980, 16
        %v2988 = vpack.i.b16 %v2987, %v2986
        %v2991 = vpack.i.b16 %v2982, %v2962
        %v2992 = vshrl.u32 %v2962, 16
        %v2993 = vshrl.u32 %v2982, 16
        %v2994 = vpack.i.b16 %v2993, %v2992
        %2995 = vxpose.xlu0.c.b16.start [1/8] %v2856, 128
        %2996 = vxpose.xlu0.c.b16.cont [2/8] 0, 128
        %2997 = vxpose.xlu0.c.b16.cont [3/8] 0, 128
        %2998 = vxpose.xlu0.c.b16.cont [4/8] 0, 128
        %2999 = vxpose.xlu0.c.b16.cont [5/8] 0, 128
        %3000 = vxpose.xlu0.c.b16.cont [6/8] 0, 128
        %3001 = vxpose.xlu0.c.b16.cont [7/8] 0, 128
        %3002 = vxpose.xlu0.c.b16.end [8/8] 0, 128
        %v3003 = vpop.trf.xlu0
        %v3004 = vpop.trf.xlu0
        %v3005 = vpop.trf.xlu0
        %v3006 = vpop.trf.xlu0
        %v3007 = vpop.trf.xlu0
        %v3008 = vpop.trf.xlu0
        %v3009 = vpop.trf.xlu0
        %v3010 = vpop.trf.xlu0
        %3011 = vxpose.xlu0.c.b16.start [1/8] %v2857, 128
        %3012 = vxpose.xlu0.c.b16.cont [2/8] 0, 128
        %3013 = vxpose.xlu0.c.b16.cont [3/8] 0, 128
        %3014 = vxpose.xlu0.c.b16.cont [4/8] 0, 128
        %3015 = vxpose.xlu0.c.b16.cont [5/8] 0, 128
        %3016 = vxpose.xlu0.c.b16.cont [6/8] 0, 128
        %3017 = vxpose.xlu0.c.b16.cont [7/8] 0, 128
        %3018 = vxpose.xlu0.c.b16.end [8/8] 0, 128
        %v3019 = vpop.trf.xlu0
        %v3020 = vpop.trf.xlu0
        %v3021 = vpop.trf.xlu0
        %v3022 = vpop.trf.xlu0
        %v3023 = vpop.trf.xlu0
        %v3024 = vpop.trf.xlu0
        %v3025 = vpop.trf.xlu0
        %v3026 = vpop.trf.xlu0
        %3027 = vxpose.xlu0.c.b16.start [1/8] %v2858, 128
        %3028 = vxpose.xlu0.c.b16.cont [2/8] 0, 128
        %3029 = vxpose.xlu0.c.b16.cont [3/8] 0, 128
        %3030 = vxpose.xlu0.c.b16.cont [4/8] 0, 128
        %3031 = vxpose.xlu0.c.b16.cont [5/8] 0, 128
        %3032 = vxpose.xlu0.c.b16.cont [6/8] 0, 128
        %3033 = vxpose.xlu0.c.b16.cont [7/8] 0, 128
        %3034 = vxpose.xlu0.c.b16.end [8/8] 0, 128
        %v3035 = vpop.trf.xlu0
        %v3036 = vpop.trf.xlu0
        %v3037 = vpop.trf.xlu0
        %v3038 = vpop.trf.xlu0
        %v3039 = vpop.trf.xlu0
        %v3040 = vpop.trf.xlu0
        %v3041 = vpop.trf.xlu0
        %v3042 = vpop.trf.xlu0
        %3043 = vxpose.xlu0.c.b16.start [1/8] %v2859, 128
        %3044 = vxpose.xlu0.c.b16.cont [2/8] 0, 128
        %3045 = vxpose.xlu0.c.b16.cont [3/8] 0, 128
        %3046 = vxpose.xlu0.c.b16.cont [4/8] 0, 128
        %3047 = vxpose.xlu0.c.b16.cont [5/8] 0, 128
        %3048 = vxpose.xlu0.c.b16.cont [6/8] 0, 128
        %3049 = vxpose.xlu0.c.b16.cont [7/8] 0, 128
        %3050 = vxpose.xlu0.c.b16.end [8/8] 0, 128
        %v3051 = vpop.trf.xlu0
        %v3052 = vpop.trf.xlu0
        %v3053 = vpop.trf.xlu0
        %v3054 = vpop.trf.xlu0
        %v3055 = vpop.trf.xlu0
        %v3056 = vpop.trf.xlu0
        %v3057 = vpop.trf.xlu0
        %v3058 = vpop.trf.xlu0
        %3059 = vxpose.xlu0.c.b16.start [1/8] %v2860, 128
        %3060 = vxpose.xlu0.c.b16.cont [2/8] 0, 128
        %3061 = vxpose.xlu0.c.b16.cont [3/8] 0, 128
        %3062 = vxpose.xlu0.c.b16.cont [4/8] 0, 128
        %3063 = vxpose.xlu0.c.b16.cont [5/8] 0, 128
        %3064 = vxpose.xlu0.c.b16.cont [6/8] 0, 128
        %3065 = vxpose.xlu0.c.b16.cont [7/8] 0, 128
        %3066 = vxpose.xlu0.c.b16.end [8/8] 0, 128
        %v3067 = vpop.trf.xlu0
        %v3068 = vpop.trf.xlu0
        %v3069 = vpop.trf.xlu0
        %v3070 = vpop.trf.xlu0
        %v3071 = vpop.trf.xlu0
        %v3072 = vpop.trf.xlu0
        %v3073 = vpop.trf.xlu0
        %v3074 = vpop.trf.xlu0
        %3075 = vxpose.xlu0.c.b16.start [1/8] %v2861, 128
        %3076 = vxpose.xlu0.c.b16.cont [2/8] 0, 128
        %3077 = vxpose.xlu0.c.b16.cont [3/8] 0, 128
        %3078 = vxpose.xlu0.c.b16.cont [4/8] 0, 128
        %3079 = vxpose.xlu0.c.b16.cont [5/8] 0, 128
        %3080 = vxpose.xlu0.c.b16.cont [6/8] 0, 128
        %3081 = vxpose.xlu0.c.b16.cont [7/8] 0, 128
        %3082 = vxpose.xlu0.c.b16.end [8/8] 0, 128
        %v3083 = vpop.trf.xlu0
        %v3084 = vpop.trf.xlu0
        %v3085 = vpop.trf.xlu0
        %v3086 = vpop.trf.xlu0
        %v3087 = vpop.trf.xlu0
        %v3088 = vpop.trf.xlu0
        %v3089 = vpop.trf.xlu0
        %v3090 = vpop.trf.xlu0
        %3091 = vxpose.xlu0.c.b16.start [1/8] %v2862, 128
        %3092 = vxpose.xlu0.c.b16.cont [2/8] 0, 128
        %3093 = vxpose.xlu0.c.b16.cont [3/8] 0, 128
        %3094 = vxpose.xlu0.c.b16.cont [4/8] 0, 128
        %3095 = vxpose.xlu0.c.b16.cont [5/8] 0, 128
        %3096 = vxpose.xlu0.c.b16.cont [6/8] 0, 128
        %3097 = vxpose.xlu0.c.b16.cont [7/8] 0, 128
        %3098 = vxpose.xlu0.c.b16.end [8/8] 0, 128
        %v3099 = vpop.trf.xlu0
        %v3100 = vpop.trf.xlu0
        %v3101 = vpop.trf.xlu0
        %v3102 = vpop.trf.xlu0
        %v3103 = vpop.trf.xlu0
        %v3104 = vpop.trf.xlu0
        %v3105 = vpop.trf.xlu0
        %v3106 = vpop.trf.xlu0
        %3107 = vxpose.xlu0.c.b16.start [1/8] %v2863, 128
        %3108 = vxpose.xlu0.c.b16.cont [2/8] 0, 128
        %3109 = vxpose.xlu0.c.b16.cont [3/8] 0, 128
        %3110 = vxpose.xlu0.c.b16.cont [4/8] 0, 128
        %3111 = vxpose.xlu0.c.b16.cont [5/8] 0, 128
        %3112 = vxpose.xlu0.c.b16.cont [6/8] 0, 128
        %3113 = vxpose.xlu0.c.b16.cont [7/8] 0, 128
        %3114 = vxpose.xlu0.c.b16.end [8/8] 0, 128
        %v3115 = vpop.trf.xlu0
        %v3116 = vpop.trf.xlu0
        %v3117 = vpop.trf.xlu0
        %v3118 = vpop.trf.xlu0
        %v3119 = vpop.trf.xlu0
        %v3120 = vpop.trf.xlu0
        %v3121 = vpop.trf.xlu0
        %v3122 = vpop.trf.xlu0
        %v3123 = vrot.slane %v3067, 4
        %v3124 = vsel %vm1231, %v3123, %v3003
        %v3126 = vunpack.c.l.s4 1983009808
        %v3127 = vunpack.c.0.s8 %v3126
        %v3128 = vperm.slane %v3124, %v3127
        %v3129 = vrot.slane %v3099, 4
        %v3130 = vsel %vm1231, %v3129, %v3035
        %v3132 = vunpack.c.l.s4 1983009808
        %v3133 = vunpack.c.0.s8 %v3132
        %v3134 = vperm.slane %v3130, %v3133
        %v3135 = vrot.slane %v3134, 4
        %v3136 = vsel %vm1231, %v3135, %v3128
        %v3137 = vrot.slane %v3128, 4
        %v3138 = vsel %vm1231, %v3134, %v3137
        %v3140 = vunpack.c.l.s4 1934713408
        %v3141 = vunpack.c.0.s8 %v3140
        %v3142 = vperm.slane %v3136, %v3141
        %v3144 = vunpack.c.l.s4 1934713408
        %v3145 = vunpack.c.0.s8 %v3144
        %v3146 = vperm.slane %v3138, %v3145
        %v3147 = vrot.slane %v3142, 4
        %v3148 = vsel %vm1231, 0, %v3147
        %v3149 = vrot.slane %v3146, 4
        %v3150 = vsel %vm1231, 0, %v3149
        %v3151 = vrot.slane %v3083, 4
        %v3152 = vsel %vm1231, %v3151, %v3019
        %v3154 = vunpack.c.l.s4 1983009808
        %v3155 = vunpack.c.0.s8 %v3154
        %v3156 = vperm.slane %v3152, %v3155
        %v3157 = vrot.slane %v3115, 4
        %v3158 = vsel %vm1231, %v3157, %v3051
        %v3160 = vunpack.c.l.s4 1983009808
        %v3161 = vunpack.c.0.s8 %v3160
        %v3162 = vperm.slane %v3158, %v3161
        %v3163 = vrot.slane %v3162, 4
        %v3164 = vsel %vm1231, %v3163, %v3156
        %v3165 = vrot.slane %v3156, 4
        %v3166 = vsel %vm1231, %v3162, %v3165
        %v3168 = vunpack.c.l.s4 1934713408
        %v3169 = vunpack.c.0.s8 %v3168
        %v3170 = vperm.slane %v3164, %v3169
        %v3172 = vunpack.c.l.s4 1934713408
        %v3173 = vunpack.c.0.s8 %v3172
        %v3174 = vperm.slane %v3166, %v3173
        %v3175 = vrot.slane %v3170, 4
        %v3176 = vsel %vm1231, 0, %v3175
        %v3177 = vrot.slane %v3174, 4
        %v3178 = vsel %vm1231, 0, %v3177
        %v3181 = vpack.i.b16 %v3170, %v3142
        %v3183 = vshrl.u32 %v3142, 16
        %v3184 = vshrl.u32 %v3170, 16
        %v3185 = vpack.i.b16 %v3184, %v3183
        %v3189 = vpack.i.b16 %v3176, %v3148
        %v3191 = vshrl.u32 %v3148, 16
        %v3192 = vshrl.u32 %v3176, 16
        %v3193 = vpack.i.b16 %v3192, %v3191
        %v3197 = vpack.i.b16 %v3174, %v3146
        %v3199 = vshrl.u32 %v3146, 16
        %v3200 = vshrl.u32 %v3174, 16
        %v3201 = vpack.i.b16 %v3200, %v3199
        %v3205 = vpack.i.b16 %v3178, %v3150
        %v3207 = vshrl.u32 %v3150, 16
        %v3208 = vshrl.u32 %v3178, 16
        %v3209 = vpack.i.b16 %v3208, %v3207
        %3211 = vxpose.xlu0.c.b16.start [1/8] %v3181, 128
        %3212 = vxpose.xlu0.c.b16.cont [2/8] 0, 128
        %3213 = vxpose.xlu0.c.b16.cont [3/8] 0, 128
        %3214 = vxpose.xlu0.c.b16.cont [4/8] 0, 128
        %3215 = vxpose.xlu0.c.b16.cont [5/8] 0, 128
        %3216 = vxpose.xlu0.c.b16.cont [6/8] 0, 128
        %3217 = vxpose.xlu0.c.b16.cont [7/8] 0, 128
        %3218 = vxpose.xlu0.c.b16.end [8/8] 0, 128
        %v3219 = vpop.trf.xlu0
        %v3220 = vpop.trf.xlu0
        %v3221 = vpop.trf.xlu0
        %v3222 = vpop.trf.xlu0
        %v3223 = vpop.trf.xlu0
        %v3224 = vpop.trf.xlu0
        %v3225 = vpop.trf.xlu0
        %v3226 = vpop.trf.xlu0
        %3227 = vxpose.xlu0.c.b16.start [1/8] %v3185, 128
        %3228 = vxpose.xlu0.c.b16.cont [2/8] 0, 128
        %3229 = vxpose.xlu0.c.b16.cont [3/8] 0, 128
        %3230 = vxpose.xlu0.c.b16.cont [4/8] 0, 128
        %3231 = vxpose.xlu0.c.b16.cont [5/8] 0, 128
        %3232 = vxpose.xlu0.c.b16.cont [6/8] 0, 128
        %3233 = vxpose.xlu0.c.b16.cont [7/8] 0, 128
        %3234 = vxpose.xlu0.c.b16.end [8/8] 0, 128
        %v3235 = vpop.trf.xlu0
        %v3236 = vpop.trf.xlu0
        %v3237 = vpop.trf.xlu0
        %v3238 = vpop.trf.xlu0
        %v3239 = vpop.trf.xlu0
        %v3240 = vpop.trf.xlu0
        %v3241 = vpop.trf.xlu0
        %v3242 = vpop.trf.xlu0
        %3243 = vxpose.xlu0.c.b16.start [1/8] %v3189, 128
        %3244 = vxpose.xlu0.c.b16.cont [2/8] 0, 128
        %3245 = vxpose.xlu0.c.b16.cont [3/8] 0, 128
        %3246 = vxpose.xlu0.c.b16.cont [4/8] 0, 128
        %3247 = vxpose.xlu0.c.b16.cont [5/8] 0, 128
        %3248 = vxpose.xlu0.c.b16.cont [6/8] 0, 128
        %3249 = vxpose.xlu0.c.b16.cont [7/8] 0, 128
        %3250 = vxpose.xlu0.c.b16.end [8/8] 0, 128
        %v3251 = vpop.trf.xlu0
        %v3252 = vpop.trf.xlu0
        %v3253 = vpop.trf.xlu0
        %v3254 = vpop.trf.xlu0
        %v3255 = vpop.trf.xlu0
        %v3256 = vpop.trf.xlu0
        %v3257 = vpop.trf.xlu0
        %v3258 = vpop.trf.xlu0
        %3259 = vxpose.xlu0.c.b16.start [1/8] %v3193, 128
        %3260 = vxpose.xlu0.c.b16.cont [2/8] 0, 128
        %3261 = vxpose.xlu0.c.b16.cont [3/8] 0, 128
        %3262 = vxpose.xlu0.c.b16.cont [4/8] 0, 128
        %3263 = vxpose.xlu0.c.b16.cont [5/8] 0, 128
        %3264 = vxpose.xlu0.c.b16.cont [6/8] 0, 128
        %3265 = vxpose.xlu0.c.b16.cont [7/8] 0, 128
        %3266 = vxpose.xlu0.c.b16.end [8/8] 0, 128
        %v3267 = vpop.trf.xlu0
        %v3268 = vpop.trf.xlu0
        %v3269 = vpop.trf.xlu0
        %v3270 = vpop.trf.xlu0
        %v3271 = vpop.trf.xlu0
        %v3272 = vpop.trf.xlu0
        %v3273 = vpop.trf.xlu0
        %v3274 = vpop.trf.xlu0
        %3275 = vxpose.xlu0.c.b16.start [1/8] %v3197, 128
        %3276 = vxpose.xlu0.c.b16.cont [2/8] 0, 128
        %3277 = vxpose.xlu0.c.b16.cont [3/8] 0, 128
        %3278 = vxpose.xlu0.c.b16.cont [4/8] 0, 128
        %3279 = vxpose.xlu0.c.b16.cont [5/8] 0, 128
        %3280 = vxpose.xlu0.c.b16.cont [6/8] 0, 128
        %3281 = vxpose.xlu0.c.b16.cont [7/8] 0, 128
        %3282 = vxpose.xlu0.c.b16.end [8/8] 0, 128
        %v3283 = vpop.trf.xlu0
        %v3284 = vpop.trf.xlu0
        %v3285 = vpop.trf.xlu0
        %v3286 = vpop.trf.xlu0
        %v3287 = vpop.trf.xlu0
        %v3288 = vpop.trf.xlu0
        %v3289 = vpop.trf.xlu0
        %v3290 = vpop.trf.xlu0
        %3291 = vxpose.xlu0.c.b16.start [1/8] %v3201, 128
        %3292 = vxpose.xlu0.c.b16.cont [2/8] 0, 128
        %3293 = vxpose.xlu0.c.b16.cont [3/8] 0, 128
        %3294 = vxpose.xlu0.c.b16.cont [4/8] 0, 128
        %3295 = vxpose.xlu0.c.b16.cont [5/8] 0, 128
        %3296 = vxpose.xlu0.c.b16.cont [6/8] 0, 128
        %3297 = vxpose.xlu0.c.b16.cont [7/8] 0, 128
        %3298 = vxpose.xlu0.c.b16.end [8/8] 0, 128
        %v3299 = vpop.trf.xlu0
        %v3300 = vpop.trf.xlu0
        %v3301 = vpop.trf.xlu0
        %v3302 = vpop.trf.xlu0
        %v3303 = vpop.trf.xlu0
        %v3304 = vpop.trf.xlu0
        %v3305 = vpop.trf.xlu0
        %v3306 = vpop.trf.xlu0
        %3307 = vxpose.xlu0.c.b16.start [1/8] %v3205, 128
        %3308 = vxpose.xlu0.c.b16.cont [2/8] 0, 128
        %3309 = vxpose.xlu0.c.b16.cont [3/8] 0, 128
        %3310 = vxpose.xlu0.c.b16.cont [4/8] 0, 128
        %3311 = vxpose.xlu0.c.b16.cont [5/8] 0, 128
        %3312 = vxpose.xlu0.c.b16.cont [6/8] 0, 128
        %3313 = vxpose.xlu0.c.b16.cont [7/8] 0, 128
        %3314 = vxpose.xlu0.c.b16.end [8/8] 0, 128
        %v3315 = vpop.trf.xlu0
        %v3316 = vpop.trf.xlu0
        %v3317 = vpop.trf.xlu0
        %v3318 = vpop.trf.xlu0
        %v3319 = vpop.trf.xlu0
        %v3320 = vpop.trf.xlu0
        %v3321 = vpop.trf.xlu0
        %v3322 = vpop.trf.xlu0
        %3323 = vxpose.xlu0.c.b16.start [1/8] %v3209, 128
        %3324 = vxpose.xlu0.c.b16.cont [2/8] 0, 128
        %3325 = vxpose.xlu0.c.b16.cont [3/8] 0, 128
        %3326 = vxpose.xlu0.c.b16.cont [4/8] 0, 128
        %3327 = vxpose.xlu0.c.b16.cont [5/8] 0, 128
        %3328 = vxpose.xlu0.c.b16.cont [6/8] 0, 128
        %3329 = vxpose.xlu0.c.b16.cont [7/8] 0, 128
        %3330 = vxpose.xlu0.c.b16.end [8/8] 0, 128
        %v3331 = vpop.trf.xlu0
        %v3332 = vpop.trf.xlu0
        %v3333 = vpop.trf.xlu0
        %v3334 = vpop.trf.xlu0
        %v3335 = vpop.trf.xlu0
        %v3336 = vpop.trf.xlu0
        %v3337 = vpop.trf.xlu0
        %v3338 = vpop.trf.xlu0
        %v3339 = vrot.slane %v3283, 4
        %v3340 = vsel %vm1231, %v3339, %v3219
        %v3342 = vunpack.c.l.s4 1983009808
        %v3343 = vunpack.c.0.s8 %v3342
        %v3344 = vperm.slane %v3340, %v3343
        %v3345 = vrot.slane %v3315, 4
        %v3346 = vsel %vm1231, %v3345, %v3251
        %v3348 = vunpack.c.l.s4 1983009808
        %v3349 = vunpack.c.0.s8 %v3348
        %v3350 = vperm.slane %v3346, %v3349
        %v3351 = vrot.slane %v3350, 4
        %v3352 = vsel %vm1231, %v3351, %v3344
        %v3354 = vunpack.c.l.s4 1934713408
        %v3355 = vunpack.c.0.s8 %v3354
        %v3356 = vperm.slane %v3352, %v3355
        %v3357 = vrot.slane %v3356, 4
        %v3358 = vsel %vm1231, 0, %v3357
        %v3359 = vrot.slane %v3299, 4
        %v3360 = vsel %vm1231, %v3359, %v3235
        %v3362 = vunpack.c.l.s4 1983009808
        %v3363 = vunpack.c.0.s8 %v3362
        %v3364 = vperm.slane %v3360, %v3363
        %v3365 = vrot.slane %v3331, 4
        %v3366 = vsel %vm1231, %v3365, %v3267
        %v3368 = vunpack.c.l.s4 1983009808
        %v3369 = vunpack.c.0.s8 %v3368
        %v3370 = vperm.slane %v3366, %v3369
        %v3371 = vrot.slane %v3370, 4
        %v3372 = vsel %vm1231, %v3371, %v3364
        %v3374 = vunpack.c.l.s4 1934713408
        %v3375 = vunpack.c.0.s8 %v3374
        %v3376 = vperm.slane %v3372, %v3375
        %v3377 = vrot.slane %v3376, 4
        %v3378 = vsel %vm1231, 0, %v3377
        %v3381 = vpack.i.b16 %v3376, %v3356
        %v3382 = vshrl.u32 %v3356, 16
        %v3383 = vshrl.u32 %v3376, 16
        %v3384 = vpack.i.b16 %v3383, %v3382
        %v3387 = vpack.i.b16 %v3378, %v3358
        %v3388 = vshrl.u32 %v3358, 16
        %v3389 = vshrl.u32 %v3378, 16
        %v3390 = vpack.i.b16 %v3389, %v3388
        %v3392 = vsel %vm1679, %v2985, 0
        %v3395 = vsel %vm1683, %v3381, 0
        %3397 = vmatpush.bf16.msra.mxu0 0
        %3398 = vmatpush.bf16.msra.mxu0 0
        %3399 = vmatpush.bf16.msra.mxu0 0
        %3400 = vmatpush.bf16.msra.mxu0 0
        %3401 = vmatpush.bf16.msra.mxu0 0
        %3402 = vmatpush.bf16.msra.mxu0 0
        %3403 = vmatpush.bf16.msra.mxu0 0
        %3404 = vmatpush.bf16.msra.mxu0 %v3395
        %3405 = vmatmul.bf16.gmra.mxu0 %v3392
        %v3406 = vpop.f32.mrf.mxu0
        %v3407 = vadd.f32 %v2941, %v3406
        %v3408 = vpop.f32.mrf.mxu0
        %3409 = vdwg.mxu0
        %v3411 = vsel %vm1679, %v2988, 0
        %v3414 = vsel %vm1683, %v3384, 0
        %3416 = vmatpush.bf16.msra.mxu0 0
        %3417 = vmatpush.bf16.msra.mxu0 0
        %3418 = vmatpush.bf16.msra.mxu0 0
        %3419 = vmatpush.bf16.msra.mxu0 0
        %3420 = vmatpush.bf16.msra.mxu0 0
        %3421 = vmatpush.bf16.msra.mxu0 0
        %3422 = vmatpush.bf16.msra.mxu0 0
        %3423 = vmatpush.bf16.msra.mxu0 %v3414
        %3424 = vmatmul.bf16.gmra.mxu0 %v3411
        %v3425 = vpop.f32.mrf.mxu0
        %v3426 = vadd.f32 %v2941, %v3425
        %v3427 = vpop.f32.mrf.mxu0
        %3428 = vdwg.mxu0
        %v3430 = vsel %vm1679, %v2991, 0
        %v3433 = vsel %vm1683, %v3387, 0
        %3435 = vmatpush.bf16.msra.mxu0 0
        %3436 = vmatpush.bf16.msra.mxu0 0
        %3437 = vmatpush.bf16.msra.mxu0 0
        %3438 = vmatpush.bf16.msra.mxu0 0
        %3439 = vmatpush.bf16.msra.mxu0 0
        %3440 = vmatpush.bf16.msra.mxu0 0
        %3441 = vmatpush.bf16.msra.mxu0 0
        %3442 = vmatpush.bf16.msra.mxu0 %v3433
        %3443 = vmatmul.bf16.gmra.mxu0 %v3430
        %v3444 = vpop.f32.mrf.mxu0
        %v3445 = vadd.f32 %v2941, %v3444
        %v3446 = vpop.f32.mrf.mxu0
        %3447 = vdwg.mxu0
        %v3449 = vsel %vm1679, %v2994, 0
        %v3452 = vsel %vm1683, %v3390, 0
        %3454 = vmatpush.bf16.msra.mxu0 0
        %3455 = vmatpush.bf16.msra.mxu0 0
        %3456 = vmatpush.bf16.msra.mxu0 0
        %3457 = vmatpush.bf16.msra.mxu0 0
        %3458 = vmatpush.bf16.msra.mxu0 0
        %3459 = vmatpush.bf16.msra.mxu0 0
        %3460 = vmatpush.bf16.msra.mxu0 0
        %3461 = vmatpush.bf16.msra.mxu0 %v3452
        %3462 = vmatmul.bf16.gmra.mxu0 %v3449
        %v3463 = vpop.f32.mrf.mxu0
        %v3464 = vadd.f32 %v2941, %v3463
        %v3465 = vpop.f32.mrf.mxu0
        %3466 = vdwg.mxu0
        %v3467 = vsel %vm1679, %v3407, -inf
        %3468 = vmax.xlane.f32.xlu0 %v3467
        %v3469 = vpop.xlane.xlu0 %3468
        %v3470 = vsel %vm1679, %v3426, -inf
        %3471 = vmax.xlane.f32.xlu0 %v3470
        %v3472 = vpop.xlane.xlu0 %3471
        %v3473 = vsel %vm1679, %v3445, -inf
        %3474 = vmax.xlane.f32.xlu0 %v3473
        %v3475 = vpop.xlane.xlu0 %3474
        %v3476 = vsel %vm1679, %v3464, -inf
        %3477 = vmax.xlane.f32.xlu0 %v3476
        %v3478 = vpop.xlane.xlu0 %3477
        %v3479 = vsub.f32 %v3407, %v3469
        %v3480 = vsub.f32 %v3426, %v3472
        %v3481 = vsub.f32 %v3445, %v3475
        %v3482 = vsub.f32 %v3464, %v3478
        %v3483 = vmul.f32 %v3479, 1.442695
        %v3484 = vpow.pop %v3483
        %v3485 = vmul.f32 %v3480, 1.442695
        %v3486 = vpow.pop %v3485
        %v3487 = vmul.f32 %v3481, 1.442695
        %v3488 = vpow.pop %v3487
        %v3489 = vmul.f32 %v3482, 1.442695
        %v3490 = vpow.pop %v3489
        %v3491 = vsel %vm1679, %v3484, 0.0
        %3492 = vadd.xlane.f32.xlu0 %v3491
        %v3493 = vpop.xlane.xlu0 %3492
        %v3494 = vsel %vm1679, %v3486, 0.0
        %3495 = vadd.xlane.f32.xlu0 %v3494
        %v3496 = vpop.xlane.xlu0 %3495
        %v3497 = vsel %vm1679, %v3488, 0.0
        %3498 = vadd.xlane.f32.xlu0 %v3497
        %v3499 = vpop.xlane.xlu0 %3498
        %v3500 = vsel %vm1679, %v3490, 0.0
        %3501 = vadd.xlane.f32.xlu0 %v3500
        %v3502 = vpop.xlane.xlu0 %3501
        %v3503 = vrcp.pop %v3493
        %v3504 = vrcp.pop %v3496
        %v3505 = vrcp.pop %v3499
        %v3506 = vrcp.pop %v3502
        %v3507 = vmul.f32 %v3484, %v3503
        %v3508 = vmul.f32 %v3486, %v3504
        %v3509 = vmul.f32 %v3488, %v3505
        %v3510 = vmul.f32 %v3490, %v3506
        %v3511 = vpack.c.bf16 %v3507, %v3507
        %v3512 = vpack.c.bf16 %v3508, %v3508
        %v3513 = vpack.c.bf16 %v3509, %v3509
        %v3514 = vpack.c.bf16 %v3510, %v3510
        %3515 = vxpose.xlu0.c.b16.start [1/8] %v2932, 128
        %3516 = vxpose.xlu0.c.b16.cont [2/8] 0, 128
        %3517 = vxpose.xlu0.c.b16.cont [3/8] 0, 128
        %3518 = vxpose.xlu0.c.b16.cont [4/8] 0, 128
        %3519 = vxpose.xlu0.c.b16.cont [5/8] 0, 128
        %3520 = vxpose.xlu0.c.b16.cont [6/8] 0, 128
        %3521 = vxpose.xlu0.c.b16.cont [7/8] 0, 128
        %3522 = vxpose.xlu0.c.b16.end [8/8] 0, 128
        %v3523 = vpop.trf.xlu0
        %v3524 = vpop.trf.xlu0
        %v3525 = vpop.trf.xlu0
        %v3526 = vpop.trf.xlu0
        %v3527 = vpop.trf.xlu0
        %v3528 = vpop.trf.xlu0
        %v3529 = vpop.trf.xlu0
        %v3530 = vpop.trf.xlu0
        %3531 = vxpose.xlu0.c.b16.start [1/8] %v2933, 128
        %3532 = vxpose.xlu0.c.b16.cont [2/8] 0, 128
        %3533 = vxpose.xlu0.c.b16.cont [3/8] 0, 128
        %3534 = vxpose.xlu0.c.b16.cont [4/8] 0, 128
        %3535 = vxpose.xlu0.c.b16.cont [5/8] 0, 128
        %3536 = vxpose.xlu0.c.b16.cont [6/8] 0, 128
        %3537 = vxpose.xlu0.c.b16.cont [7/8] 0, 128
        %3538 = vxpose.xlu0.c.b16.end [8/8] 0, 128
        %v3539 = vpop.trf.xlu0
        %v3540 = vpop.trf.xlu0
        %v3541 = vpop.trf.xlu0
        %v3542 = vpop.trf.xlu0
        %v3543 = vpop.trf.xlu0
        %v3544 = vpop.trf.xlu0
        %v3545 = vpop.trf.xlu0
        %v3546 = vpop.trf.xlu0
        %3547 = vxpose.xlu0.c.b16.start [1/8] %v2934, 128
        %3548 = vxpose.xlu0.c.b16.cont [2/8] 0, 128
        %3549 = vxpose.xlu0.c.b16.cont [3/8] 0, 128
        %3550 = vxpose.xlu0.c.b16.cont [4/8] 0, 128
        %3551 = vxpose.xlu0.c.b16.cont [5/8] 0, 128
        %3552 = vxpose.xlu0.c.b16.cont [6/8] 0, 128
        %3553 = vxpose.xlu0.c.b16.cont [7/8] 0, 128
        %3554 = vxpose.xlu0.c.b16.end [8/8] 0, 128
        %v3555 = vpop.trf.xlu0
        %v3556 = vpop.trf.xlu0
        %v3557 = vpop.trf.xlu0
        %v3558 = vpop.trf.xlu0
        %v3559 = vpop.trf.xlu0
        %v3560 = vpop.trf.xlu0
        %v3561 = vpop.trf.xlu0
        %v3562 = vpop.trf.xlu0
        %3563 = vxpose.xlu0.c.b16.start [1/8] %v2935, 128
        %3564 = vxpose.xlu0.c.b16.cont [2/8] 0, 128
        %3565 = vxpose.xlu0.c.b16.cont [3/8] 0, 128
        %3566 = vxpose.xlu0.c.b16.cont [4/8] 0, 128
        %3567 = vxpose.xlu0.c.b16.cont [5/8] 0, 128
        %3568 = vxpose.xlu0.c.b16.cont [6/8] 0, 128
        %3569 = vxpose.xlu0.c.b16.cont [7/8] 0, 128
        %3570 = vxpose.xlu0.c.b16.end [8/8] 0, 128
        %v3571 = vpop.trf.xlu0
        %v3572 = vpop.trf.xlu0
        %v3573 = vpop.trf.xlu0
        %v3574 = vpop.trf.xlu0
        %v3575 = vpop.trf.xlu0
        %v3576 = vpop.trf.xlu0
        %v3577 = vpop.trf.xlu0
        %v3578 = vpop.trf.xlu0
        %3579 = vxpose.xlu0.c.b16.start [1/8] %v2936, 128
        %3580 = vxpose.xlu0.c.b16.cont [2/8] 0, 128
        %3581 = vxpose.xlu0.c.b16.cont [3/8] 0, 128
        %3582 = vxpose.xlu0.c.b16.cont [4/8] 0, 128
        %3583 = vxpose.xlu0.c.b16.cont [5/8] 0, 128
        %3584 = vxpose.xlu0.c.b16.cont [6/8] 0, 128
        %3585 = vxpose.xlu0.c.b16.cont [7/8] 0, 128
        %3586 = vxpose.xlu0.c.b16.end [8/8] 0, 128
        %v3587 = vpop.trf.xlu0
        %v3588 = vpop.trf.xlu0
        %v3589 = vpop.trf.xlu0
        %v3590 = vpop.trf.xlu0
        %v3591 = vpop.trf.xlu0
        %v3592 = vpop.trf.xlu0
        %v3593 = vpop.trf.xlu0
        %v3594 = vpop.trf.xlu0
        %3595 = vxpose.xlu0.c.b16.start [1/8] %v2937, 128
        %3596 = vxpose.xlu0.c.b16.cont [2/8] 0, 128
        %3597 = vxpose.xlu0.c.b16.cont [3/8] 0, 128
        %3598 = vxpose.xlu0.c.b16.cont [4/8] 0, 128
        %3599 = vxpose.xlu0.c.b16.cont [5/8] 0, 128
        %3600 = vxpose.xlu0.c.b16.cont [6/8] 0, 128
        %3601 = vxpose.xlu0.c.b16.cont [7/8] 0, 128
        %3602 = vxpose.xlu0.c.b16.end [8/8] 0, 128
        %v3603 = vpop.trf.xlu0
        %v3604 = vpop.trf.xlu0
        %v3605 = vpop.trf.xlu0
        %v3606 = vpop.trf.xlu0
        %v3607 = vpop.trf.xlu0
        %v3608 = vpop.trf.xlu0
        %v3609 = vpop.trf.xlu0
        %v3610 = vpop.trf.xlu0
        %3611 = vxpose.xlu0.c.b16.start [1/8] %v2938, 128
        %3612 = vxpose.xlu0.c.b16.cont [2/8] 0, 128
        %3613 = vxpose.xlu0.c.b16.cont [3/8] 0, 128
        %3614 = vxpose.xlu0.c.b16.cont [4/8] 0, 128
        %3615 = vxpose.xlu0.c.b16.cont [5/8] 0, 128
        %3616 = vxpose.xlu0.c.b16.cont [6/8] 0, 128
        %3617 = vxpose.xlu0.c.b16.cont [7/8] 0, 128
        %3618 = vxpose.xlu0.c.b16.end [8/8] 0, 128
        %v3619 = vpop.trf.xlu0
        %v3620 = vpop.trf.xlu0
        %v3621 = vpop.trf.xlu0
        %v3622 = vpop.trf.xlu0
        %v3623 = vpop.trf.xlu0
        %v3624 = vpop.trf.xlu0
        %v3625 = vpop.trf.xlu0
        %v3626 = vpop.trf.xlu0
        %3627 = vxpose.xlu0.c.b16.start [1/8] %v2939, 128
        %3628 = vxpose.xlu0.c.b16.cont [2/8] 0, 128
        %3629 = vxpose.xlu0.c.b16.cont [3/8] 0, 128
        %3630 = vxpose.xlu0.c.b16.cont [4/8] 0, 128
        %3631 = vxpose.xlu0.c.b16.cont [5/8] 0, 128
        %3632 = vxpose.xlu0.c.b16.cont [6/8] 0, 128
        %3633 = vxpose.xlu0.c.b16.cont [7/8] 0, 128
        %3634 = vxpose.xlu0.c.b16.end [8/8] 0, 128
        %v3635 = vpop.trf.xlu0
        %v3636 = vpop.trf.xlu0
        %v3637 = vpop.trf.xlu0
        %v3638 = vpop.trf.xlu0
        %v3639 = vpop.trf.xlu0
        %v3640 = vpop.trf.xlu0
        %v3641 = vpop.trf.xlu0
        %v3642 = vpop.trf.xlu0
        %v3643 = vrot.slane %v3587, 4
        %v3644 = vsel %vm1231, %v3643, %v3523
        %v3646 = vunpack.c.l.s4 1983009808
        %v3647 = vunpack.c.0.s8 %v3646
        %v3648 = vperm.slane %v3644, %v3647
        %v3649 = vrot.slane %v3619, 4
        %v3650 = vsel %vm1231, %v3649, %v3555
        %v3652 = vunpack.c.l.s4 1983009808
        %v3653 = vunpack.c.0.s8 %v3652
        %v3654 = vperm.slane %v3650, %v3653
        %v3655 = vrot.slane %v3654, 4
        %v3656 = vsel %vm1231, %v3655, %v3648
        %v3657 = vrot.slane %v3648, 4
        %v3658 = vsel %vm1231, %v3654, %v3657
        %v3660 = vunpack.c.l.s4 1934713408
        %v3661 = vunpack.c.0.s8 %v3660
        %v3662 = vperm.slane %v3656, %v3661
        %v3664 = vunpack.c.l.s4 1934713408
        %v3665 = vunpack.c.0.s8 %v3664
        %v3666 = vperm.slane %v3658, %v3665
        %v3667 = vrot.slane %v3662, 4
        %v3668 = vsel %vm1231, 0, %v3667
        %v3669 = vrot.slane %v3666, 4
        %v3670 = vsel %vm1231, 0, %v3669
        %v3671 = vrot.slane %v3603, 4
        %v3672 = vsel %vm1231, %v3671, %v3539
        %v3674 = vunpack.c.l.s4 1983009808
        %v3675 = vunpack.c.0.s8 %v3674
        %v3676 = vperm.slane %v3672, %v3675
        %v3677 = vrot.slane %v3635, 4
        %v3678 = vsel %vm1231, %v3677, %v3571
        %v3680 = vunpack.c.l.s4 1983009808
        %v3681 = vunpack.c.0.s8 %v3680
        %v3682 = vperm.slane %v3678, %v3681
        %v3683 = vrot.slane %v3682, 4
        %v3684 = vsel %vm1231, %v3683, %v3676
        %v3685 = vrot.slane %v3676, 4
        %v3686 = vsel %vm1231, %v3682, %v3685
        %v3688 = vunpack.c.l.s4 1934713408
        %v3689 = vunpack.c.0.s8 %v3688
        %v3690 = vperm.slane %v3684, %v3689
        %v3692 = vunpack.c.l.s4 1934713408
        %v3693 = vunpack.c.0.s8 %v3692
        %v3694 = vperm.slane %v3686, %v3693
        %v3695 = vrot.slane %v3690, 4
        %v3696 = vsel %vm1231, 0, %v3695
        %v3697 = vrot.slane %v3694, 4
        %v3698 = vsel %vm1231, 0, %v3697
        %v3701 = vpack.i.b16 %v3690, %v3662
        %v3703 = vshrl.u32 %v3662, 16
        %v3704 = vshrl.u32 %v3690, 16
        %v3705 = vpack.i.b16 %v3704, %v3703
        %v3709 = vpack.i.b16 %v3696, %v3668
        %v3711 = vshrl.u32 %v3668, 16
        %v3712 = vshrl.u32 %v3696, 16
        %v3713 = vpack.i.b16 %v3712, %v3711
        %v3717 = vpack.i.b16 %v3694, %v3666
        %v3719 = vshrl.u32 %v3666, 16
        %v3720 = vshrl.u32 %v3694, 16
        %v3721 = vpack.i.b16 %v3720, %v3719
        %v3725 = vpack.i.b16 %v3698, %v3670
        %v3727 = vshrl.u32 %v3670, 16
        %v3728 = vshrl.u32 %v3698, 16
        %v3729 = vpack.i.b16 %v3728, %v3727
        %3731 = vxpose.xlu0.c.b16.start [1/8] %v3701, 128
        %3732 = vxpose.xlu0.c.b16.cont [2/8] 0, 128
        %3733 = vxpose.xlu0.c.b16.cont [3/8] 0, 128
        %3734 = vxpose.xlu0.c.b16.cont [4/8] 0, 128
        %3735 = vxpose.xlu0.c.b16.cont [5/8] 0, 128
        %3736 = vxpose.xlu0.c.b16.cont [6/8] 0, 128
        %3737 = vxpose.xlu0.c.b16.cont [7/8] 0, 128
        %3738 = vxpose.xlu0.c.b16.end [8/8] 0, 128
        %v3739 = vpop.trf.xlu0
        %v3740 = vpop.trf.xlu0
        %v3741 = vpop.trf.xlu0
        %v3742 = vpop.trf.xlu0
        %v3743 = vpop.trf.xlu0
        %v3744 = vpop.trf.xlu0
        %v3745 = vpop.trf.xlu0
        %v3746 = vpop.trf.xlu0
        %3747 = vxpose.xlu0.c.b16.start [1/8] %v3705, 128
        %3748 = vxpose.xlu0.c.b16.cont [2/8] 0, 128
        %3749 = vxpose.xlu0.c.b16.cont [3/8] 0, 128
        %3750 = vxpose.xlu0.c.b16.cont [4/8] 0, 128
        %3751 = vxpose.xlu0.c.b16.cont [5/8] 0, 128
        %3752 = vxpose.xlu0.c.b16.cont [6/8] 0, 128
        %3753 = vxpose.xlu0.c.b16.cont [7/8] 0, 128
        %3754 = vxpose.xlu0.c.b16.end [8/8] 0, 128
        %v3755 = vpop.trf.xlu0
        %v3756 = vpop.trf.xlu0
        %v3757 = vpop.trf.xlu0
        %v3758 = vpop.trf.xlu0
        %v3759 = vpop.trf.xlu0
        %v3760 = vpop.trf.xlu0
        %v3761 = vpop.trf.xlu0
        %v3762 = vpop.trf.xlu0
        %3763 = vxpose.xlu0.c.b16.start [1/8] %v3709, 128
        %3764 = vxpose.xlu0.c.b16.cont [2/8] 0, 128
        %3765 = vxpose.xlu0.c.b16.cont [3/8] 0, 128
        %3766 = vxpose.xlu0.c.b16.cont [4/8] 0, 128
        %3767 = vxpose.xlu0.c.b16.cont [5/8] 0, 128
        %3768 = vxpose.xlu0.c.b16.cont [6/8] 0, 128
        %3769 = vxpose.xlu0.c.b16.cont [7/8] 0, 128
        %3770 = vxpose.xlu0.c.b16.end [8/8] 0, 128
        %v3771 = vpop.trf.xlu0
        %v3772 = vpop.trf.xlu0
        %v3773 = vpop.trf.xlu0
        %v3774 = vpop.trf.xlu0
        %v3775 = vpop.trf.xlu0
        %v3776 = vpop.trf.xlu0
        %v3777 = vpop.trf.xlu0
        %v3778 = vpop.trf.xlu0
        %3779 = vxpose.xlu0.c.b16.start [1/8] %v3713, 128
        %3780 = vxpose.xlu0.c.b16.cont [2/8] 0, 128
        %3781 = vxpose.xlu0.c.b16.cont [3/8] 0, 128
        %3782 = vxpose.xlu0.c.b16.cont [4/8] 0, 128
        %3783 = vxpose.xlu0.c.b16.cont [5/8] 0, 128
        %3784 = vxpose.xlu0.c.b16.cont [6/8] 0, 128
        %3785 = vxpose.xlu0.c.b16.cont [7/8] 0, 128
        %3786 = vxpose.xlu0.c.b16.end [8/8] 0, 128
        %v3787 = vpop.trf.xlu0
        %v3788 = vpop.trf.xlu0
        %v3789 = vpop.trf.xlu0
        %v3790 = vpop.trf.xlu0
        %v3791 = vpop.trf.xlu0
        %v3792 = vpop.trf.xlu0
        %v3793 = vpop.trf.xlu0
        %v3794 = vpop.trf.xlu0
        %3795 = vxpose.xlu0.c.b16.start [1/8] %v3717, 128
        %3796 = vxpose.xlu0.c.b16.cont [2/8] 0, 128
        %3797 = vxpose.xlu0.c.b16.cont [3/8] 0, 128
        %3798 = vxpose.xlu0.c.b16.cont [4/8] 0, 128
        %3799 = vxpose.xlu0.c.b16.cont [5/8] 0, 128
        %3800 = vxpose.xlu0.c.b16.cont [6/8] 0, 128
        %3801 = vxpose.xlu0.c.b16.cont [7/8] 0, 128
        %3802 = vxpose.xlu0.c.b16.end [8/8] 0, 128
        %v3803 = vpop.trf.xlu0
        %v3804 = vpop.trf.xlu0
        %v3805 = vpop.trf.xlu0
        %v3806 = vpop.trf.xlu0
        %v3807 = vpop.trf.xlu0
        %v3808 = vpop.trf.xlu0
        %v3809 = vpop.trf.xlu0
        %v3810 = vpop.trf.xlu0
        %3811 = vxpose.xlu0.c.b16.start [1/8] %v3721, 128
        %3812 = vxpose.xlu0.c.b16.cont [2/8] 0, 128
        %3813 = vxpose.xlu0.c.b16.cont [3/8] 0, 128
        %3814 = vxpose.xlu0.c.b16.cont [4/8] 0, 128
        %3815 = vxpose.xlu0.c.b16.cont [5/8] 0, 128
        %3816 = vxpose.xlu0.c.b16.cont [6/8] 0, 128
        %3817 = vxpose.xlu0.c.b16.cont [7/8] 0, 128
        %3818 = vxpose.xlu0.c.b16.end [8/8] 0, 128
        %v3819 = vpop.trf.xlu0
        %v3820 = vpop.trf.xlu0
        %v3821 = vpop.trf.xlu0
        %v3822 = vpop.trf.xlu0
        %v3823 = vpop.trf.xlu0
        %v3824 = vpop.trf.xlu0
        %v3825 = vpop.trf.xlu0
        %v3826 = vpop.trf.xlu0
        %3827 = vxpose.xlu0.c.b16.start [1/8] %v3725, 128
        %3828 = vxpose.xlu0.c.b16.cont [2/8] 0, 128
        %3829 = vxpose.xlu0.c.b16.cont [3/8] 0, 128
        %3830 = vxpose.xlu0.c.b16.cont [4/8] 0, 128
        %3831 = vxpose.xlu0.c.b16.cont [5/8] 0, 128
        %3832 = vxpose.xlu0.c.b16.cont [6/8] 0, 128
        %3833 = vxpose.xlu0.c.b16.cont [7/8] 0, 128
        %3834 = vxpose.xlu0.c.b16.end [8/8] 0, 128
        %v3835 = vpop.trf.xlu0
        %v3836 = vpop.trf.xlu0
        %v3837 = vpop.trf.xlu0
        %v3838 = vpop.trf.xlu0
        %v3839 = vpop.trf.xlu0
        %v3840 = vpop.trf.xlu0
        %v3841 = vpop.trf.xlu0
        %v3842 = vpop.trf.xlu0
        %3843 = vxpose.xlu0.c.b16.start [1/8] %v3729, 128
        %3844 = vxpose.xlu0.c.b16.cont [2/8] 0, 128
        %3845 = vxpose.xlu0.c.b16.cont [3/8] 0, 128
        %3846 = vxpose.xlu0.c.b16.cont [4/8] 0, 128
        %3847 = vxpose.xlu0.c.b16.cont [5/8] 0, 128
        %3848 = vxpose.xlu0.c.b16.cont [6/8] 0, 128
        %3849 = vxpose.xlu0.c.b16.cont [7/8] 0, 128
        %3850 = vxpose.xlu0.c.b16.end [8/8] 0, 128
        %v3851 = vpop.trf.xlu0
        %v3852 = vpop.trf.xlu0
        %v3853 = vpop.trf.xlu0
        %v3854 = vpop.trf.xlu0
        %v3855 = vpop.trf.xlu0
        %v3856 = vpop.trf.xlu0
        %v3857 = vpop.trf.xlu0
        %v3858 = vpop.trf.xlu0
        %v3859 = vrot.slane %v3803, 4
        %v3860 = vsel %vm1231, %v3859, %v3739
        %v3862 = vunpack.c.l.s4 1983009808
        %v3863 = vunpack.c.0.s8 %v3862
        %v3864 = vperm.slane %v3860, %v3863
        %v3865 = vrot.slane %v3835, 4
        %v3866 = vsel %vm1231, %v3865, %v3771
        %v3868 = vunpack.c.l.s4 1983009808
        %v3869 = vunpack.c.0.s8 %v3868
        %v3870 = vperm.slane %v3866, %v3869
        %v3871 = vrot.slane %v3870, 4
        %v3872 = vsel %vm1231, %v3871, %v3864
        %v3874 = vunpack.c.l.s4 1934713408
        %v3875 = vunpack.c.0.s8 %v3874
        %v3876 = vperm.slane %v3872, %v3875
        %v3877 = vrot.slane %v3876, 4
        %v3878 = vsel %vm1231, 0, %v3877
        %v3879 = vrot.slane %v3819, 4
        %v3880 = vsel %vm1231, %v3879, %v3755
        %v3882 = vunpack.c.l.s4 1983009808
        %v3883 = vunpack.c.0.s8 %v3882
        %v3884 = vperm.slane %v3880, %v3883
        %v3885 = vrot.slane %v3851, 4
        %v3886 = vsel %vm1231, %v3885, %v3787
        %v3888 = vunpack.c.l.s4 1983009808
        %v3889 = vunpack.c.0.s8 %v3888
        %v3890 = vperm.slane %v3886, %v3889
        %v3891 = vrot.slane %v3890, 4
        %v3892 = vsel %vm1231, %v3891, %v3884
        %v3894 = vunpack.c.l.s4 1934713408
        %v3895 = vunpack.c.0.s8 %v3894
        %v3896 = vperm.slane %v3892, %v3895
        %v3897 = vrot.slane %v3896, 4
        %v3898 = vsel %vm1231, 0, %v3897
        %v3901 = vpack.i.b16 %v3896, %v3876
        %v3902 = vshrl.u32 %v3876, 16
        %v3903 = vshrl.u32 %v3896, 16
        %v3904 = vpack.i.b16 %v3903, %v3902
        %v3907 = vpack.i.b16 %v3898, %v3878
        %v3908 = vshrl.u32 %v3878, 16
        %v3909 = vshrl.u32 %v3898, 16
        %v3910 = vpack.i.b16 %v3909, %v3908
        %v3912 = vsel %vm1679, %v3901, 0
        %v3915 = vsel %vm1679, %v3511, 0
        %3917 = vmatpush.bf16.xpose.msra.mxu0 0
        %3918 = vmatpush.bf16.xpose.msra.mxu0 0
        %3919 = vmatpush.bf16.xpose.msra.mxu0 0
        %3920 = vmatpush.bf16.xpose.msra.mxu0 0
        %3921 = vmatpush.bf16.xpose.msra.mxu0 0
        %3922 = vmatpush.bf16.xpose.msra.mxu0 0
        %3923 = vmatpush.bf16.xpose.msra.mxu0 0
        %3924 = vmatpush.bf16.xpose.msra.mxu0 %v3915
        %3925 = vmatmul.bf16.gmra.mxu0 %v3912
        %v3926 = vpop.f32.mrf.mxu0
        %v3927 = vadd.f32 0.0, %v3926
        %v3928 = vpop.f32.mrf.mxu0
        %3929 = vdwg.mxu0
        %v3931 = vsel %vm1679, %v3904, 0
        %v3934 = vsel %vm1679, %v3512, 0
        %3936 = vmatpush.bf16.xpose.msra.mxu0 0
        %3937 = vmatpush.bf16.xpose.msra.mxu0 0
        %3938 = vmatpush.bf16.xpose.msra.mxu0 0
        %3939 = vmatpush.bf16.xpose.msra.mxu0 0
        %3940 = vmatpush.bf16.xpose.msra.mxu0 0
        %3941 = vmatpush.bf16.xpose.msra.mxu0 0
        %3942 = vmatpush.bf16.xpose.msra.mxu0 0
        %3943 = vmatpush.bf16.xpose.msra.mxu0 %v3934
        %3944 = vmatmul.bf16.gmra.mxu0 %v3931
        %v3945 = vpop.f32.mrf.mxu0
        %v3946 = vadd.f32 0.0, %v3945
        %v3947 = vpop.f32.mrf.mxu0
        %3948 = vdwg.mxu0
        %v3950 = vsel %vm1679, %v3907, 0
        %v3953 = vsel %vm1679, %v3513, 0
        %3955 = vmatpush.bf16.xpose.msra.mxu0 0
        %3956 = vmatpush.bf16.xpose.msra.mxu0 0
        %3957 = vmatpush.bf16.xpose.msra.mxu0 0
        %3958 = vmatpush.bf16.xpose.msra.mxu0 0
        %3959 = vmatpush.bf16.xpose.msra.mxu0 0
        %3960 = vmatpush.bf16.xpose.msra.mxu0 0
        %3961 = vmatpush.bf16.xpose.msra.mxu0 0
        %3962 = vmatpush.bf16.xpose.msra.mxu0 %v3953
        %3963 = vmatmul.bf16.gmra.mxu0 %v3950
        %v3964 = vpop.f32.mrf.mxu0
        %v3965 = vadd.f32 0.0, %v3964
        %v3966 = vpop.f32.mrf.mxu0
        %3967 = vdwg.mxu0
        %v3969 = vsel %vm1679, %v3910, 0
        %v3972 = vsel %vm1679, %v3514, 0
        %3974 = vmatpush.bf16.xpose.msra.mxu0 0
        %3975 = vmatpush.bf16.xpose.msra.mxu0 0
        %3976 = vmatpush.bf16.xpose.msra.mxu0 0
        %3977 = vmatpush.bf16.xpose.msra.mxu0 0
        %3978 = vmatpush.bf16.xpose.msra.mxu0 0
        %3979 = vmatpush.bf16.xpose.msra.mxu0 0
        %3980 = vmatpush.bf16.xpose.msra.mxu0 0
        %3981 = vmatpush.bf16.xpose.msra.mxu0 %v3972
        %3982 = vmatmul.bf16.gmra.mxu0 %v3969
        %v3983 = vpop.f32.mrf.mxu0
        %v3984 = vadd.f32 0.0, %v3983
        %v3985 = vpop.f32.mrf.mxu0
        %3986 = vdwg.mxu0
        %3987 = vxpose.xlu0.b32.start [1/16] %v3927, 128
        %3988 = vxpose.xlu0.b32.cont [2/16] 0.0, 128
        %3989 = vxpose.xlu0.b32.cont [3/16] 0.0, 128
        %3990 = vxpose.xlu0.b32.cont [4/16] 0.0, 128
        %3991 = vxpose.xlu0.b32.cont [5/16] 0.0, 128
        %3992 = vxpose.xlu0.b32.cont [6/16] 0.0, 128
        %3993 = vxpose.xlu0.b32.cont [7/16] 0.0, 128
        %3994 = vxpose.xlu0.b32.cont [8/16] 0.0, 128
        %3995 = vxpose.xlu0.b32.cont [9/16] 0.0, 128
        %3996 = vxpose.xlu0.b32.cont [10/16] 0.0, 128
        %3997 = vxpose.xlu0.b32.cont [11/16] 0.0, 128
        %3998 = vxpose.xlu0.b32.cont [12/16] 0.0, 128
        %3999 = vxpose.xlu0.b32.cont [13/16] 0.0, 128
        %4000 = vxpose.xlu0.b32.cont [14/16] 0.0, 128
        %4001 = vxpose.xlu0.b32.cont [15/16] 0.0, 128
        %4002 = vxpose.xlu0.b32.end [16/16] 0.0, 128
        %v4003 = vpop.trf.xlu0
        %v4004 = vpop.trf.xlu0
        %v4005 = vpop.trf.xlu0
        %v4006 = vpop.trf.xlu0
        %v4007 = vpop.trf.xlu0
        %v4008 = vpop.trf.xlu0
        %v4009 = vpop.trf.xlu0
        %v4010 = vpop.trf.xlu0
        %v4011 = vpop.trf.xlu0
        %v4012 = vpop.trf.xlu0
        %v4013 = vpop.trf.xlu0
        %v4014 = vpop.trf.xlu0
        %v4015 = vpop.trf.xlu0
        %v4016 = vpop.trf.xlu0
        %v4017 = vpop.trf.xlu0
        %v4018 = vpop.trf.xlu0
        %4019 = vxpose.xlu0.b32.start [1/16] %v3946, 128
        %4020 = vxpose.xlu0.b32.cont [2/16] 0.0, 128
        %4021 = vxpose.xlu0.b32.cont [3/16] 0.0, 128
        %4022 = vxpose.xlu0.b32.cont [4/16] 0.0, 128
        %4023 = vxpose.xlu0.b32.cont [5/16] 0.0, 128
        %4024 = vxpose.xlu0.b32.cont [6/16] 0.0, 128
        %4025 = vxpose.xlu0.b32.cont [7/16] 0.0, 128
        %4026 = vxpose.xlu0.b32.cont [8/16] 0.0, 128
        %4027 = vxpose.xlu0.b32.cont [9/16] 0.0, 128
        %4028 = vxpose.xlu0.b32.cont [10/16] 0.0, 128
        %4029 = vxpose.xlu0.b32.cont [11/16] 0.0, 128
        %4030 = vxpose.xlu0.b32.cont [12/16] 0.0, 128
        %4031 = vxpose.xlu0.b32.cont [13/16] 0.0, 128
        %4032 = vxpose.xlu0.b32.cont [14/16] 0.0, 128
        %4033 = vxpose.xlu0.b32.cont [15/16] 0.0, 128
        %4034 = vxpose.xlu0.b32.end [16/16] 0.0, 128
        %v4035 = vpop.trf.xlu0
        %v4036 = vpop.trf.xlu0
        %v4037 = vpop.trf.xlu0
        %v4038 = vpop.trf.xlu0
        %v4039 = vpop.trf.xlu0
        %v4040 = vpop.trf.xlu0
        %v4041 = vpop.trf.xlu0
        %v4042 = vpop.trf.xlu0
        %v4043 = vpop.trf.xlu0
        %v4044 = vpop.trf.xlu0
        %v4045 = vpop.trf.xlu0
        %v4046 = vpop.trf.xlu0
        %v4047 = vpop.trf.xlu0
        %v4048 = vpop.trf.xlu0
        %v4049 = vpop.trf.xlu0
        %v4050 = vpop.trf.xlu0
        %4051 = vxpose.xlu0.b32.start [1/16] %v3965, 128
        %4052 = vxpose.xlu0.b32.cont [2/16] 0.0, 128
        %4053 = vxpose.xlu0.b32.cont [3/16] 0.0, 128
        %4054 = vxpose.xlu0.b32.cont [4/16] 0.0, 128
        %4055 = vxpose.xlu0.b32.cont [5/16] 0.0, 128
        %4056 = vxpose.xlu0.b32.cont [6/16] 0.0, 128
        %4057 = vxpose.xlu0.b32.cont [7/16] 0.0, 128
        %4058 = vxpose.xlu0.b32.cont [8/16] 0.0, 128
        %4059 = vxpose.xlu0.b32.cont [9/16] 0.0, 128
        %4060 = vxpose.xlu0.b32.cont [10/16] 0.0, 128
        %4061 = vxpose.xlu0.b32.cont [11/16] 0.0, 128
        %4062 = vxpose.xlu0.b32.cont [12/16] 0.0, 128
        %4063 = vxpose.xlu0.b32.cont [13/16] 0.0, 128
        %4064 = vxpose.xlu0.b32.cont [14/16] 0.0, 128
        %4065 = vxpose.xlu0.b32.cont [15/16] 0.0, 128
        %4066 = vxpose.xlu0.b32.end [16/16] 0.0, 128
        %v4067 = vpop.trf.xlu0
        %v4068 = vpop.trf.xlu0
        %v4069 = vpop.trf.xlu0
        %v4070 = vpop.trf.xlu0
        %v4071 = vpop.trf.xlu0
        %v4072 = vpop.trf.xlu0
        %v4073 = vpop.trf.xlu0
        %v4074 = vpop.trf.xlu0
        %v4075 = vpop.trf.xlu0
        %v4076 = vpop.trf.xlu0
        %v4077 = vpop.trf.xlu0
        %v4078 = vpop.trf.xlu0
        %v4079 = vpop.trf.xlu0
        %v4080 = vpop.trf.xlu0
        %v4081 = vpop.trf.xlu0
        %v4082 = vpop.trf.xlu0
        %4083 = vxpose.xlu0.b32.start [1/16] %v3984, 128
        %4084 = vxpose.xlu0.b32.cont [2/16] 0.0, 128
        %4085 = vxpose.xlu0.b32.cont [3/16] 0.0, 128
        %4086 = vxpose.xlu0.b32.cont [4/16] 0.0, 128
        %4087 = vxpose.xlu0.b32.cont [5/16] 0.0, 128
        %4088 = vxpose.xlu0.b32.cont [6/16] 0.0, 128
        %4089 = vxpose.xlu0.b32.cont [7/16] 0.0, 128
        %4090 = vxpose.xlu0.b32.cont [8/16] 0.0, 128
        %4091 = vxpose.xlu0.b32.cont [9/16] 0.0, 128
        %4092 = vxpose.xlu0.b32.cont [10/16] 0.0, 128
        %4093 = vxpose.xlu0.b32.cont [11/16] 0.0, 128
        %4094 = vxpose.xlu0.b32.cont [12/16] 0.0, 128
        %4095 = vxpose.xlu0.b32.cont [13/16] 0.0, 128
        %4096 = vxpose.xlu0.b32.cont [14/16] 0.0, 128
        %4097 = vxpose.xlu0.b32.cont [15/16] 0.0, 128
        %4098 = vxpose.xlu0.b32.end [16/16] 0.0, 128
        %v4099 = vpop.trf.xlu0
        %v4100 = vpop.trf.xlu0
        %v4101 = vpop.trf.xlu0
        %v4102 = vpop.trf.xlu0
        %v4103 = vpop.trf.xlu0
        %v4104 = vpop.trf.xlu0
        %v4105 = vpop.trf.xlu0
        %v4106 = vpop.trf.xlu0
        %v4107 = vpop.trf.xlu0
        %v4108 = vpop.trf.xlu0
        %v4109 = vpop.trf.xlu0
        %v4110 = vpop.trf.xlu0
        %v4111 = vpop.trf.xlu0
        %v4112 = vpop.trf.xlu0
        %v4113 = vpop.trf.xlu0
        %v4114 = vpop.trf.xlu0
        %v4115 = vrot.slane %v4067, 4
        %v4116 = vsel %vm1016, %v4115, %v4003
        %v4117 = vrot.slane %v4003, 4
        %v4118 = vsel %vm1016, %v4067, %v4117
        %v4120 = vunpack.c.l.s4 1983009808
        %v4121 = vunpack.c.0.s8 %v4120
        %v4122 = vperm.slane %v4116, %v4121
        %v4124 = vunpack.c.l.s4 1983009808
        %v4125 = vunpack.c.0.s8 %v4124
        %v4126 = vperm.slane %v4118, %v4125
        %v4127 = vrot.slane %v4099, 4
        %v4128 = vsel %vm1016, %v4127, %v4035
        %v4129 = vrot.slane %v4035, 4
        %v4130 = vsel %vm1016, %v4099, %v4129
        %v4132 = vunpack.c.l.s4 1983009808
        %v4133 = vunpack.c.0.s8 %v4132
        %v4134 = vperm.slane %v4128, %v4133
        %v4136 = vunpack.c.l.s4 1983009808
        %v4137 = vunpack.c.0.s8 %v4136
        %v4138 = vperm.slane %v4130, %v4137
        %v4139 = vrot.slane %v4134, 4
        %v4140 = vsel %vm1016, %v4139, %v4122
        %v4141 = vrot.slane %v4122, 4
        %v4142 = vsel %vm1016, %v4134, %v4141
        %v4144 = vunpack.c.l.s4 1934713408
        %v4145 = vunpack.c.0.s8 %v4144
        %v4146 = vperm.slane %v4140, %v4145
        %v4148 = vunpack.c.l.s4 1934713408
        %v4149 = vunpack.c.0.s8 %v4148
        %v4150 = vperm.slane %v4142, %v4149
        %v4151 = vrot.slane %v4138, 4
        %v4152 = vsel %vm1016, %v4151, %v4126
        %v4153 = vrot.slane %v4126, 4
        %v4154 = vsel %vm1016, %v4138, %v4153
        %v4156 = vunpack.c.l.s4 1934713408
        %v4157 = vunpack.c.0.s8 %v4156
        %v4158 = vperm.slane %v4152, %v4157
        %v4160 = vunpack.c.l.s4 1934713408
        %v4161 = vunpack.c.0.s8 %v4160
        %v4162 = vperm.slane %v4154, %v4161
        %v4163 = vrot.slane %v4146, 4
        %v4164 = vsel %vm1016, 0.0, %v4163
        %v4165 = vrot.slane %v4150, 4
        %v4166 = vsel %vm1016, 0.0, %v4165
        %v4167 = vrot.slane %v4158, 4
        %v4168 = vsel %vm1016, 0.0, %v4167
        %v4169 = vrot.slane %v4162, 4
        %v4170 = vsel %vm1016, 0.0, %v4169
        %v4171 = vsel %vm1016, %v4165, %v4146
        %v4173 = vunpack.c.l.s4 1983009808
        %v4174 = vunpack.c.0.s8 %v4173
        %v4175 = vperm.slane %v4171, %v4174
        %v4176 = vrot.slane %v4166, 4
        %v4177 = vsel %vm1016, %v4176, %v4164
        %v4179 = vunpack.c.l.s4 1983009808
        %v4180 = vunpack.c.0.s8 %v4179
        %v4181 = vperm.slane %v4177, %v4180
        %v4182 = vsel %vm1016, %v4169, %v4158
        %v4184 = vunpack.c.l.s4 1983009808
        %v4185 = vunpack.c.0.s8 %v4184
        %v4186 = vperm.slane %v4182, %v4185
        %v4187 = vrot.slane %v4170, 4
        %v4188 = vsel %vm1016, %v4187, %v4168
        %v4190 = vunpack.c.l.s4 1983009808
        %v4191 = vunpack.c.0.s8 %v4190
        %v4192 = vperm.slane %v4188, %v4191
        %v4193 = vrot.slane %v4181, 4
        %v4194 = vsel %vm1016, %v4193, %v4175
        %v4195 = vrot.slane %v4175, 4
        %v4196 = vsel %vm1016, %v4181, %v4195
        %v4198 = vunpack.c.l.s4 1934713408
        %v4199 = vunpack.c.0.s8 %v4198
        %v4200 = vperm.slane %v4194, %v4199
        %v4202 = vunpack.c.l.s4 1934713408
        %v4203 = vunpack.c.0.s8 %v4202
        %v4204 = vperm.slane %v4196, %v4203
        %v4205 = vrot.slane %v4192, 4
        %v4206 = vsel %vm1016, %v4205, %v4186
        %v4207 = vrot.slane %v4186, 4
        %v4208 = vsel %vm1016, %v4192, %v4207
        %v4210 = vunpack.c.l.s4 1934713408
        %v4211 = vunpack.c.0.s8 %v4210
        %v4212 = vperm.slane %v4206, %v4211
        %v4214 = vunpack.c.l.s4 1934713408
        %v4215 = vunpack.c.0.s8 %v4214
        %v4216 = vperm.slane %v4208, %v4215
        %v4217 = vrot.slane %v4212, 4
        %v4218 = vsel %vm1016, %v4217, %v4200
        %v4219 = vrot.slane %v4200, 4
        %v4220 = vsel %vm1016, %v4212, %v4219
        %v4221 = vrot.slane %v4216, 4
        %v4222 = vsel %vm1016, %v4221, %v4204
        %v4223 = vrot.slane %v4204, 4
        %v4224 = vsel %vm1016, %v4216, %v4223
        %4226 = vrot.lane.b32.xlu0 %v4220, 8
        %v4227 = vpop.permute.xlu0 %4226
        %4230 = vrot.lane.b32.xlu0 %v4222, 16
        %v4231 = vpop.permute.xlu0 %4230
        %4234 = vrot.lane.b32.xlu0 %v4224, 24
        %v4235 = vpop.permute.xlu0 %4234
        %v4237 = vsel %vm1679, %v4218, %v4227
        %v4238 = vsel %vm2528, %v4237, %v4231
        %v4239 = vsel %vm2530, %v4238, %v4235
        %v4240 = vpack.c.bf16 %v4239, %v4239
        %v4241 = vld [vmem:[%s17] sm:$0xf]
        %v4242 = vld [vmem:[%s17 + $0x4] sm:$0xf]
        %v4243 = vld [vmem:[%s17 + $0x8] sm:$0xf]
        %v4244 = vld [vmem:[%s17 + $0xc] sm:$0xf]
        %v4245 = vld [vmem:[%s18] sm:$0x1]
        %v4247 = vperm.slane %v4245, 0
        %v4253 = vunpack.c.l.b16 %v4241
        %v4254 = vunpack.c.l.b16 %v4242
        %v4255 = vunpack.c.l.b16 %v4243
        %v4256 = vunpack.c.l.b16 %v4244
        %v4257 = vpack.c.b16 %v4254, %v4253
        %v4258 = vpack.c.b16 %v4256, %v4255
        %v4260 = vsel %vm929, %v4240, 0
        %v4263 = vsel %vm929, %v4257, 0
        %v4266 = vsel %vm929, %v4258, 0
        %4268 = vmatpush.bf16.xpose.msra.mxu0 0
        %4269 = vmatpush.bf16.xpose.msra.mxu0 0
        %4270 = vmatpush.bf16.xpose.msra.mxu0 0
        %4271 = vmatpush.bf16.xpose.msra.mxu0 0
        %4272 = vmatpush.bf16.xpose.msra.mxu0 0
        %4273 = vmatpush.bf16.xpose.msra.mxu0 0
        %4274 = vmatpush.bf16.xpose.msra.mxu0 %v4266
        %4275 = vmatpush.bf16.xpose.msra.mxu0 %v4263
        %4276 = vmatmul.bf16.gmra.mxu0 %v4260
        %v4277 = vpop.f32.mrf.mxu0
        %v4278 = vadd.f32 %v4247, %v4277
        %v4279 = vpop.f32.mrf.mxu0
        %4280 = vdwg.mxu0
        %v4281 = vadd.f32 %v4278, %v2612
        %v4282 = vsel %vm929, %v4281, 0.0
        %4283 = vadd.xlane.f32.xlu0 %v4282
        %v4284 = vpop.xlane.xlu0 %4283
        %v4285 = vmul.f32 %v4284, %v2583
        %v4286 = vsub.f32 %v4281, %v4285
        %v4287 = vmul.f32 %v4286, %v4286
        %v4288 = vsel %vm929, %v4287, 0.0
        %4289 = vadd.xlane.f32.xlu0 %v4288
        %v4290 = vpop.xlane.xlu0 %4289
        %v4291 = vmul.f32 %v4290, %v2583
        %v4292 = vadd.f32 %v4291, 1e-05
        %v4293 = vrsqrt.pop %v4292
        %v4294 = vmul.f32 %v4293, %v4292
        %v4295 = vmul.f32 %v4294, %v4293
        %v4296 = vmul.f32 0.5, %v4295
        %v4297 = vsub.f32 1.5, %v4296
        %v4298 = vmul.f32 %v4293, %v4297
        %vm4299 = vweird.f32 %v4292
        %vm4300 = vweird.f32 %v4293
        %vm4301 = vmor %vm4299, %vm4300
        %v4302 = vsel %vm4301, %v4293, %v4298
        %v4303 = vmul.f32 %v4286, %v4302
        %v4304 = vld [vmem:[%s19] sm:$0x1]
        %v4306 = vperm.slane %v4304, 0
        %v4308 = vmul.f32 %v4303, %v4306
        %v4309 = vld [vmem:[%s20] sm:$0x1]
        %v4311 = vperm.slane %v4309, 0
        %v4313 = vadd.f32 %v4308, %v4311
        %v4314 = vpack.c.bf16 %v4313, %v4313
        %v4315 = vld [vmem:[%s21] sm:$0xf]
        %v4316 = vld [vmem:[%s21 + $0x4] sm:$0xf]
        %v4317 = vld [vmem:[%s21 + $0x8] sm:$0xf]
        %v4318 = vld [vmem:[%s21 + $0xc] sm:$0xf]
        %v4319 = vld [vmem:[%s21 + $0x10] sm:$0xf]
        %v4320 = vld [vmem:[%s21 + $0x14] sm:$0xf]
        %v4321 = vld [vmem:[%s21 + $0x18] sm:$0xf]
        %v4322 = vld [vmem:[%s21 + $0x1c] sm:$0xf]
        %v4323 = vld [vmem:[%s21 + $0x20] sm:$0xf]
        %v4324 = vld [vmem:[%s21 + $0x24] sm:$0xf]
        %v4325 = vld [vmem:[%s21 + $0x28] sm:$0xf]
        %v4326 = vld [vmem:[%s21 + $0x2c] sm:$0xf]
        %v4327 = vld [vmem:[%s21 + $0x30] sm:$0xf]
        %v4328 = vld [vmem:[%s21 + $0x34] sm:$0xf]
        %v4329 = vld [vmem:[%s21 + $0x38] sm:$0xf]
        %v4330 = vld [vmem:[%s21 + $0x3c] sm:$0xf]
        %v4331 = vld [vmem:[%s22] sm:$0x1]
        %v4333 = vperm.slane %v4331, 0
        %v4351 = vunpack.c.l.b16 %v4315
        %v4352 = vunpack.c.l.b16 %v4316
        %v4353 = vunpack.c.l.b16 %v4317
        %v4354 = vunpack.c.l.b16 %v4318
        %v4355 = vunpack.c.l.b16 %v4319
        %v4356 = vunpack.c.l.b16 %v4320
        %v4357 = vunpack.c.l.b16 %v4321
        %v4358 = vunpack.c.l.b16 %v4322
        %v4359 = vunpack.c.l.b16 %v4323
        %v4360 = vunpack.c.l.b16 %v4324
        %v4361 = vunpack.c.l.b16 %v4325
        %v4362 = vunpack.c.l.b16 %v4326
        %v4363 = vunpack.c.l.b16 %v4327
        %v4364 = vunpack.c.l.b16 %v4328
        %v4365 = vunpack.c.l.b16 %v4329
        %v4366 = vunpack.c.l.b16 %v4330
        %v4367 = vpack.c.b16 %v4352, %v4351
        %v4368 = vpack.c.b16 %v4354, %v4353
        %v4369 = vpack.c.b16 %v4356, %v4355
        %v4370 = vpack.c.b16 %v4358, %v4357
        %v4371 = vpack.c.b16 %v4360, %v4359
        %v4372 = vpack.c.b16 %v4362, %v4361
        %v4373 = vpack.c.b16 %v4364, %v4363
        %v4374 = vpack.c.b16 %v4366, %v4365
        %v4376 = vsel %vm929, %v4314, 0
        %v4379 = vsel %vm929, %v4367, 0
        %v4382 = vsel %vm929, %v4368, 0
        %v4385 = vsel %vm929, %v4369, 0
        %v4388 = vsel %vm929, %v4370, 0
        %v4391 = vsel %vm929, %v4371, 0
        %v4394 = vsel %vm929, %v4372, 0
        %v4397 = vsel %vm929, %v4373, 0
        %v4400 = vsel %vm929, %v4374, 0
        %4402 = vmatpush.bf16.xpose.msra.mxu0 %v4400
        %4403 = vmatpush.bf16.xpose.msra.mxu0 %v4397
        %4404 = vmatpush.bf16.xpose.msra.mxu0 %v4394
        %4405 = vmatpush.bf16.xpose.msra.mxu0 %v4391
        %4406 = vmatpush.bf16.xpose.msra.mxu0 %v4388
        %4407 = vmatpush.bf16.xpose.msra.mxu0 %v4385
        %4408 = vmatpush.bf16.xpose.msra.mxu0 %v4382
        %4409 = vmatpush.bf16.xpose.msra.mxu0 %v4379
        %4410 = vmatmul.bf16.gmra.mxu0 %v4376
        %v4411 = vpop.f32.mrf.mxu0
        %v4412 = vadd.f32 %v4333, %v4411
        %v4413 = vpop.f32.mrf.mxu0
        %4414 = vdwg.mxu0
        %v4415 = vmax.f32 %v4412, 0.0
        %v4416 = vpack.c.bf16 %v4415, %v4415
        %v4417 = vld [vmem:[%s23] sm:$0xf]
        %v4418 = vld [vmem:[%s23 + $0x4] sm:$0xf]
        %v4419 = vld [vmem:[%s23 + $0x8] sm:$0xf]
        %v4420 = vld [vmem:[%s23 + $0xc] sm:$0xf]
        %v4421 = vld [vmem:[%s24] sm:$0x1]
        %v4423 = vperm.slane %v4421, 0
        %v4429 = vunpack.c.l.b16 %v4417
        %v4430 = vunpack.c.l.b16 %v4418
        %v4431 = vunpack.c.l.b16 %v4419
        %v4432 = vunpack.c.l.b16 %v4420
        %v4433 = vpack.c.b16 %v4430, %v4429
        %v4434 = vpack.c.b16 %v4432, %v4431
        %4437 = vmatpush.bf16.xpose.msra.mxu0 0
        %4438 = vmatpush.bf16.xpose.msra.mxu0 0
        %4439 = vmatpush.bf16.xpose.msra.mxu0 0
        %4440 = vmatpush.bf16.xpose.msra.mxu0 0
        %4441 = vmatpush.bf16.xpose.msra.mxu0 0
        %4442 = vmatpush.bf16.xpose.msra.mxu0 0
        %4443 = vmatpush.bf16.xpose.msra.mxu0 %v4434
        %4444 = vmatpush.bf16.xpose.msra.mxu0 %v4433
        %4445 = vmatmul.bf16.gmra.mxu0 %v4416
        %v4446 = vpop.f32.mrf.mxu0
        %v4447 = vadd.f32 %v4423, %v4446
        %v4448 = vpop.f32.mrf.mxu0
        %4449 = vdwg.mxu0
        %v4450 = vadd.f32 %v4447, %v4313
        %v4451 = vsel %vm929, %v4450, 0.0
        %4452 = vadd.xlane.f32.xlu0 %v4451
        %v4453 = vpop.xlane.xlu0 %4452
        %v4454 = vmul.f32 %v4453, %v2583
        %v4455 = vsub.f32 %v4450, %v4454
        %v4456 = vmul.f32 %v4455, %v4455
        %v4457 = vsel %vm929, %v4456, 0.0
        %4458 = vadd.xlane.f32.xlu0 %v4457
        %v4459 = vpop.xlane.xlu0 %4458
        %v4460 = vmul.f32 %v4459, %v2583
        %v4461 = vadd.f32 %v4460, 1e-05
        %v4462 = vrsqrt.pop %v4461
        %v4463 = vmul.f32 %v4462, %v4461
        %v4464 = vmul.f32 %v4463, %v4462
        %v4465 = vmul.f32 0.5, %v4464
        %v4466 = vsub.f32 1.5, %v4465
        %v4467 = vmul.f32 %v4462, %v4466
        %vm4468 = vweird.f32 %v4461
        %vm4469 = vweird.f32 %v4462
        %vm4470 = vmor %vm4468, %vm4469
        %v4471 = vsel %vm4470, %v4462, %v4467
        %v4472 = vmul.f32 %v4455, %v4471
        %v4473 = vld [vmem:[%s25] sm:$0x1]
        %v4475 = vperm.slane %v4473, 0
        %v4477 = vmul.f32 %v4472, %v4475
        %v4478 = vld [vmem:[%s26] sm:$0x1]
        %v4480 = vperm.slane %v4478, 0
        %v4482 = vadd.f32 %v4477, %v4480
        %4483 = vst.msk [vmem:[%s871] sm:$0xff] %vm929, %v4482
        %s4484 = sand.u32 %s655, 1
        %s4485 = scalar_lea.sflag [#allocation3], %s4484
        %s4486 = sand.u32 %s655, 1
        %s4487 = smul.addr %s4486, 8
        %s4488 = scalar_lea.vmem [#allocation2], %s4487
        // Predicated region
        $region129: #{decoder_forward.1} parent=127 // pred_check
          %p4489 = pneg %p665
        $region130: #{decoder_forward.1} parent=127 // pred_check_branch
          %4491 = sbr.rel (%p4489) target = $region132
        $region131: #{decoder_forward.1} parent=127 // pred_region
          %4493 = vsyncadd %s4485, 0
          %s4494 = sadd.s32 %s46, %s45
          %s4495 = smul.addr %s4494, 8
          %s4496 = scalar_lea.hbm %s27, %s4495
          %s4498 = sshll.u32 %s4488, 4
          %s4499 = int_to_ptr.vmem [resolvable:$true] %s4498
          %s4500 = sshll.u32 %s4496, 4
          %s4501 = int_to_ptr.hbm [resolvable:$true] %s4500
          %4503 = dma.vmem_to_hbm [thread:$0]  %s4499, 128, %s4501, %s4485
        $region132: #{decoder_forward.1} parent=127 // pred_fallthru
          _
      $region128: #{decoder_forward.1} parent=5 // pred_fallthru
        _
      %p4504 = scmp.le.s32.totalorder 2, %s36
      // Predicated region
      $region133: #{decoder_forward.1} parent=5 // pred_check
        %p4505 = pneg %p4504
      $region134: #{decoder_forward.1} parent=5 // pred_check_branch
        %4507 = sbr.rel (%p4505) target = $region136
      $region135: #{decoder_forward.1} parent=5 // pred_region
        %s4508 = ssub.s32 %s36, 2
        // Predicated region
        $region137: #{decoder_forward.1} parent=135 // pred_check
          %p4509 = pneg %p671
        $region138: #{decoder_forward.1} parent=135 // pred_check_branch
          %4511 = sbr.rel (%p4509) target = $region140
        $region139: #{decoder_forward.1} parent=135 // pred_region
          %s4512 = sand.u32 %s656, 1
          %s4513 = scalar_lea.sflag [#allocation3], %s4512
          %s4514 = sand.u32 %s656, 1
          %s4515 = smul.addr %s4514, 8
          %s4516 = scalar_lea.vmem [#allocation2], %s4515
          %4518 = dma.done %s4513, 128
        $region140: #{decoder_forward.1} parent=135 // pred_fallthru
          _
      $region136: #{decoder_forward.1} parent=5 // pred_fallthru
        _
    $region6: #{decoder_forward.1} parent=1 // loop_footer
      %s40 = sadd.s32 1, %s36
    $region7: #{decoder_forward.1} parent=1 // loop_footer_branch
      %35 = sbr.rel target = $region3
    $region8: #{decoder_forward.1} parent=1 // loop_exit
      _
    %4519 = vsyncpa [#allocation3], 1
    %s4520 = scalar_lea.sflag [#allocation3], 1
    %4521 = vsyncpa %s4520, 1

</llo_original>
